<compile_context>
chip_gen: v5e
topology: v5e:2x2
jax: 0.10.0
libtpu: 0.0.40
codegen_flags: <defaults>
</compile_context>

<pallas_src>
import numpy as np
import jax
import jax.numpy as jnp
from jax.experimental import pallas as pl
from jax.experimental.pallas import tpu as pltpu

LANE = 128   # conv output lane dims are zero-padded to a multiple of this


def _round_up(x, m):
    return ((x + m - 1) // m) * m


# -----------------------------------------------------------------------------
# Host-side static selector / shift-matrix construction (numpy, one-time).
# -----------------------------------------------------------------------------
def _fwd_select(w_in, kw, ow, pw):
    """S[iw, dx, ow] = 1  iff  iw == ow + dx - pw  (forward conv, stride 1)."""
    s = np.zeros((w_in, kw, ow), np.float32)
    for o in range(ow):
        for dx in range(kw):
            iw = o + dx - pw
            if 0 <= iw < w_in:
                s[iw, dx, o] = 1.0
    return s


def _tr_select(w_in, kw, ow, pw, sw):
    """S[iw, kx, ow] = 1  iff  iw*sw + kx - pw == ow  (transposed conv in W)."""
    s = np.zeros((w_in, kw, ow), np.float32)
    for iw in range(w_in):
        for kx in range(kw):
            o = iw * sw + kx - pw
            if 0 <= o < ow:
                s[iw, kx, o] = 1.0
    return s


def _shift_mats(kh, oh, h_in, pt):
    """A[t, r, j] = 1 iff j == r + t - pt.  Folds the H zero-padding / row
       shift of a kh-row conv into a tiny 0/1 matmul (MXU) so the kernel never
       needs sublane-shifted slices of bf16 values."""
    a = np.zeros((kh, oh, h_in), np.float32)
    for t in range(kh):
        for r in range(oh):
            j = r + t - pt
            if 0 <= j < h_in:
                a[t, r, j] = 1.0
    return jnp.asarray(a)


def _pad2(t, lin_pad, lout_pad):
    kh, lin, lout = t.shape
    return jnp.pad(t, ((0, 0), (0, lin_pad - lin), (0, lout_pad - lout)))


def _toeplitz_fwd(wgt, w_in, pw, lin_pad, lout_pad):
    """wgt: (kh, kw, Cin, Cout) HWIO.  Returns (kh, lin_pad, lout_pad) bf16."""
    kh, kw, cin, cout = wgt.shape
    ow = w_in + 2 * pw - kw + 1
    sel = jnp.asarray(_fwd_select(w_in, kw, ow, pw))
    t = jnp.einsum('wxo,yxcd->ywcod', sel, wgt)        # (kh, W, Cin, OW, Cout)
    t = t.reshape(kh, w_in * cin, ow * cout)
    return _pad2(t, lin_pad, lout_pad).astype(jnp.bfloat16)


def _toeplitz_tr(wt, w_in, pw, sw, opw, lin_pad, lout_pad):
    """wt: (Cin, Cout, kH, kW) (PyTorch ConvTranspose2d layout).  W-direction
       stride phases are absorbed (no zero-dilated columns)."""
    cin, cout, kh, kw = wt.shape
    ow = (w_in - 1) * sw - 2 * pw + kw + opw
    sel = jnp.asarray(_tr_select(w_in, kw, ow, pw, sw))
    t = jnp.einsum('wxo,cdyx->ywcod', sel, wt)         # (kh, W, Cin, OW, Cout)
    t = t[::-1]                    # term index t uses kernel row kh-1-t
    t = t.reshape(kh, w_in * cin, ow * cout)
    return _pad2(t, lin_pad, lout_pad).astype(jnp.bfloat16), ow


def _fold_bn(bn, conv_bias=None, eps=1e-5):
    s = bn['gamma'] / jnp.sqrt(bn['var'] + eps)
    shift = bn['beta'] - bn['mean'] * s
    if conv_bias is not None:
        shift = shift + conv_bias * s
    return s, shift


def _tile_pad(vec, ow, lpad):
    v = jnp.tile(vec.astype(jnp.float32), ow)
    return jnp.pad(v, (0, lpad - v.shape[0])).reshape(1, lpad)


# -----------------------------------------------------------------------------
# One-time weight preparation (hoisted out of the jitted forward).
# -----------------------------------------------------------------------------
def prepare_decoder(params, stride, x_shape, h_shapes):
    """Returns (weights pytree-of-arrays, static per-layer config)."""
    sh_, sw_ = stride
    if sh_ != 1:
        # TODO(synk): stride_h > 1 needs a per-phase H decomposition.
        raise NotImplementedError("fused decoder supports stride_h == 1 only")
    oph = (0, 1) if stride == (1, 2) else (1, 1)

    _, h_in, w_in, cin = x_shape
    lin_pad = w_in * cin            # layer-0 input rows are exact width
    weights, cfg = [], []
    for i, p in enumerate(params):
        cin_l, cout, kh, kw = p['ct_w'].shape
        assert cin_l == cin and kh == 3 and kw == 3
        ow = (w_in - 1) * sw_ - 2 * 1 + kw + oph[1]
        oh = h_in - 1 - 2 * 1 + kh + oph[0]
        lt = ow * cout
        lt_pad = _round_up(lt, LANE)

        hs = h_shapes[-i - 1]
        assert hs[1] == oh and hs[2] == ow and hs[3] == cout, (hs, oh, ow, cout)

        # ConvTranspose2d (W via Toeplitz, H via shift matrices) + folded BN.
        tw, ow2 = _toeplitz_tr(p['ct_w'], w_in, 1, sw_, oph[1], lin_pad, lt_pad)
        assert ow2 == ow
        s, b = _fold_bn(p['ct_bn'])
        wl = dict(
            a_ct=_shift_mats(kh, oh, h_in, kh - 1 - 1),
            a_res=_shift_mats(3, oh, oh, 1),
            tw=tw,
            tsc=_tile_pad(s, ow, lt_pad),
            tsh=_tile_pad(b, ow, lt_pad),
            blocks=[],
        )

        n_blocks = len(p['res_blocks'])
        assert n_blocks >= 1
        for j, bp in enumerate(p['res_blocks']):
            s1, b1 = _fold_bn(bp['bn1'], bp['conv1_b'])
            s2, b2 = _fold_bn(bp['bn2'], bp['conv2_b'])
            bw = dict(
                s1=_tile_pad(s1, ow, lt_pad), b1=_tile_pad(b1, ow, lt_pad),
                w2=_toeplitz_fwd(bp['conv2_w'], ow, 1, lt_pad, lt_pad),
                s2=_tile_pad(s2, ow, lt_pad), b2=_tile_pad(b2, ow, lt_pad),
            )
            if j == 0:
                # torch.cat((x, h), 1) stays logical: channel-split weights.
                assert bp['res_w'] is not None
                bw['w1x'] = _toeplitz_fwd(bp['conv1_w'][:, :, :cout, :],
                                          ow, 1, lt_pad, lt_pad)
                bw['w1h'] = _toeplitz_fwd(bp['conv1_w'][:, :, cout:, :],
                                          ow, 1, lt, lt_pad)
                bw['wrx'] = _toeplitz_fwd(bp['res_w'][:, :, :cout, :],
                                          ow, 0, lt_pad, lt_pad)
                bw['wrh'] = _toeplitz_fwd(bp['res_w'][:, :, cout:, :],
                                          ow, 0, lt, lt_pad)
                bw['br'] = _tile_pad(bp['res_b'], ow, lt_pad)
            else:
                bw['w1'] = _toeplitz_fwd(bp['conv1_w'], ow, 1, lt_pad, lt_pad)
            wl['blocks'].append(bw)

        weights.append(wl)
        cfg.append(dict(oh=oh, ow=ow, cout=cout, lt=lt, lt_pad=lt_pad,
                        n_blocks=n_blocks))
        # next layer consumes this layer's (lane-padded) output
        h_in, w_in, cin, lin_pad = oh, ow, cout, lt_pad
    return weights, cfg


# -----------------------------------------------------------------------------
# Fused per-layer kernel: ConvTranspose2d+BN+ReLU, logical concat with h,
# then n_blocks x (1x1 res conv, conv1+BN+ReLU, conv2+BN+residual+ReLU),
# all in VMEM; single lane-dense bf16 store at the end.
# -----------------------------------------------------------------------------
def _make_layer_kernel(n_blocks):
    def kernel(*refs):
        it = iter(refs)
        x_ref, h_ref = next(it), next(it)
        a_ct, a_res = next(it), next(it)
        tw, tsc, tsh = next(it), next(it), next(it)
        blocks = []
        for j in range(n_blocks):
            w1 = (next(it), next(it)) if j == 0 else (next(it),)
            s1, b1 = next(it), next(it)
            w2, s2, b2 = next(it), next(it), next(it)
            wr, br = ((next(it), next(it)), next(it)) if j == 0 else (None, None)
            blocks.append((w1, s1, b1, w2, s2, b2, wr, br))
        out_ref = next(it)

        def conv3(pairs, a_ref):
            """out[r] = sum_t (sum_parts x_part[r + t - 1] @ W_part[t]);
               the H shift / zero-padding is the 0/1 matrix a_ref[t] (MXU)."""
            out = None
            for t in range(a_ref.shape[0]):
                yt = None
                for xv, wv in pairs:
                    d = jnp.dot(xv, wv[t], preferred_element_type=jnp.float32)
                    yt = d if yt is None else yt + d
                st = jnp.dot(a_ref[t], yt, preferred_element_type=jnp.float32)
                out = st if out is None else out + st
            return out

        x_rows = x_ref[0]                       # (H_in, Lx)  bf16
        h_rows = h_ref[0]                       # (OH,  Lh)   bf16

        # --- ConvTranspose2d + BN + ReLU -------------------------------------
        ct = conv3([(x_rows, tw)], a_ct)                    # (OH, Lpad) f32
        ct = jnp.maximum(ct * tsc[...] + tsh[...], 0.0).astype(jnp.bfloat16)

        # --- res blocks; parts == logical torch.cat((x, h), dim=1) -----------
        parts = [ct, h_rows]
        for j in range(n_blocks):
            w1, s1, b1, w2, s2, b2, wr, br = blocks[j]
            if wr is not None:                   # 1x1 residual conv (+ bias)
                ident = br[...]
                for xv, wv in zip(parts, wr):
                    ident = ident + jnp.dot(xv, wv[0],
                                            preferred_element_type=jnp.float32)
            else:                                # identity residual
                ident = parts[0].astype(jnp.float32)
            y = conv3(list(zip(parts, w1)), a_res)
            y = jnp.maximum(y * s1[...] + b1[...], 0.0).astype(jnp.bfloat16)
            z = conv3([(y, w2)], a_res)
            z = jnp.maximum(z * s2[...] + b2[...] + ident, 0.0)
            parts = [z.astype(jnp.bfloat16)]

        out_ref[0] = parts[0]                   # (OH, Lpad) bf16, lane-dense

    return kernel


def _layer_call(x_rows, h_rows, wl, cl):
    n = x_rows.shape[0]
    oh, lt_pad, nb = cl['oh'], cl['lt_pad'], cl['n_blocks']

    args, specs = [], []

    def add_b(a):   # batched operand: one batch element per grid step
        args.append(a)
        specs.append(pl.BlockSpec((1,) + a.shape[1:], lambda b: (b, 0, 0)))

    def add_c(a):   # grid-invariant operand: constant index_map, not re-DMA'd
        args.append(a)
        z = (0,) * a.ndim
        specs.append(pl.BlockSpec(a.shape, lambda b, _z=z: _z))

    add_b(x_rows)
    add_b(h_rows)
    add_c(wl['a_ct']); add_c(wl['a_res'])
    add_c(wl['tw']); add_c(wl['tsc']); add_c(wl['tsh'])
    for j in range(nb):
        bw = wl['blocks'][j]
        if j == 0:
            add_c(bw['w1x']); add_c(bw['w1h'])
        else:
            add_c(bw['w1'])
        add_c(bw['s1']); add_c(bw['b1'])
        add_c(bw['w2']); add_c(bw['s2']); add_c(bw['b2'])
        if j == 0:
            add_c(bw['wrx']); add_c(bw['wrh']); add_c(bw['br'])

    return pl.pallas_call(
        _make_layer_kernel(nb),
        out_shape=jax.ShapeDtypeStruct((n, oh, lt_pad), jnp.bfloat16),
        grid_spec=pltpu.PrefetchScalarGridSpec(
            num_scalar_prefetch=0,
            grid=(n,),
            in_specs=specs,
            out_specs=pl.BlockSpec((1, oh, lt_pad), lambda b: (b, 0, 0))),
        compiler_params=pltpu.CompilerParams(
            dimension_semantics=("parallel",),
            vmem_limit_bytes=48 * 1024 * 1024),   # safe on v7x (64 MiB VMEM)
    )(*args)


def decoder_apply(x_nhwc, h_list_nhwc, weights, cfg):
    """Forward pass: inter-layer activations stay bf16, row-flattened and
       lane-padded; only the final slice/reshape runs as plain XLA ops."""
    n, hh, ww, cc = x_nhwc.shape
    rows = x_nhwc.reshape(n, hh, ww * cc).astype(jnp.bfloat16)
    for i, (wl, cl) in enumerate(zip(weights, cfg)):
        h = h_list_nhwc[-i - 1]
        h_rows = h.reshape(n, cl['oh'], cl['lt']).astype(jnp.bfloat16)
        rows = _layer_call(rows, h_rows, wl, cl)
    last = cfg[-1]
    out = rows[:, :, :last['lt']]
    return out.reshape(n, last['oh'], last['ow'], last['cout'])


# -----------------------------------------------------------------------------
# Deterministic parameter initialization (synthetic, no checkpoint load).
# -----------------------------------------------------------------------------
def _init_conv(key, cin, cout, kh, kw, bias=True):
    kw_key, kb_key = jax.random.split(key)
    bound = 1.0 / float((cin * kh * kw) ** 0.5)
    w = jax.random.uniform(kw_key, (kh, kw, cin, cout), jnp.float32, -bound, bound)
    b = (jax.random.uniform(kb_key, (cout,), jnp.float32, -bound, bound)
         if bias else None)
    return w, b


def _init_bn(key, c):
    k1, k2, k3, k4 = jax.random.split(key, 4)
    return dict(
        gamma=1.0 + 0.1 * jax.random.normal(k1, (c,), jnp.float32),
        beta=0.1 * jax.random.normal(k2, (c,), jnp.float32),
        mean=0.1 * jax.random.normal(k3, (c,), jnp.float32),
        var=1.0 + 0.1 * jnp.abs(jax.random.normal(k4, (c,), jnp.float32)),
    )


def _init_res_conv_block(key, cin, cout):
    keys = jax.random.split(key, 5)
    w1, b1 = _init_conv(keys[0], cin, cout, 3, 3)
    w2, b2 = _init_conv(keys[1], cout, cout, 3, 3)
    p = dict(conv1_w=w1, conv1_b=b1, bn1=_init_bn(keys[2], cout),
             conv2_w=w2, conv2_b=b2, bn2=_init_bn(keys[3], cout),
             res_w=None, res_b=None)
    if cin != cout:
        rw, rb = _init_conv(keys[4], cin, cout, 1, 1)
        p['res_w'], p['res_b'] = rw, rb
    return p


def _init_res_decoder_block(key, cin, cout, n_blocks):
    keys = jax.random.split(key, n_blocks + 2)
    bound = 1.0 / float((cout * 9) ** 0.5)
    # PyTorch ConvTranspose2d weight layout: (Cin, Cout, kH, kW), bias=False
    ct_w = jax.random.uniform(keys[0], (cin, cout, 3, 3), jnp.float32,
                              -bound, bound)
    blocks = []
    for i in range(n_blocks):
        bc_in = cout * 2 if i == 0 else cout
        blocks.append(_init_res_conv_block(keys[2 + i], bc_in, cout))
    return dict(ct_w=ct_w, ct_bn=_init_bn(keys[1], cout), res_blocks=blocks)


def init_decoder(key, in_channels, n_layers, n_blocks):
    layers = []
    c = in_channels
    for _ in range(n_layers):
        key, sub = jax.random.split(key)
        layers.append(_init_res_decoder_block(sub, c, c // 2, n_blocks))
        c //= 2
    return layers


# -----------------------------------------------------------------------------
# Pure-JAX reference (XLA convs, f32) for validation.
# -----------------------------------------------------------------------------
def _conv_ref(x, w, b, pad):
    y = jax.lax.conv_general_dilated(
        x, w, window_strides=(1, 1),
        padding=((pad[0], pad[0]), (pad[1], pad[1])),
        dimension_numbers=('NHWC', 'HWIO', 'NHWC'))
    return y if b is None else y + b


def _conv_transpose_ref(x, wt, stride, padding, output_padding):
    kh, kw = wt.shape[2], wt.shape[3]
    w = jnp.transpose(jnp.flip(wt, axis=(2, 3)), (2, 3, 0, 1))
    ph = kh - 1 - padding[0]
    pw = kw - 1 - padding[1]
    return jax.lax.conv_general_dilated(
        x, w, window_strides=(1, 1),
        padding=((ph, ph + output_padding[0]), (pw, pw + output_padding[1])),
        lhs_dilation=stride,
        dimension_numbers=('NHWC', 'HWIO', 'NHWC'))


def _bn_ref(x, bn, eps=1e-5):
    s = bn['gamma'] / jnp.sqrt(bn['var'] + eps)
    return (x - bn['mean']) * s + bn['beta']


def _res_conv_block_ref(x, p):
    if p['res_w'] is not None:
        identity = _conv_ref(x, p['res_w'], p['res_b'], (0, 0))
    else:
        identity = x
    y = jnp.maximum(_bn_ref(_conv_ref(x, p['conv1_w'], p['conv1_b'], (1, 1)),
                            p['bn1']), 0.0)
    y = _bn_ref(_conv_ref(y, p['conv2_w'], p['conv2_b'], (1, 1)), p['bn2'])
    return jnp.maximum(y + identity, 0.0)


def _res_decoder_block_ref(x, h, p, stride):
    op = (0, 1) if stride == (1, 2) else (1, 1)
    x = jnp.maximum(_bn_ref(_conv_transpose_ref(x, p['ct_w'], stride, (1, 1), op),
                            p['ct_bn']), 0.0)
    x = jnp.concatenate([x, h], axis=-1)
    for blk in p['res_blocks']:
        x = _res_conv_block_ref(x, blk)
    return x


def _decoder_ref(x, h_list, params, stride):
    for i, p in enumerate(params):
        x = _res_decoder_block_ref(x, h_list[-i - 1], p, stride)
    return x


# -----------------------------------------------------------------------------
if __name__ == "__main__":
    key = jax.random.PRNGKey(0)
    in_channels, n_layers, stride, n_blocks = 8, 2, (1, 2), 1
    N, H, W = 2, 8, 4  # batch, time frames, freq bins (C = in_channels)

    k_x, k_h0, k_h1, k_p = jax.random.split(key, 4)
    # PyTorch-style NCHW inputs
    x_nchw = jax.random.normal(k_x, (N, in_channels, H, W), jnp.float32)
    # Skip connections (h[-1] feeds layer 0, h[-2] feeds layer 1)
    h_nchw = [
        jax.random.normal(k_h0, (N, 2, H, W * 4), jnp.float32),  # used by layer 1
        jax.random.normal(k_h1, (N, 4, H, W * 2), jnp.float32),  # used by layer 0
    ]
    params = init_decoder(k_p, in_channels, n_layers, n_blocks)

    # NCHW -> NHWC (kernel layout)
    x = jnp.transpose(x_nchw, (0, 2, 3, 1))
    h_list = [jnp.transpose(h, (0, 2, 3, 1)) for h in h_nchw]

    # One-time weight prep (Toeplitz weights, folded BN, shift matrices).
    weights, cfg = prepare_decoder(params, stride, x.shape,
                                   [h.shape for h in h_list])

    fwd = jax.jit(lambda xx, hh, ww: decoder_apply(xx, hh, ww, cfg))
    out = jax.block_until_ready(fwd(x, h_list, weights))

    ref = jax.block_until_ready(_decoder_ref(x, h_list, params, stride))
    assert out.shape == (N, H, W * 4, in_channels // (2 ** n_layers)), out.shape
    # bf16 activations/weights with f32 accumulation -> loosened tolerance
    out_f32 = out.astype(jnp.float32)
    assert jnp.allclose(out_f32, ref, atol=5e-2, rtol=5e-2), \
        float(jnp.max(jnp.abs(out_f32 - ref)))

    out_nchw = jnp.transpose(out_f32, (0, 3, 1, 2))  # back to PyTorch NCHW
    jax.block_until_ready(out_nchw)
    print("KERNEL_OK")
</pallas_src>

<mosaic_0001>
module attributes {stable_mosaic.version = 11 : i64} {
  func.func @kernel(%arg0: i32, %arg1: memref<1x8x32xbf16, #tpu.memory_space<vmem>>, %arg2: memref<1x8x32xbf16, #tpu.memory_space<vmem>>, %arg3: memref<3x8x8xf32, #tpu.memory_space<vmem>>, %arg4: memref<3x8x8xf32, #tpu.memory_space<vmem>>, %arg5: memref<3x32x128xbf16, #tpu.memory_space<vmem>>, %arg6: memref<1x128xf32, #tpu.memory_space<vmem>>, %arg7: memref<1x128xf32, #tpu.memory_space<vmem>>, %arg8: memref<3x128x128xbf16, #tpu.memory_space<vmem>>, %arg9: memref<3x32x128xbf16, #tpu.memory_space<vmem>>, %arg10: memref<1x128xf32, #tpu.memory_space<vmem>>, %arg11: memref<1x128xf32, #tpu.memory_space<vmem>>, %arg12: memref<3x128x128xbf16, #tpu.memory_space<vmem>>, %arg13: memref<1x128xf32, #tpu.memory_space<vmem>>, %arg14: memref<1x128xf32, #tpu.memory_space<vmem>>, %arg15: memref<1x128x128xbf16, #tpu.memory_space<vmem>>, %arg16: memref<1x32x128xbf16, #tpu.memory_space<vmem>>, %arg17: memref<1x128xf32, #tpu.memory_space<vmem>>, %arg18: memref<1x8x128xbf16, #tpu.memory_space<vmem>>) attributes {dimension_semantics = [#tpu.dimension_semantics<parallel>], iteration_bounds = array<i64: 2>, scalar_prefetch = 0 : i64, scratch_operands = 0 : i64, tpu.core_type = #tpu.core_type<tc>, window_params = [{transform_indices = @transform_0, window_bounds = array<i64: 1, 8, 32>}, {transform_indices = @transform_1, window_bounds = array<i64: 1, 8, 32>}, {pipeline_mode = #tpu.pipeline_mode<synchronous>, transform_indices = @transform_2, window_bounds = array<i64: 3, 8, 8>}, {pipeline_mode = #tpu.pipeline_mode<synchronous>, transform_indices = @transform_3, window_bounds = array<i64: 3, 8, 8>}, {pipeline_mode = #tpu.pipeline_mode<synchronous>, transform_indices = @transform_4, window_bounds = array<i64: 3, 32, 128>}, {pipeline_mode = #tpu.pipeline_mode<synchronous>, transform_indices = @transform_5, window_bounds = array<i64: 1, 128>}, {pipeline_mode = #tpu.pipeline_mode<synchronous>, transform_indices = @transform_6, window_bounds = array<i64: 1, 128>}, {pipeline_mode = #tpu.pipeline_mode<synchronous>, transform_indices = @transform_7, window_bounds = array<i64: 3, 128, 128>}, {pipeline_mode = #tpu.pipeline_mode<synchronous>, transform_indices = @transform_8, window_bounds = array<i64: 3, 32, 128>}, {pipeline_mode = #tpu.pipeline_mode<synchronous>, transform_indices = @transform_9, window_bounds = array<i64: 1, 128>}, {pipeline_mode = #tpu.pipeline_mode<synchronous>, transform_indices = @transform_10, window_bounds = array<i64: 1, 128>}, {pipeline_mode = #tpu.pipeline_mode<synchronous>, transform_indices = @transform_11, window_bounds = array<i64: 3, 128, 128>}, {pipeline_mode = #tpu.pipeline_mode<synchronous>, transform_indices = @transform_12, window_bounds = array<i64: 1, 128>}, {pipeline_mode = #tpu.pipeline_mode<synchronous>, transform_indices = @transform_13, window_bounds = array<i64: 1, 128>}, {pipeline_mode = #tpu.pipeline_mode<synchronous>, transform_indices = @transform_14, window_bounds = array<i64: 1, 128, 128>}, {pipeline_mode = #tpu.pipeline_mode<synchronous>, transform_indices = @transform_15, window_bounds = array<i64: 1, 32, 128>}, {pipeline_mode = #tpu.pipeline_mode<synchronous>, transform_indices = @transform_16, window_bounds = array<i64: 1, 128>}, {transform_indices = @transform_17, window_bounds = array<i64: 1, 8, 128>}]} {
    %c0 = arith.constant 0 : index
    %c0_0 = arith.constant 0 : index
    %c0_1 = arith.constant 0 : index
    %0 = vector.load %arg1[%c0, %c0_0, %c0_1] : memref<1x8x32xbf16, #tpu.memory_space<vmem>>, vector<1x8x32xbf16>
    %1 = vector.shape_cast %0 : vector<1x8x32xbf16> to vector<8x32xbf16>
    %c0_2 = arith.constant 0 : index
    %c0_3 = arith.constant 0 : index
    %c0_4 = arith.constant 0 : index
    %2 = vector.load %arg2[%c0_2, %c0_3, %c0_4] : memref<1x8x32xbf16, #tpu.memory_space<vmem>>, vector<1x8x32xbf16>
    %3 = vector.shape_cast %2 : vector<1x8x32xbf16> to vector<8x32xbf16>
    %c0_5 = arith.constant 0 : index
    %c0_6 = arith.constant 0 : index
    %c0_7 = arith.constant 0 : index
    %4 = vector.load %arg5[%c0_5, %c0_6, %c0_7] : memref<3x32x128xbf16, #tpu.memory_space<vmem>>, vector<1x32x128xbf16>
    %5 = vector.shape_cast %4 : vector<1x32x128xbf16> to vector<32x128xbf16>
    %cst = arith.constant dense<0.000000e+00> : vector<8x128xf32>
    %6 = tpu.matmul %1, %5, %cst {dimension_numbers = #tpu.dot_dimension_numbers<[1], [0], [0], [1], [0, 0, 1, 1], [], []>} : vector<8x32xbf16>, vector<32x128xbf16>, vector<8x128xf32> -> vector<8x128xf32>
    %c0_8 = arith.constant 0 : index
    %c0_9 = arith.constant 0 : index
    %c0_10 = arith.constant 0 : index
    %7 = vector.load %arg3[%c0_8, %c0_9, %c0_10] : memref<3x8x8xf32, #tpu.memory_space<vmem>>, vector<1x8x8xf32>
    %8 = vector.shape_cast %7 : vector<1x8x8xf32> to vector<8x8xf32>
    %cst_11 = arith.constant dense<0.000000e+00> : vector<8x128xf32>
    %9 = tpu.matmul %8, %6, %cst_11 {dimension_numbers = #tpu.dot_dimension_numbers<[1], [0], [0], [1], [0, 0, 1, 1], [], []>} : vector<8x8xf32>, vector<8x128xf32>, vector<8x128xf32> -> vector<8x128xf32>
    %c1 = arith.constant 1 : index
    %c0_12 = arith.constant 0 : index
    %c0_13 = arith.constant 0 : index
    %10 = vector.load %arg5[%c1, %c0_12, %c0_13] : memref<3x32x128xbf16, #tpu.memory_space<vmem>>, vector<1x32x128xbf16>
    %11 = vector.shape_cast %10 : vector<1x32x128xbf16> to vector<32x128xbf16>
    %cst_14 = arith.constant dense<0.000000e+00> : vector<8x128xf32>
    %12 = tpu.matmul %1, %11, %cst_14 {dimension_numbers = #tpu.dot_dimension_numbers<[1], [0], [0], [1], [0, 0, 1, 1], [], []>} : vector<8x32xbf16>, vector<32x128xbf16>, vector<8x128xf32> -> vector<8x128xf32>
    %c1_15 = arith.constant 1 : index
    %c0_16 = arith.constant 0 : index
    %c0_17 = arith.constant 0 : index
    %13 = vector.load %arg3[%c1_15, %c0_16, %c0_17] : memref<3x8x8xf32, #tpu.memory_space<vmem>>, vector<1x8x8xf32>
    %14 = vector.shape_cast %13 : vector<1x8x8xf32> to vector<8x8xf32>
    %cst_18 = arith.constant dense<0.000000e+00> : vector<8x128xf32>
    %15 = tpu.matmul %14, %12, %cst_18 {dimension_numbers = #tpu.dot_dimension_numbers<[1], [0], [0], [1], [0, 0, 1, 1], [], []>} : vector<8x8xf32>, vector<8x128xf32>, vector<8x128xf32> -> vector<8x128xf32>
    %16 = arith.addf %9, %15 : vector<8x128xf32>
    %c2 = arith.constant 2 : index
    %c0_19 = arith.constant 0 : index
    %c0_20 = arith.constant 0 : index
    %17 = vector.load %arg5[%c2, %c0_19, %c0_20] : memref<3x32x128xbf16, #tpu.memory_space<vmem>>, vector<1x32x128xbf16>
    %18 = vector.shape_cast %17 : vector<1x32x128xbf16> to vector<32x128xbf16>
    %cst_21 = arith.constant dense<0.000000e+00> : vector<8x128xf32>
    %19 = tpu.matmul %1, %18, %cst_21 {dimension_numbers = #tpu.dot_dimension_numbers<[1], [0], [0], [1], [0, 0, 1, 1], [], []>} : vector<8x32xbf16>, vector<32x128xbf16>, vector<8x128xf32> -> vector<8x128xf32>
    %c2_22 = arith.constant 2 : index
    %c0_23 = arith.constant 0 : index
    %c0_24 = arith.constant 0 : index
    %20 = vector.load %arg3[%c2_22, %c0_23, %c0_24] : memref<3x8x8xf32, #tpu.memory_space<vmem>>, vector<1x8x8xf32>
    %21 = vector.shape_cast %20 : vector<1x8x8xf32> to vector<8x8xf32>
    %cst_25 = arith.constant dense<0.000000e+00> : vector<8x128xf32>
    %22 = tpu.matmul %21, %19, %cst_25 {dimension_numbers = #tpu.dot_dimension_numbers<[1], [0], [0], [1], [0, 0, 1, 1], [], []>} : vector<8x8xf32>, vector<8x128xf32>, vector<8x128xf32> -> vector<8x128xf32>
    %23 = arith.addf %16, %22 : vector<8x128xf32>
    %c0_26 = arith.constant 0 : index
    %c0_27 = arith.constant 0 : index
    %24 = vector.load %arg6[%c0_26, %c0_27] : memref<1x128xf32, #tpu.memory_space<vmem>>, vector<1x128xf32>
    %25 = vector.broadcast %24 : vector<1x128xf32> to vector<8x128xf32>
    %26 = arith.mulf %23, %25 : vector<8x128xf32>
    %c0_28 = arith.constant 0 : index
    %c0_29 = arith.constant 0 : index
    %27 = vector.load %arg7[%c0_28, %c0_29] : memref<1x128xf32, #tpu.memory_space<vmem>>, vector<1x128xf32>
    %28 = vector.broadcast %27 : vector<1x128xf32> to vector<8x128xf32>
    %29 = arith.addf %26, %28 : vector<8x128xf32>
    %cst_30 = arith.constant 0.000000e+00 : f32
    %30 = vector.broadcast %cst_30 : f32 to vector<8x128xf32>
    %31 = arith.maximumf %29, %30 : vector<8x128xf32>
    %32 = arith.truncf %31 : vector<8x128xf32> to vector<8x128xbf16>
    %c0_31 = arith.constant 0 : index
    %c0_32 = arith.constant 0 : index
    %33 = vector.load %arg17[%c0_31, %c0_32] : memref<1x128xf32, #tpu.memory_space<vmem>>, vector<1x128xf32>
    %c0_33 = arith.constant 0 : index
    %c0_34 = arith.constant 0 : index
    %c0_35 = arith.constant 0 : index
    %34 = vector.load %arg15[%c0_33, %c0_34, %c0_35] : memref<1x128x128xbf16, #tpu.memory_space<vmem>>, vector<1x128x128xbf16>
    %35 = vector.shape_cast %34 : vector<1x128x128xbf16> to vector<128x128xbf16>
    %cst_36 = arith.constant dense<0.000000e+00> : vector<8x128xf32>
    %36 = tpu.matmul %32, %35, %cst_36 {dimension_numbers = #tpu.dot_dimension_numbers<[1], [0], [0], [1], [0, 0, 1, 1], [], []>} : vector<8x128xbf16>, vector<128x128xbf16>, vector<8x128xf32> -> vector<8x128xf32>
    %37 = vector.broadcast %33 : vector<1x128xf32> to vector<8x128xf32>
    %38 = arith.addf %37, %36 : vector<8x128xf32>
    %c0_37 = arith.constant 0 : index
    %c0_38 = arith.constant 0 : index
    %c0_39 = arith.constant 0 : index
    %39 = vector.load %arg16[%c0_37, %c0_38, %c0_39] : memref<1x32x128xbf16, #tpu.memory_space<vmem>>, vector<1x32x128xbf16>
    %40 = vector.shape_cast %39 : vector<1x32x128xbf16> to vector<32x128xbf16>
    %cst_40 = arith.constant dense<0.000000e+00> : vector<8x128xf32>
    %41 = tpu.matmul %3, %40, %cst_40 {dimension_numbers = #tpu.dot_dimension_numbers<[1], [0], [0], [1], [0, 0, 1, 1], [], []>} : vector<8x32xbf16>, vector<32x128xbf16>, vector<8x128xf32> -> vector<8x128xf32>
    %42 = arith.addf %38, %41 : vector<8x128xf32>
    %c0_41 = arith.constant 0 : index
    %c0_42 = arith.constant 0 : index
    %c0_43 = arith.constant 0 : index
    %43 = vector.load %arg8[%c0_41, %c0_42, %c0_43] : memref<3x128x128xbf16, #tpu.memory_space<vmem>>, vector<1x128x128xbf16>
    %44 = vector.shape_cast %43 : vector<1x128x128xbf16> to vector<128x128xbf16>
    %cst_44 = arith.constant dense<0.000000e+00> : vector<8x128xf32>
    %45 = tpu.matmul %32, %44, %cst_44 {dimension_numbers = #tpu.dot_dimension_numbers<[1], [0], [0], [1], [0, 0, 1, 1], [], []>} : vector<8x128xbf16>, vector<128x128xbf16>, vector<8x128xf32> -> vector<8x128xf32>
    %c0_45 = arith.constant 0 : index
    %c0_46 = arith.constant 0 : index
    %c0_47 = arith.constant 0 : index
    %46 = vector.load %arg9[%c0_45, %c0_46, %c0_47] : memref<3x32x128xbf16, #tpu.memory_space<vmem>>, vector<1x32x128xbf16>
    %47 = vector.shape_cast %46 : vector<1x32x128xbf16> to vector<32x128xbf16>
    %cst_48 = arith.constant dense<0.000000e+00> : vector<8x128xf32>
    %48 = tpu.matmul %3, %47, %cst_48 {dimension_numbers = #tpu.dot_dimension_numbers<[1], [0], [0], [1], [0, 0, 1, 1], [], []>} : vector<8x32xbf16>, vector<32x128xbf16>, vector<8x128xf32> -> vector<8x128xf32>
    %49 = arith.addf %45, %48 : vector<8x128xf32>
    %c0_49 = arith.constant 0 : index
    %c0_50 = arith.constant 0 : index
    %c0_51 = arith.constant 0 : index
    %50 = vector.load %arg4[%c0_49, %c0_50, %c0_51] : memref<3x8x8xf32, #tpu.memory_space<vmem>>, vector<1x8x8xf32>
    %51 = vector.shape_cast %50 : vector<1x8x8xf32> to vector<8x8xf32>
    %cst_52 = arith.constant dense<0.000000e+00> : vector<8x128xf32>
    %52 = tpu.matmul %51, %49, %cst_52 {dimension_numbers = #tpu.dot_dimension_numbers<[1], [0], [0], [1], [0, 0, 1, 1], [], []>} : vector<8x8xf32>, vector<8x128xf32>, vector<8x128xf32> -> vector<8x128xf32>
    %c1_53 = arith.constant 1 : index
    %c0_54 = arith.constant 0 : index
    %c0_55 = arith.constant 0 : index
    %53 = vector.load %arg8[%c1_53, %c0_54, %c0_55] : memref<3x128x128xbf16, #tpu.memory_space<vmem>>, vector<1x128x128xbf16>
    %54 = vector.shape_cast %53 : vector<1x128x128xbf16> to vector<128x128xbf16>
    %cst_56 = arith.constant dense<0.000000e+00> : vector<8x128xf32>
    %55 = tpu.matmul %32, %54, %cst_56 {dimension_numbers = #tpu.dot_dimension_numbers<[1], [0], [0], [1], [0, 0, 1, 1], [], []>} : vector<8x128xbf16>, vector<128x128xbf16>, vector<8x128xf32> -> vector<8x128xf32>
    %c1_57 = arith.constant 1 : index
    %c0_58 = arith.constant 0 : index
    %c0_59 = arith.constant 0 : index
    %56 = vector.load %arg9[%c1_57, %c0_58, %c0_59] : memref<3x32x128xbf16, #tpu.memory_space<vmem>>, vector<1x32x128xbf16>
    %57 = vector.shape_cast %56 : vector<1x32x128xbf16> to vector<32x128xbf16>
    %cst_60 = arith.constant dense<0.000000e+00> : vector<8x128xf32>
    %58 = tpu.matmul %3, %57, %cst_60 {dimension_numbers = #tpu.dot_dimension_numbers<[1], [0], [0], [1], [0, 0, 1, 1], [], []>} : vector<8x32xbf16>, vector<32x128xbf16>, vector<8x128xf32> -> vector<8x128xf32>
    %59 = arith.addf %55, %58 : vector<8x128xf32>
    %c1_61 = arith.constant 1 : index
    %c0_62 = arith.constant 0 : index
    %c0_63 = arith.constant 0 : index
    %60 = vector.load %arg4[%c1_61, %c0_62, %c0_63] : memref<3x8x8xf32, #tpu.memory_space<vmem>>, vector<1x8x8xf32>
    %61 = vector.shape_cast %60 : vector<1x8x8xf32> to vector<8x8xf32>
    %cst_64 = arith.constant dense<0.000000e+00> : vector<8x128xf32>
    %62 = tpu.matmul %61, %59, %cst_64 {dimension_numbers = #tpu.dot_dimension_numbers<[1], [0], [0], [1], [0, 0, 1, 1], [], []>} : vector<8x8xf32>, vector<8x128xf32>, vector<8x128xf32> -> vector<8x128xf32>
    %63 = arith.addf %52, %62 : vector<8x128xf32>
    %c2_65 = arith.constant 2 : index
    %c0_66 = arith.constant 0 : index
    %c0_67 = arith.constant 0 : index
    %64 = vector.load %arg8[%c2_65, %c0_66, %c0_67] : memref<3x128x128xbf16, #tpu.memory_space<vmem>>, vector<1x128x128xbf16>
    %65 = vector.shape_cast %64 : vector<1x128x128xbf16> to vector<128x128xbf16>
    %cst_68 = arith.constant dense<0.000000e+00> : vector<8x128xf32>
    %66 = tpu.matmul %32, %65, %cst_68 {dimension_numbers = #tpu.dot_dimension_numbers<[1], [0], [0], [1], [0, 0, 1, 1], [], []>} : vector<8x128xbf16>, vector<128x128xbf16>, vector<8x128xf32> -> vector<8x128xf32>
    %c2_69 = arith.constant 2 : index
    %c0_70 = arith.constant 0 : index
    %c0_71 = arith.constant 0 : index
    %67 = vector.load %arg9[%c2_69, %c0_70, %c0_71] : memref<3x32x128xbf16, #tpu.memory_space<vmem>>, vector<1x32x128xbf16>
    %68 = vector.shape_cast %67 : vector<1x32x128xbf16> to vector<32x128xbf16>
    %cst_72 = arith.constant dense<0.000000e+00> : vector<8x128xf32>
    %69 = tpu.matmul %3, %68, %cst_72 {dimension_numbers = #tpu.dot_dimension_numbers<[1], [0], [0], [1], [0, 0, 1, 1], [], []>} : vector<8x32xbf16>, vector<32x128xbf16>, vector<8x128xf32> -> vector<8x128xf32>
    %70 = arith.addf %66, %69 : vector<8x128xf32>
    %c2_73 = arith.constant 2 : index
    %c0_74 = arith.constant 0 : index
    %c0_75 = arith.constant 0 : index
    %71 = vector.load %arg4[%c2_73, %c0_74, %c0_75] : memref<3x8x8xf32, #tpu.memory_space<vmem>>, vector<1x8x8xf32>
    %72 = vector.shape_cast %71 : vector<1x8x8xf32> to vector<8x8xf32>
    %cst_76 = arith.constant dense<0.000000e+00> : vector<8x128xf32>
    %73 = tpu.matmul %72, %70, %cst_76 {dimension_numbers = #tpu.dot_dimension_numbers<[1], [0], [0], [1], [0, 0, 1, 1], [], []>} : vector<8x8xf32>, vector<8x128xf32>, vector<8x128xf32> -> vector<8x128xf32>
    %74 = arith.addf %63, %73 : vector<8x128xf32>
    %c0_77 = arith.constant 0 : index
    %c0_78 = arith.constant 0 : index
    %75 = vector.load %arg10[%c0_77, %c0_78] : memref<1x128xf32, #tpu.memory_space<vmem>>, vector<1x128xf32>
    %76 = vector.broadcast %75 : vector<1x128xf32> to vector<8x128xf32>
    %77 = arith.mulf %74, %76 : vector<8x128xf32>
    %c0_79 = arith.constant 0 : index
    %c0_80 = arith.constant 0 : index
    %78 = vector.load %arg11[%c0_79, %c0_80] : memref<1x128xf32, #tpu.memory_space<vmem>>, vector<1x128xf32>
    %79 = vector.broadcast %78 : vector<1x128xf32> to vector<8x128xf32>
    %80 = arith.addf %77, %79 : vector<8x128xf32>
    %cst_81 = arith.constant 0.000000e+00 : f32
    %81 = vector.broadcast %cst_81 : f32 to vector<8x128xf32>
    %82 = arith.maximumf %80, %81 : vector<8x128xf32>
    %83 = arith.truncf %82 : vector<8x128xf32> to vector<8x128xbf16>
    %c0_82 = arith.constant 0 : index
    %c0_83 = arith.constant 0 : index
    %c0_84 = arith.constant 0 : index
    %84 = vector.load %arg12[%c0_82, %c0_83, %c0_84] : memref<3x128x128xbf16, #tpu.memory_space<vmem>>, vector<1x128x128xbf16>
    %85 = vector.shape_cast %84 : vector<1x128x128xbf16> to vector<128x128xbf16>
    %cst_85 = arith.constant dense<0.000000e+00> : vector<8x128xf32>
    %86 = tpu.matmul %83, %85, %cst_85 {dimension_numbers = #tpu.dot_dimension_numbers<[1], [0], [0], [1], [0, 0, 1, 1], [], []>} : vector<8x128xbf16>, vector<128x128xbf16>, vector<8x128xf32> -> vector<8x128xf32>
    %c0_86 = arith.constant 0 : index
    %c0_87 = arith.constant 0 : index
    %c0_88 = arith.constant 0 : index
    %87 = vector.load %arg4[%c0_86, %c0_87, %c0_88] : memref<3x8x8xf32, #tpu.memory_space<vmem>>, vector<1x8x8xf32>
    %88 = vector.shape_cast %87 : vector<1x8x8xf32> to vector<8x8xf32>
    %cst_89 = arith.constant dense<0.000000e+00> : vector<8x128xf32>
    %89 = tpu.matmul %88, %86, %cst_89 {dimension_numbers = #tpu.dot_dimension_numbers<[1], [0], [0], [1], [0, 0, 1, 1], [], []>} : vector<8x8xf32>, vector<8x128xf32>, vector<8x128xf32> -> vector<8x128xf32>
    %c1_90 = arith.constant 1 : index
    %c0_91 = arith.constant 0 : index
    %c0_92 = arith.constant 0 : index
    %90 = vector.load %arg12[%c1_90, %c0_91, %c0_92] : memref<3x128x128xbf16, #tpu.memory_space<vmem>>, vector<1x128x128xbf16>
    %91 = vector.shape_cast %90 : vector<1x128x128xbf16> to vector<128x128xbf16>
    %cst_93 = arith.constant dense<0.000000e+00> : vector<8x128xf32>
    %92 = tpu.matmul %83, %91, %cst_93 {dimension_numbers = #tpu.dot_dimension_numbers<[1], [0], [0], [1], [0, 0, 1, 1], [], []>} : vector<8x128xbf16>, vector<128x128xbf16>, vector<8x128xf32> -> vector<8x128xf32>
    %c1_94 = arith.constant 1 : index
    %c0_95 = arith.constant 0 : index
    %c0_96 = arith.constant 0 : index
    %93 = vector.load %arg4[%c1_94, %c0_95, %c0_96] : memref<3x8x8xf32, #tpu.memory_space<vmem>>, vector<1x8x8xf32>
    %94 = vector.shape_cast %93 : vector<1x8x8xf32> to vector<8x8xf32>
    %cst_97 = arith.constant dense<0.000000e+00> : vector<8x128xf32>
    %95 = tpu.matmul %94, %92, %cst_97 {dimension_numbers = #tpu.dot_dimension_numbers<[1], [0], [0], [1], [0, 0, 1, 1], [], []>} : vector<8x8xf32>, vector<8x128xf32>, vector<8x128xf32> -> vector<8x128xf32>
    %96 = arith.addf %89, %95 : vector<8x128xf32>
    %c2_98 = arith.constant 2 : index
    %c0_99 = arith.constant 0 : index
    %c0_100 = arith.constant 0 : index
    %97 = vector.load %arg12[%c2_98, %c0_99, %c0_100] : memref<3x128x128xbf16, #tpu.memory_space<vmem>>, vector<1x128x128xbf16>
    %98 = vector.shape_cast %97 : vector<1x128x128xbf16> to vector<128x128xbf16>
    %cst_101 = arith.constant dense<0.000000e+00> : vector<8x128xf32>
    %99 = tpu.matmul %83, %98, %cst_101 {dimension_numbers = #tpu.dot_dimension_numbers<[1], [0], [0], [1], [0, 0, 1, 1], [], []>} : vector<8x128xbf16>, vector<128x128xbf16>, vector<8x128xf32> -> vector<8x128xf32>
    %c2_102 = arith.constant 2 : index
    %c0_103 = arith.constant 0 : index
    %c0_104 = arith.constant 0 : index
    %100 = vector.load %arg4[%c2_102, %c0_103, %c0_104] : memref<3x8x8xf32, #tpu.memory_space<vmem>>, vector<1x8x8xf32>
    %101 = vector.shape_cast %100 : vector<1x8x8xf32> to vector<8x8xf32>
    %cst_105 = arith.constant dense<0.000000e+00> : vector<8x128xf32>
    %102 = tpu.matmul %101, %99, %cst_105 {dimension_numbers = #tpu.dot_dimension_numbers<[1], [0], [0], [1], [0, 0, 1, 1], [], []>} : vector<8x8xf32>, vector<8x128xf32>, vector<8x128xf32> -> vector<8x128xf32>
    %103 = arith.addf %96, %102 : vector<8x128xf32>
    %c0_106 = arith.constant 0 : index
    %c0_107 = arith.constant 0 : index
    %104 = vector.load %arg13[%c0_106, %c0_107] : memref<1x128xf32, #tpu.memory_space<vmem>>, vector<1x128xf32>
    %105 = vector.broadcast %104 : vector<1x128xf32> to vector<8x128xf32>
    %106 = arith.mulf %103, %105 : vector<8x128xf32>
    %c0_108 = arith.constant 0 : index
    %c0_109 = arith.constant 0 : index
    %107 = vector.load %arg14[%c0_108, %c0_109] : memref<1x128xf32, #tpu.memory_space<vmem>>, vector<1x128xf32>
    %108 = vector.broadcast %107 : vector<1x128xf32> to vector<8x128xf32>
    %109 = arith.addf %106, %108 : vector<8x128xf32>
    %110 = arith.addf %109, %42 : vector<8x128xf32>
    %cst_110 = arith.constant 0.000000e+00 : f32
    %111 = vector.broadcast %cst_110 : f32 to vector<8x128xf32>
    %112 = arith.maximumf %110, %111 : vector<8x128xf32>
    %113 = arith.truncf %112 : vector<8x128xf32> to vector<8x128xbf16>
    %c0_111 = arith.constant 0 : index
    %c0_112 = arith.constant 0 : index
    %c0_113 = arith.constant 0 : index
    %114 = vector.load %arg18[%c0_111, %c0_112, %c0_113] : memref<1x8x128xbf16, #tpu.memory_space<vmem>>, vector<1x8x128xbf16>
    %115 = vector.shape_cast %114 : vector<1x8x128xbf16> to vector<8x128xbf16>
    %116 = vector.shape_cast %113 : vector<8x128xbf16> to vector<1x8x128xbf16>
    tpu.vector_store %arg18[%c0_111, %c0_112, %c0_113], %116 {strides = array<i32>} : memref<1x8x128xbf16, #tpu.memory_space<vmem>>, vector<1x8x128xbf16>,
    return
  }
  func.func @transform_0(%arg0: i32) -> (i32, i32, i32) {
    %c0_i32 = arith.constant 0 : i32
    %c0_i32_0 = arith.constant 0 : i32
    %c0_i32_1 = arith.constant 0 : i32
    return %arg0, %c0_i32, %c0_i32_0 : i32, i32, i32
  }
  func.func @transform_1(%arg0: i32) -> (i32, i32, i32) {
    %c0_i32 = arith.constant 0 : i32
    %c0_i32_0 = arith.constant 0 : i32
    %c0_i32_1 = arith.constant 0 : i32
    return %arg0, %c0_i32, %c0_i32_0 : i32, i32, i32
  }
  func.func @transform_2(%arg0: i32) -> (i32, i32, i32) {
    %c0_i32 = arith.constant 0 : i32
    %c0_i32_0 = arith.constant 0 : i32
    %c0_i32_1 = arith.constant 0 : i32
    %c0_i32_2 = arith.constant 0 : i32
    return %c0_i32, %c0_i32_0, %c0_i32_1 : i32, i32, i32
  }
  func.func @transform_3(%arg0: i32) -> (i32, i32, i32) {
    %c0_i32 = arith.constant 0 : i32
    %c0_i32_0 = arith.constant 0 : i32
    %c0_i32_1 = arith.constant 0 : i32
    %c0_i32_2 = arith.constant 0 : i32
    return %c0_i32, %c0_i32_0, %c0_i32_1 : i32, i32, i32
  }
  func.func @transform_4(%arg0: i32) -> (i32, i32, i32) {
    %c0_i32 = arith.constant 0 : i32
    %c0_i32_0 = arith.constant 0 : i32
    %c0_i32_1 = arith.constant 0 : i32
    %c0_i32_2 = arith.constant 0 : i32
    return %c0_i32, %c0_i32_0, %c0_i32_1 : i32, i32, i32
  }
  func.func @transform_5(%arg0: i32) -> (i32, i32) {
    %c0_i32 = arith.constant 0 : i32
    %c0_i32_0 = arith.constant 0 : i32
    %c0_i32_1 = arith.constant 0 : i32
    return %c0_i32, %c0_i32_0 : i32, i32
  }
  func.func @transform_6(%arg0: i32) -> (i32, i32) {
    %c0_i32 = arith.constant 0 : i32
    %c0_i32_0 = arith.constant 0 : i32
    %c0_i32_1 = arith.constant 0 : i32
    return %c0_i32, %c0_i32_0 : i32, i32
  }
  func.func @transform_7(%arg0: i32) -> (i32, i32, i32) {
    %c0_i32 = arith.constant 0 : i32
    %c0_i32_0 = arith.constant 0 : i32
    %c0_i32_1 = arith.constant 0 : i32
    %c0_i32_2 = arith.constant 0 : i32
    return %c0_i32, %c0_i32_0, %c0_i32_1 : i32, i32, i32
  }
  func.func @transform_8(%arg0: i32) -> (i32, i32, i32) {
    %c0_i32 = arith.constant 0 : i32
    %c0_i32_0 = arith.constant 0 : i32
    %c0_i32_1 = arith.constant 0 : i32
    %c0_i32_2 = arith.constant 0 : i32
    return %c0_i32, %c0_i32_0, %c0_i32_1 : i32, i32, i32
  }
  func.func @transform_9(%arg0: i32) -> (i32, i32) {
    %c0_i32 = arith.constant 0 : i32
    %c0_i32_0 = arith.constant 0 : i32
    %c0_i32_1 = arith.constant 0 : i32
    return %c0_i32, %c0_i32_0 : i32, i32
  }
  func.func @transform_10(%arg0: i32) -> (i32, i32) {
    %c0_i32 = arith.constant 0 : i32
    %c0_i32_0 = arith.constant 0 : i32
    %c0_i32_1 = arith.constant 0 : i32
    return %c0_i32, %c0_i32_0 : i32, i32
  }
  func.func @transform_11(%arg0: i32) -> (i32, i32, i32) {
    %c0_i32 = arith.constant 0 : i32
    %c0_i32_0 = arith.constant 0 : i32
    %c0_i32_1 = arith.constant 0 : i32
    %c0_i32_2 = arith.constant 0 : i32
    return %c0_i32, %c0_i32_0, %c0_i32_1 : i32, i32, i32
  }
  func.func @transform_12(%arg0: i32) -> (i32, i32) {
    %c0_i32 = arith.constant 0 : i32
    %c0_i32_0 = arith.constant 0 : i32
    %c0_i32_1 = arith.constant 0 : i32
    return %c0_i32, %c0_i32_0 : i32, i32
  }
  func.func @transform_13(%arg0: i32) -> (i32, i32) {
    %c0_i32 = arith.constant 0 : i32
    %c0_i32_0 = arith.constant 0 : i32
    %c0_i32_1 = arith.constant 0 : i32
    return %c0_i32, %c0_i32_0 : i32, i32
  }
  func.func @transform_14(%arg0: i32) -> (i32, i32, i32) {
    %c0_i32 = arith.constant 0 : i32
    %c0_i32_0 = arith.constant 0 : i32
    %c0_i32_1 = arith.constant 0 : i32
    %c0_i32_2 = arith.constant 0 : i32
    return %c0_i32, %c0_i32_0, %c0_i32_1 : i32, i32, i32
  }
  func.func @transform_15(%arg0: i32) -> (i32, i32, i32) {
    %c0_i32 = arith.constant 0 : i32
    %c0_i32_0 = arith.constant 0 : i32
    %c0_i32_1 = arith.constant 0 : i32
    %c0_i32_2 = arith.constant 0 : i32
    return %c0_i32, %c0_i32_0, %c0_i32_1 : i32, i32, i32
  }
  func.func @transform_16(%arg0: i32) -> (i32, i32) {
    %c0_i32 = arith.constant 0 : i32
    %c0_i32_0 = arith.constant 0 : i32
    %c0_i32_1 = arith.constant 0 : i32
    return %c0_i32, %c0_i32_0 : i32, i32
  }
  func.func @transform_17(%arg0: i32) -> (i32, i32, i32) {
    %c0_i32 = arith.constant 0 : i32
    %c0_i32_0 = arith.constant 0 : i32
    %c0_i32_1 = arith.constant 0 : i32
    return %arg0, %c0_i32, %c0_i32_0 : i32, i32, i32
  }
}

module attributes {stable_mosaic.version = 11 : i64} {
  func.func @kernel(%arg0: i32, %arg1: memref<1x8x128xbf16, #tpu.memory_space<vmem>>, %arg2: memref<1x8x32xbf16, #tpu.memory_space<vmem>>, %arg3: memref<3x8x8xf32, #tpu.memory_space<vmem>>, %arg4: memref<3x8x8xf32, #tpu.memory_space<vmem>>, %arg5: memref<3x128x128xbf16, #tpu.memory_space<vmem>>, %arg6: memref<1x128xf32, #tpu.memory_space<vmem>>, %arg7: memref<1x128xf32, #tpu.memory_space<vmem>>, %arg8: memref<3x128x128xbf16, #tpu.memory_space<vmem>>, %arg9: memref<3x32x128xbf16, #tpu.memory_space<vmem>>, %arg10: memref<1x128xf32, #tpu.memory_space<vmem>>, %arg11: memref<1x128xf32, #tpu.memory_space<vmem>>, %arg12: memref<3x128x128xbf16, #tpu.memory_space<vmem>>, %arg13: memref<1x128xf32, #tpu.memory_space<vmem>>, %arg14: memref<1x128xf32, #tpu.memory_space<vmem>>, %arg15: memref<1x128x128xbf16, #tpu.memory_space<vmem>>, %arg16: memref<1x32x128xbf16, #tpu.memory_space<vmem>>, %arg17: memref<1x128xf32, #tpu.memory_space<vmem>>, %arg18: memref<1x8x128xbf16, #tpu.memory_space<vmem>>) attributes {dimension_semantics = [#tpu.dimension_semantics<parallel>], iteration_bounds = array<i64: 2>, scalar_prefetch = 0 : i64, scratch_operands = 0 : i64, tpu.core_type = #tpu.core_type<tc>, window_params = [{transform_indices = @transform_0, window_bounds = array<i64: 1, 8, 128>}, {transform_indices = @transform_1, window_bounds = array<i64: 1, 8, 32>}, {pipeline_mode = #tpu.pipeline_mode<synchronous>, transform_indices = @transform_2, window_bounds = array<i64: 3, 8, 8>}, {pipeline_mode = #tpu.pipeline_mode<synchronous>, transform_indices = @transform_3, window_bounds = array<i64: 3, 8, 8>}, {pipeline_mode = #tpu.pipeline_mode<synchronous>, transform_indices = @transform_4, window_bounds = array<i64: 3, 128, 128>}, {pipeline_mode = #tpu.pipeline_mode<synchronous>, transform_indices = @transform_5, window_bounds = array<i64: 1, 128>}, {pipeline_mode = #tpu.pipeline_mode<synchronous>, transform_indices = @transform_6, window_bounds = array<i64: 1, 128>}, {pipeline_mode = #tpu.pipeline_mode<synchronous>, transform_indices = @transform_7, window_bounds = array<i64: 3, 128, 128>}, {pipeline_mode = #tpu.pipeline_mode<synchronous>, transform_indices = @transform_8, window_bounds = array<i64: 3, 32, 128>}, {pipeline_mode = #tpu.pipeline_mode<synchronous>, transform_indices = @transform_9, window_bounds = array<i64: 1, 128>}, {pipeline_mode = #tpu.pipeline_mode<synchronous>, transform_indices = @transform_10, window_bounds = array<i64: 1, 128>}, {pipeline_mode = #tpu.pipeline_mode<synchronous>, transform_indices = @transform_11, window_bounds = array<i64: 3, 128, 128>}, {pipeline_mode = #tpu.pipeline_mode<synchronous>, transform_indices = @transform_12, window_bounds = array<i64: 1, 128>}, {pipeline_mode = #tpu.pipeline_mode<synchronous>, transform_indices = @transform_13, window_bounds = array<i64: 1, 128>}, {pipeline_mode = #tpu.pipeline_mode<synchronous>, transform_indices = @transform_14, window_bounds = array<i64: 1, 128, 128>}, {pipeline_mode = #tpu.pipeline_mode<synchronous>, transform_indices = @transform_15, window_bounds = array<i64: 1, 32, 128>}, {pipeline_mode = #tpu.pipeline_mode<synchronous>, transform_indices = @transform_16, window_bounds = array<i64: 1, 128>}, {transform_indices = @transform_17, window_bounds = array<i64: 1, 8, 128>}]} {
    %c0 = arith.constant 0 : index
    %c0_0 = arith.constant 0 : index
    %c0_1 = arith.constant 0 : index
    %0 = vector.load %arg1[%c0, %c0_0, %c0_1] : memref<1x8x128xbf16, #tpu.memory_space<vmem>>, vector<1x8x128xbf16>
    %1 = vector.shape_cast %0 : vector<1x8x128xbf16> to vector<8x128xbf16>
    %c0_2 = arith.constant 0 : index
    %c0_3 = arith.constant 0 : index
    %c0_4 = arith.constant 0 : index
    %2 = vector.load %arg2[%c0_2, %c0_3, %c0_4] : memref<1x8x32xbf16, #tpu.memory_space<vmem>>, vector<1x8x32xbf16>
    %3 = vector.shape_cast %2 : vector<1x8x32xbf16> to vector<8x32xbf16>
    %c0_5 = arith.constant 0 : index
    %c0_6 = arith.constant 0 : index
    %c0_7 = arith.constant 0 : index
    %4 = vector.load %arg5[%c0_5, %c0_6, %c0_7] : memref<3x128x128xbf16, #tpu.memory_space<vmem>>, vector<1x128x128xbf16>
    %5 = vector.shape_cast %4 : vector<1x128x128xbf16> to vector<128x128xbf16>
    %cst = arith.constant dense<0.000000e+00> : vector<8x128xf32>
    %6 = tpu.matmul %1, %5, %cst {dimension_numbers = #tpu.dot_dimension_numbers<[1], [0], [0], [1], [0, 0, 1, 1], [], []>} : vector<8x128xbf16>, vector<128x128xbf16>, vector<8x128xf32> -> vector<8x128xf32>
    %c0_8 = arith.constant 0 : index
    %c0_9 = arith.constant 0 : index
    %c0_10 = arith.constant 0 : index
    %7 = vector.load %arg3[%c0_8, %c0_9, %c0_10] : memref<3x8x8xf32, #tpu.memory_space<vmem>>, vector<1x8x8xf32>
    %8 = vector.shape_cast %7 : vector<1x8x8xf32> to vector<8x8xf32>
    %cst_11 = arith.constant dense<0.000000e+00> : vector<8x128xf32>
    %9 = tpu.matmul %8, %6, %cst_11 {dimension_numbers = #tpu.dot_dimension_numbers<[1], [0], [0], [1], [0, 0, 1, 1], [], []>} : vector<8x8xf32>, vector<8x128xf32>, vector<8x128xf32> -> vector<8x128xf32>
    %c1 = arith.constant 1 : index
    %c0_12 = arith.constant 0 : index
    %c0_13 = arith.constant 0 : index
    %10 = vector.load %arg5[%c1, %c0_12, %c0_13] : memref<3x128x128xbf16, #tpu.memory_space<vmem>>, vector<1x128x128xbf16>
    %11 = vector.shape_cast %10 : vector<1x128x128xbf16> to vector<128x128xbf16>
    %cst_14 = arith.constant dense<0.000000e+00> : vector<8x128xf32>
    %12 = tpu.matmul %1, %11, %cst_14 {dimension_numbers = #tpu.dot_dimension_numbers<[1], [0], [0], [1], [0, 0, 1, 1], [], []>} : vector<8x128xbf16>, vector<128x128xbf16>, vector<8x128xf32> -> vector<8x128xf32>
    %c1_15 = arith.constant 1 : index
    %c0_16 = arith.constant 0 : index
    %c0_17 = arith.constant 0 : index
    %13 = vector.load %arg3[%c1_15, %c0_16, %c0_17] : memref<3x8x8xf32, #tpu.memory_space<vmem>>, vector<1x8x8xf32>
    %14 = vector.shape_cast %13 : vector<1x8x8xf32> to vector<8x8xf32>
    %cst_18 = arith.constant dense<0.000000e+00> : vector<8x128xf32>
    %15 = tpu.matmul %14, %12, %cst_18 {dimension_numbers = #tpu.dot_dimension_numbers<[1], [0], [0], [1], [0, 0, 1, 1], [], []>} : vector<8x8xf32>, vector<8x128xf32>, vector<8x128xf32> -> vector<8x128xf32>
    %16 = arith.addf %9, %15 : vector<8x128xf32>
    %c2 = arith.constant 2 : index
    %c0_19 = arith.constant 0 : index
    %c0_20 = arith.constant 0 : index
    %17 = vector.load %arg5[%c2, %c0_19, %c0_20] : memref<3x128x128xbf16, #tpu.memory_space<vmem>>, vector<1x128x128xbf16>
    %18 = vector.shape_cast %17 : vector<1x128x128xbf16> to vector<128x128xbf16>
    %cst_21 = arith.constant dense<0.000000e+00> : vector<8x128xf32>
    %19 = tpu.matmul %1, %18, %cst_21 {dimension_numbers = #tpu.dot_dimension_numbers<[1], [0], [0], [1], [0, 0, 1, 1], [], []>} : vector<8x128xbf16>, vector<128x128xbf16>, vector<8x128xf32> -> vector<8x128xf32>
    %c2_22 = arith.constant 2 : index
    %c0_23 = arith.constant 0 : index
    %c0_24 = arith.constant 0 : index
    %20 = vector.load %arg3[%c2_22, %c0_23, %c0_24] : memref<3x8x8xf32, #tpu.memory_space<vmem>>, vector<1x8x8xf32>
    %21 = vector.shape_cast %20 : vector<1x8x8xf32> to vector<8x8xf32>
    %cst_25 = arith.constant dense<0.000000e+00> : vector<8x128xf32>
    %22 = tpu.matmul %21, %19, %cst_25 {dimension_numbers = #tpu.dot_dimension_numbers<[1], [0], [0], [1], [0, 0, 1, 1], [], []>} : vector<8x8xf32>, vector<8x128xf32>, vector<8x128xf32> -> vector<8x128xf32>
    %23 = arith.addf %16, %22 : vector<8x128xf32>
    %c0_26 = arith.constant 0 : index
    %c0_27 = arith.constant 0 : index
    %24 = vector.load %arg6[%c0_26, %c0_27] : memref<1x128xf32, #tpu.memory_space<vmem>>, vector<1x128xf32>
    %25 = vector.broadcast %24 : vector<1x128xf32> to vector<8x128xf32>
    %26 = arith.mulf %23, %25 : vector<8x128xf32>
    %c0_28 = arith.constant 0 : index
    %c0_29 = arith.constant 0 : index
    %27 = vector.load %arg7[%c0_28, %c0_29] : memref<1x128xf32, #tpu.memory_space<vmem>>, vector<1x128xf32>
    %28 = vector.broadcast %27 : vector<1x128xf32> to vector<8x128xf32>
    %29 = arith.addf %26, %28 : vector<8x128xf32>
    %cst_30 = arith.constant 0.000000e+00 : f32
    %30 = vector.broadcast %cst_30 : f32 to vector<8x128xf32>
    %31 = arith.maximumf %29, %30 : vector<8x128xf32>
    %32 = arith.truncf %31 : vector<8x128xf32> to vector<8x128xbf16>
    %c0_31 = arith.constant 0 : index
    %c0_32 = arith.constant 0 : index
    %33 = vector.load %arg17[%c0_31, %c0_32] : memref<1x128xf32, #tpu.memory_space<vmem>>, vector<1x128xf32>
    %c0_33 = arith.constant 0 : index
    %c0_34 = arith.constant 0 : index
    %c0_35 = arith.constant 0 : index
    %34 = vector.load %arg15[%c0_33, %c0_34, %c0_35] : memref<1x128x128xbf16, #tpu.memory_space<vmem>>, vector<1x128x128xbf16>
    %35 = vector.shape_cast %34 : vector<1x128x128xbf16> to vector<128x128xbf16>
    %cst_36 = arith.constant dense<0.000000e+00> : vector<8x128xf32>
    %36 = tpu.matmul %32, %35, %cst_36 {dimension_numbers = #tpu.dot_dimension_numbers<[1], [0], [0], [1], [0, 0, 1, 1], [], []>} : vector<8x128xbf16>, vector<128x128xbf16>, vector<8x128xf32> -> vector<8x128xf32>
    %37 = vector.broadcast %33 : vector<1x128xf32> to vector<8x128xf32>
    %38 = arith.addf %37, %36 : vector<8x128xf32>
    %c0_37 = arith.constant 0 : index
    %c0_38 = arith.constant 0 : index
    %c0_39 = arith.constant 0 : index
    %39 = vector.load %arg16[%c0_37, %c0_38, %c0_39] : memref<1x32x128xbf16, #tpu.memory_space<vmem>>, vector<1x32x128xbf16>
    %40 = vector.shape_cast %39 : vector<1x32x128xbf16> to vector<32x128xbf16>
    %cst_40 = arith.constant dense<0.000000e+00> : vector<8x128xf32>
    %41 = tpu.matmul %3, %40, %cst_40 {dimension_numbers = #tpu.dot_dimension_numbers<[1], [0], [0], [1], [0, 0, 1, 1], [], []>} : vector<8x32xbf16>, vector<32x128xbf16>, vector<8x128xf32> -> vector<8x128xf32>
    %42 = arith.addf %38, %41 : vector<8x128xf32>
    %c0_41 = arith.constant 0 : index
    %c0_42 = arith.constant 0 : index
    %c0_43 = arith.constant 0 : index
    %43 = vector.load %arg8[%c0_41, %c0_42, %c0_43] : memref<3x128x128xbf16, #tpu.memory_space<vmem>>, vector<1x128x128xbf16>
    %44 = vector.shape_cast %43 : vector<1x128x128xbf16> to vector<128x128xbf16>
    %cst_44 = arith.constant dense<0.000000e+00> : vector<8x128xf32>
    %45 = tpu.matmul %32, %44, %cst_44 {dimension_numbers = #tpu.dot_dimension_numbers<[1], [0], [0], [1], [0, 0, 1, 1], [], []>} : vector<8x128xbf16>, vector<128x128xbf16>, vector<8x128xf32> -> vector<8x128xf32>
    %c0_45 = arith.constant 0 : index
    %c0_46 = arith.constant 0 : index
    %c0_47 = arith.constant 0 : index
    %46 = vector.load %arg9[%c0_45, %c0_46, %c0_47] : memref<3x32x128xbf16, #tpu.memory_space<vmem>>, vector<1x32x128xbf16>
    %47 = vector.shape_cast %46 : vector<1x32x128xbf16> to vector<32x128xbf16>
    %cst_48 = arith.constant dense<0.000000e+00> : vector<8x128xf32>
    %48 = tpu.matmul %3, %47, %cst_48 {dimension_numbers = #tpu.dot_dimension_numbers<[1], [0], [0], [1], [0, 0, 1, 1], [], []>} : vector<8x32xbf16>, vector<32x128xbf16>, vector<8x128xf32> -> vector<8x128xf32>
    %49 = arith.addf %45, %48 : vector<8x128xf32>
    %c0_49 = arith.constant 0 : index
    %c0_50 = arith.constant 0 : index
    %c0_51 = arith.constant 0 : index
    %50 = vector.load %arg4[%c0_49, %c0_50, %c0_51] : memref<3x8x8xf32, #tpu.memory_space<vmem>>, vector<1x8x8xf32>
    %51 = vector.shape_cast %50 : vector<1x8x8xf32> to vector<8x8xf32>
    %cst_52 = arith.constant dense<0.000000e+00> : vector<8x128xf32>
    %52 = tpu.matmul %51, %49, %cst_52 {dimension_numbers = #tpu.dot_dimension_numbers<[1], [0], [0], [1], [0, 0, 1, 1], [], []>} : vector<8x8xf32>, vector<8x128xf32>, vector<8x128xf32> -> vector<8x128xf32>
    %c1_53 = arith.constant 1 : index
    %c0_54 = arith.constant 0 : index
    %c0_55 = arith.constant 0 : index
    %53 = vector.load %arg8[%c1_53, %c0_54, %c0_55] : memref<3x128x128xbf16, #tpu.memory_space<vmem>>, vector<1x128x128xbf16>
    %54 = vector.shape_cast %53 : vector<1x128x128xbf16> to vector<128x128xbf16>
    %cst_56 = arith.constant dense<0.000000e+00> : vector<8x128xf32>
    %55 = tpu.matmul %32, %54, %cst_56 {dimension_numbers = #tpu.dot_dimension_numbers<[1], [0], [0], [1], [0, 0, 1, 1], [], []>} : vector<8x128xbf16>, vector<128x128xbf16>, vector<8x128xf32> -> vector<8x128xf32>
    %c1_57 = arith.constant 1 : index
    %c0_58 = arith.constant 0 : index
    %c0_59 = arith.constant 0 : index
    %56 = vector.load %arg9[%c1_57, %c0_58, %c0_59] : memref<3x32x128xbf16, #tpu.memory_space<vmem>>, vector<1x32x128xbf16>
    %57 = vector.shape_cast %56 : vector<1x32x128xbf16> to vector<32x128xbf16>
    %cst_60 = arith.constant dense<0.000000e+00> : vector<8x128xf32>
    %58 = tpu.matmul %3, %57, %cst_60 {dimension_numbers = #tpu.dot_dimension_numbers<[1], [0], [0], [1], [0, 0, 1, 1], [], []>} : vector<8x32xbf16>, vector<32x128xbf16>, vector<8x128xf32> -> vector<8x128xf32>
    %59 = arith.addf %55, %58 : vector<8x128xf32>
    %c1_61 = arith.constant 1 : index
    %c0_62 = arith.constant 0 : index
    %c0_63 = arith.constant 0 : index
    %60 = vector.load %arg4[%c1_61, %c0_62, %c0_63] : memref<3x8x8xf32, #tpu.memory_space<vmem>>, vector<1x8x8xf32>
    %61 = vector.shape_cast %60 : vector<1x8x8xf32> to vector<8x8xf32>
    %cst_64 = arith.constant dense<0.000000e+00> : vector<8x128xf32>
    %62 = tpu.matmul %61, %59, %cst_64 {dimension_numbers = #tpu.dot_dimension_numbers<[1], [0], [0], [1], [0, 0, 1, 1], [], []>} : vector<8x8xf32>, vector<8x128xf32>, vector<8x128xf32> -> vector<8x128xf32>
    %63 = arith.addf %52, %62 : vector<8x128xf32>
    %c2_65 = arith.constant 2 : index
    %c0_66 = arith.constant 0 : index
    %c0_67 = arith.constant 0 : index
    %64 = vector.load %arg8[%c2_65, %c0_66, %c0_67] : memref<3x128x128xbf16, #tpu.memory_space<vmem>>, vector<1x128x128xbf16>
    %65 = vector.shape_cast %64 : vector<1x128x128xbf16> to vector<128x128xbf16>
    %cst_68 = arith.constant dense<0.000000e+00> : vector<8x128xf32>
    %66 = tpu.matmul %32, %65, %cst_68 {dimension_numbers = #tpu.dot_dimension_numbers<[1], [0], [0], [1], [0, 0, 1, 1], [], []>} : vector<8x128xbf16>, vector<128x128xbf16>, vector<8x128xf32> -> vector<8x128xf32>
    %c2_69 = arith.constant 2 : index
    %c0_70 = arith.constant 0 : index
    %c0_71 = arith.constant 0 : index
    %67 = vector.load %arg9[%c2_69, %c0_70, %c0_71] : memref<3x32x128xbf16, #tpu.memory_space<vmem>>, vector<1x32x128xbf16>
    %68 = vector.shape_cast %67 : vector<1x32x128xbf16> to vector<32x128xbf16>
    %cst_72 = arith.constant dense<0.000000e+00> : vector<8x128xf32>
    %69 = tpu.matmul %3, %68, %cst_72 {dimension_numbers = #tpu.dot_dimension_numbers<[1], [0], [0], [1], [0, 0, 1, 1], [], []>} : vector<8x32xbf16>, vector<32x128xbf16>, vector<8x128xf32> -> vector<8x128xf32>
    %70 = arith.addf %66, %69 : vector<8x128xf32>
    %c2_73 = arith.constant 2 : index
    %c0_74 = arith.constant 0 : index
    %c0_75 = arith.constant 0 : index
    %71 = vector.load %arg4[%c2_73, %c0_74, %c0_75] : memref<3x8x8xf32, #tpu.memory_space<vmem>>, vector<1x8x8xf32>
    %72 = vector.shape_cast %71 : vector<1x8x8xf32> to vector<8x8xf32>
    %cst_76 = arith.constant dense<0.000000e+00> : vector<8x128xf32>
    %73 = tpu.matmul %72, %70, %cst_76 {dimension_numbers = #tpu.dot_dimension_numbers<[1], [0], [0], [1], [0, 0, 1, 1], [], []>} : vector<8x8xf32>, vector<8x128xf32>, vector<8x128xf32> -> vector<8x128xf32>
    %74 = arith.addf %63, %73 : vector<8x128xf32>
    %c0_77 = arith.constant 0 : index
    %c0_78 = arith.constant 0 : index
    %75 = vector.load %arg10[%c0_77, %c0_78] : memref<1x128xf32, #tpu.memory_space<vmem>>, vector<1x128xf32>
    %76 = vector.broadcast %75 : vector<1x128xf32> to vector<8x128xf32>
    %77 = arith.mulf %74, %76 : vector<8x128xf32>
    %c0_79 = arith.constant 0 : index
    %c0_80 = arith.constant 0 : index
    %78 = vector.load %arg11[%c0_79, %c0_80] : memref<1x128xf32, #tpu.memory_space<vmem>>, vector<1x128xf32>
    %79 = vector.broadcast %78 : vector<1x128xf32> to vector<8x128xf32>
    %80 = arith.addf %77, %79 : vector<8x128xf32>
    %cst_81 = arith.constant 0.000000e+00 : f32
    %81 = vector.broadcast %cst_81 : f32 to vector<8x128xf32>
    %82 = arith.maximumf %80, %81 : vector<8x128xf32>
    %83 = arith.truncf %82 : vector<8x128xf32> to vector<8x128xbf16>
    %c0_82 = arith.constant 0 : index
    %c0_83 = arith.constant 0 : index
    %c0_84 = arith.constant 0 : index
    %84 = vector.load %arg12[%c0_82, %c0_83, %c0_84] : memref<3x128x128xbf16, #tpu.memory_space<vmem>>, vector<1x128x128xbf16>
    %85 = vector.shape_cast %84 : vector<1x128x128xbf16> to vector<128x128xbf16>
    %cst_85 = arith.constant dense<0.000000e+00> : vector<8x128xf32>
    %86 = tpu.matmul %83, %85, %cst_85 {dimension_numbers = #tpu.dot_dimension_numbers<[1], [0], [0], [1], [0, 0, 1, 1], [], []>} : vector<8x128xbf16>, vector<128x128xbf16>, vector<8x128xf32> -> vector<8x128xf32>
    %c0_86 = arith.constant 0 : index
    %c0_87 = arith.constant 0 : index
    %c0_88 = arith.constant 0 : index
    %87 = vector.load %arg4[%c0_86, %c0_87, %c0_88] : memref<3x8x8xf32, #tpu.memory_space<vmem>>, vector<1x8x8xf32>
    %88 = vector.shape_cast %87 : vector<1x8x8xf32> to vector<8x8xf32>
    %cst_89 = arith.constant dense<0.000000e+00> : vector<8x128xf32>
    %89 = tpu.matmul %88, %86, %cst_89 {dimension_numbers = #tpu.dot_dimension_numbers<[1], [0], [0], [1], [0, 0, 1, 1], [], []>} : vector<8x8xf32>, vector<8x128xf32>, vector<8x128xf32> -> vector<8x128xf32>
    %c1_90 = arith.constant 1 : index
    %c0_91 = arith.constant 0 : index
    %c0_92 = arith.constant 0 : index
    %90 = vector.load %arg12[%c1_90, %c0_91, %c0_92] : memref<3x128x128xbf16, #tpu.memory_space<vmem>>, vector<1x128x128xbf16>
    %91 = vector.shape_cast %90 : vector<1x128x128xbf16> to vector<128x128xbf16>
    %cst_93 = arith.constant dense<0.000000e+00> : vector<8x128xf32>
    %92 = tpu.matmul %83, %91, %cst_93 {dimension_numbers = #tpu.dot_dimension_numbers<[1], [0], [0], [1], [0, 0, 1, 1], [], []>} : vector<8x128xbf16>, vector<128x128xbf16>, vector<8x128xf32> -> vector<8x128xf32>
    %c1_94 = arith.constant 1 : index
    %c0_95 = arith.constant 0 : index
    %c0_96 = arith.constant 0 : index
    %93 = vector.load %arg4[%c1_94, %c0_95, %c0_96] : memref<3x8x8xf32, #tpu.memory_space<vmem>>, vector<1x8x8xf32>
    %94 = vector.shape_cast %93 : vector<1x8x8xf32> to vector<8x8xf32>
    %cst_97 = arith.constant dense<0.000000e+00> : vector<8x128xf32>
    %95 = tpu.matmul %94, %92, %cst_97 {dimension_numbers = #tpu.dot_dimension_numbers<[1], [0], [0], [1], [0, 0, 1, 1], [], []>} : vector<8x8xf32>, vector<8x128xf32>, vector<8x128xf32> -> vector<8x128xf32>
    %96 = arith.addf %89, %95 : vector<8x128xf32>
    %c2_98 = arith.constant 2 : index
    %c0_99 = arith.constant 0 : index
    %c0_100 = arith.constant 0 : index
    %97 = vector.load %arg12[%c2_98, %c0_99, %c0_100] : memref<3x128x128xbf16, #tpu.memory_space<vmem>>, vector<1x128x128xbf16>
    %98 = vector.shape_cast %97 : vector<1x128x128xbf16> to vector<128x128xbf16>
    %cst_101 = arith.constant dense<0.000000e+00> : vector<8x128xf32>
    %99 = tpu.matmul %83, %98, %cst_101 {dimension_numbers = #tpu.dot_dimension_numbers<[1], [0], [0], [1], [0, 0, 1, 1], [], []>} : vector<8x128xbf16>, vector<128x128xbf16>, vector<8x128xf32> -> vector<8x128xf32>
    %c2_102 = arith.constant 2 : index
    %c0_103 = arith.constant 0 : index
    %c0_104 = arith.constant 0 : index
    %100 = vector.load %arg4[%c2_102, %c0_103, %c0_104] : memref<3x8x8xf32, #tpu.memory_space<vmem>>, vector<1x8x8xf32>
    %101 = vector.shape_cast %100 : vector<1x8x8xf32> to vector<8x8xf32>
    %cst_105 = arith.constant dense<0.000000e+00> : vector<8x128xf32>
    %102 = tpu.matmul %101, %99, %cst_105 {dimension_numbers = #tpu.dot_dimension_numbers<[1], [0], [0], [1], [0, 0, 1, 1], [], []>} : vector<8x8xf32>, vector<8x128xf32>, vector<8x128xf32> -> vector<8x128xf32>
    %103 = arith.addf %96, %102 : vector<8x128xf32>
    %c0_106 = arith.constant 0 : index
    %c0_107 = arith.constant 0 : index
    %104 = vector.load %arg13[%c0_106, %c0_107] : memref<1x128xf32, #tpu.memory_space<vmem>>, vector<1x128xf32>
    %105 = vector.broadcast %104 : vector<1x128xf32> to vector<8x128xf32>
    %106 = arith.mulf %103, %105 : vector<8x128xf32>
    %c0_108 = arith.constant 0 : index
    %c0_109 = arith.constant 0 : index
    %107 = vector.load %arg14[%c0_108, %c0_109] : memref<1x128xf32, #tpu.memory_space<vmem>>, vector<1x128xf32>
    %108 = vector.broadcast %107 : vector<1x128xf32> to vector<8x128xf32>
    %109 = arith.addf %106, %108 : vector<8x128xf32>
    %110 = arith.addf %109, %42 : vector<8x128xf32>
    %cst_110 = arith.constant 0.000000e+00 : f32
    %111 = vector.broadcast %cst_110 : f32 to vector<8x128xf32>
    %112 = arith.maximumf %110, %111 : vector<8x128xf32>
    %113 = arith.truncf %112 : vector<8x128xf32> to vector<8x128xbf16>
    %c0_111 = arith.constant 0 : index
    %c0_112 = arith.constant 0 : index
    %c0_113 = arith.constant 0 : index
    %114 = vector.load %arg18[%c0_111, %c0_112, %c0_113] : memref<1x8x128xbf16, #tpu.memory_space<vmem>>, vector<1x8x128xbf16>
    %115 = vector.shape_cast %114 : vector<1x8x128xbf16> to vector<8x128xbf16>
    %116 = vector.shape_cast %113 : vector<8x128xbf16> to vector<1x8x128xbf16>
    tpu.vector_store %arg18[%c0_111, %c0_112, %c0_113], %116 {strides = array<i32>} : memref<1x8x128xbf16, #tpu.memory_space<vmem>>, vector<1x8x128xbf16>,
    return
  }
  func.func @transform_0(%arg0: i32) -> (i32, i32, i32) {
    %c0_i32 = arith.constant 0 : i32
    %c0_i32_0 = arith.constant 0 : i32
    %c0_i32_1 = arith.constant 0 : i32
    return %arg0, %c0_i32, %c0_i32_0 : i32, i32, i32
  }
  func.func @transform_1(%arg0: i32) -> (i32, i32, i32) {
    %c0_i32 = arith.constant 0 : i32
    %c0_i32_0 = arith.constant 0 : i32
    %c0_i32_1 = arith.constant 0 : i32
    return %arg0, %c0_i32, %c0_i32_0 : i32, i32, i32
  }
  func.func @transform_2(%arg0: i32) -> (i32, i32, i32) {
    %c0_i32 = arith.constant 0 : i32
    %c0_i32_0 = arith.constant 0 : i32
    %c0_i32_1 = arith.constant 0 : i32
    %c0_i32_2 = arith.constant 0 : i32
    return %c0_i32, %c0_i32_0, %c0_i32_1 : i32, i32, i32
  }
  func.func @transform_3(%arg0: i32) -> (i32, i32, i32) {
    %c0_i32 = arith.constant 0 : i32
    %c0_i32_0 = arith.constant 0 : i32
    %c0_i32_1 = arith.constant 0 : i32
    %c0_i32_2 = arith.constant 0 : i32
    return %c0_i32, %c0_i32_0, %c0_i32_1 : i32, i32, i32
  }
  func.func @transform_4(%arg0: i32) -> (i32, i32, i32) {
    %c0_i32 = arith.constant 0 : i32
    %c0_i32_0 = arith.constant 0 : i32
    %c0_i32_1 = arith.constant 0 : i32
    %c0_i32_2 = arith.constant 0 : i32
    return %c0_i32, %c0_i32_0, %c0_i32_1 : i32, i32, i32
  }
  func.func @transform_5(%arg0: i32) -> (i32, i32) {
    %c0_i32 = arith.constant 0 : i32
    %c0_i32_0 = arith.constant 0 : i32
    %c0_i32_1 = arith.constant 0 : i32
    return %c0_i32, %c0_i32_0 : i32, i32
  }
  func.func @transform_6(%arg0: i32) -> (i32, i32) {
    %c0_i32 = arith.constant 0 : i32
    %c0_i32_0 = arith.constant 0 : i32
    %c0_i32_1 = arith.constant 0 : i32
    return %c0_i32, %c0_i32_0 : i32, i32
  }
  func.func @transform_7(%arg0: i32) -> (i32, i32, i32) {
    %c0_i32 = arith.constant 0 : i32
    %c0_i32_0 = arith.constant 0 : i32
    %c0_i32_1 = arith.constant 0 : i32
    %c0_i32_2 = arith.constant 0 : i32
    return %c0_i32, %c0_i32_0, %c0_i32_1 : i32, i32, i32
  }
  func.func @transform_8(%arg0: i32) -> (i32, i32, i32) {
    %c0_i32 = arith.constant 0 : i32
    %c0_i32_0 = arith.constant 0 : i32
    %c0_i32_1 = arith.constant 0 : i32
    %c0_i32_2 = arith.constant 0 : i32
    return %c0_i32, %c0_i32_0, %c0_i32_1 : i32, i32, i32
  }
  func.func @transform_9(%arg0: i32) -> (i32, i32) {
    %c0_i32 = arith.constant 0 : i32
    %c0_i32_0 = arith.constant 0 : i32
    %c0_i32_1 = arith.constant 0 : i32
    return %c0_i32, %c0_i32_0 : i32, i32
  }
  func.func @transform_10(%arg0: i32) -> (i32, i32) {
    %c0_i32 = arith.constant 0 : i32
    %c0_i32_0 = arith.constant 0 : i32
    %c0_i32_1 = arith.constant 0 : i32
    return %c0_i32, %c0_i32_0 : i32, i32
  }
  func.func @transform_11(%arg0: i32) -> (i32, i32, i32) {
    %c0_i32 = arith.constant 0 : i32
    %c0_i32_0 = arith.constant 0 : i32
    %c0_i32_1 = arith.constant 0 : i32
    %c0_i32_2 = arith.constant 0 : i32
    return %c0_i32, %c0_i32_0, %c0_i32_1 : i32, i32, i32
  }
  func.func @transform_12(%arg0: i32) -> (i32, i32) {
    %c0_i32 = arith.constant 0 : i32
    %c0_i32_0 = arith.constant 0 : i32
    %c0_i32_1 = arith.constant 0 : i32
    return %c0_i32, %c0_i32_0 : i32, i32
  }
  func.func @transform_13(%arg0: i32) -> (i32, i32) {
    %c0_i32 = arith.constant 0 : i32
    %c0_i32_0 = arith.constant 0 : i32
    %c0_i32_1 = arith.constant 0 : i32
    return %c0_i32, %c0_i32_0 : i32, i32
  }
  func.func @transform_14(%arg0: i32) -> (i32, i32, i32) {
    %c0_i32 = arith.constant 0 : i32
    %c0_i32_0 = arith.constant 0 : i32
    %c0_i32_1 = arith.constant 0 : i32
    %c0_i32_2 = arith.constant 0 : i32
    return %c0_i32, %c0_i32_0, %c0_i32_1 : i32, i32, i32
  }
  func.func @transform_15(%arg0: i32) -> (i32, i32, i32) {
    %c0_i32 = arith.constant 0 : i32
    %c0_i32_0 = arith.constant 0 : i32
    %c0_i32_1 = arith.constant 0 : i32
    %c0_i32_2 = arith.constant 0 : i32
    return %c0_i32, %c0_i32_0, %c0_i32_1 : i32, i32, i32
  }
  func.func @transform_16(%arg0: i32) -> (i32, i32) {
    %c0_i32 = arith.constant 0 : i32
    %c0_i32_0 = arith.constant 0 : i32
    %c0_i32_1 = arith.constant 0 : i32
    return %c0_i32, %c0_i32_0 : i32, i32
  }
  func.func @transform_17(%arg0: i32) -> (i32, i32, i32) {
    %c0_i32 = arith.constant 0 : i32
    %c0_i32_0 = arith.constant 0 : i32
    %c0_i32_1 = arith.constant 0 : i32
    return %arg0, %c0_i32, %c0_i32_0 : i32, i32, i32
  }
}

</mosaic_0001>

<llo_original>
// kernel: _lambda_.2
$region0: #{_lambda_.2}
  #allocation0 [shape = 'u32[]', space=smem, size = 0x4, offset = 0x4, fixed_abs, tag = 'smem constant byte address 0x4 - core index']
  #allocation1 [shape = 'u32[72,128]{1,0:T(1,128)}', space=vmem, size = 0x9000, scoped, tag = 'internal scratch']
  %s0 = inlined_call_operand.vmem [shape: bf16[2,8,32], index: 0, kind: input, shape index: {}]
  %s1 = inlined_call_operand.vmem [shape: bf16[2,8,32], index: 1, kind: input, shape index: {}]
  %s2 = inlined_call_operand.vmem [shape: f32[3,8,8], index: 2, kind: input, shape index: {}]
  %s3 = inlined_call_operand.vmem [shape: f32[3,8,8], index: 3, kind: input, shape index: {}]
  %s4 = inlined_call_operand.vmem [shape: bf16[3,32,128], index: 4, kind: input, shape index: {}]
  %s5 = inlined_call_operand.vmem [shape: f32[1,128], index: 5, kind: input, shape index: {}]
  %s6 = inlined_call_operand.vmem [shape: f32[1,128], index: 6, kind: input, shape index: {}]
  %s7 = inlined_call_operand.hbm [shape: bf16[3,128,128], index: 7, kind: input, shape index: {}]
  %s8 = inlined_call_operand.vmem [shape: bf16[3,32,128], index: 8, kind: input, shape index: {}]
  %s9 = inlined_call_operand.vmem [shape: f32[1,128], index: 9, kind: input, shape index: {}]
  %s10 = inlined_call_operand.vmem [shape: f32[1,128], index: 10, kind: input, shape index: {}]
  %s11 = inlined_call_operand.hbm [shape: bf16[3,128,128], index: 11, kind: input, shape index: {}]
  %s12 = inlined_call_operand.vmem [shape: f32[1,128], index: 12, kind: input, shape index: {}]
  %s13 = inlined_call_operand.vmem [shape: f32[1,128], index: 13, kind: input, shape index: {}]
  %s14 = inlined_call_operand.vmem [shape: bf16[1,128,128], index: 14, kind: input, shape index: {}]
  %s15 = inlined_call_operand.vmem [shape: bf16[1,32,128], index: 15, kind: input, shape index: {}]
  %s16 = inlined_call_operand.vmem [shape: f32[1,128], index: 16, kind: input, shape index: {}]
  %s17 = inlined_call_operand.vmem [shape: bf16[2,8,128], index: 17, kind: output, shape index: {}]
  %s18 = sld [smem:[#allocation0]]
  $region109: #{_lambda_.2} parent=0
    _
  %s20 = ssub.s32 1, %s18
  %s21 = scalar_select 0, %s20, %s18
  $region1: #{_lambda_.2} parent=0
    #allocation2 [shape = 'u8[98304]{0}', space=vmem, size = 0x18000, scoped, tag = 'input window, operand 7, single buffered']
    #allocation3 [shape = 's32[2]{0}', space=sflag, size = 0x8, scoped, tag = 'scoped memory for _lambda_.2']
    #allocation4 [shape = 'u8[98304]{0}', space=vmem, size = 0x18000, scoped, tag = 'input window, operand 11, single buffered']
    #allocation5 [shape = 's32[1]{0}', space=sflag, size = 0x4, scoped, tag = 'scoped memory for _lambda_.2']
    %22 = vsyncpa [#allocation3], 0
    %23 = vsyncpa [#allocation5], 0
    loop: start=0, step=1, limit=4
    $region2: #{_lambda_.2} parent=1 // loop_pre_header
      _
    $region3: #{_lambda_.2} parent=1 // loop_header
      %s25 = sphi 0, %s29
      %p26 = scmp.ge.s32.totalorder %s25, 4
      %s35 = sphi 0, %s37
      %s38 = sphi 0, %s35
      %s39 = sphi 0, %s38
      %s55 = sphi 0, %s39
      %s61 = sphi 0, %s63
      %s64 = sphi 0, %s61
      %s65 = sphi 0, %s64
      %s81 = sphi 0, %s65
      %s85 = sphi 0, %s85
      %s87 = sphi 0, %s85
      %s88 = sphi 0, %s87
      %s102 = sphi 0, %s88
      %s106 = sphi 0, %s106
      %s108 = sphi 0, %s106
      %s109 = sphi 0, %s108
      %s123 = sphi 0, %s109
      %s127 = sphi 0, %s127
      %s129 = sphi 0, %s127
      %s130 = sphi 0, %s129
      %s144 = sphi 0, %s130
      %s148 = sphi 0, %s148
      %s150 = sphi 0, %s148
      %s151 = sphi 0, %s150
      %s165 = sphi 0, %s151
      %s169 = sphi 0, %s169
      %s171 = sphi 0, %s169
      %s172 = sphi 0, %s171
      %s186 = sphi 0, %s172
      %s190 = sphi 0, %s190
      %s192 = sphi 0, %s190
      %s193 = sphi 0, %s192
      %s207 = sphi 0, %s193
      %s211 = sphi 0, %s211
      %s213 = sphi 0, %s211
      %s214 = sphi 0, %s213
      %s228 = sphi 0, %s214
      %s232 = sphi 0, %s232
      %s234 = sphi 0, %s232
      %s235 = sphi 0, %s234
      %s249 = sphi 0, %s235
      %s253 = sphi 0, %s253
      %s255 = sphi 0, %s253
      %s256 = sphi 0, %s255
      %s270 = sphi 0, %s256
      %s274 = sphi 0, %s274
      %s276 = sphi 0, %s274
      %s277 = sphi 0, %s276
      %s291 = sphi 0, %s277
      %s295 = sphi 0, %s295
      %s297 = sphi 0, %s295
      %s298 = sphi 0, %s297
      %s312 = sphi 0, %s298
      %s316 = sphi 0, %s316
      %s318 = sphi 0, %s316
      %s319 = sphi 0, %s318
      %s333 = sphi 0, %s319
      %s337 = sphi 0, %s337
      %s339 = sphi 0, %s337
      %s340 = sphi 0, %s339
      %s354 = sphi 0, %s340
      %s358 = sphi 0, %s358
      %s360 = sphi 0, %s358
      %s361 = sphi 0, %s360
      %s375 = sphi 0, %s361
      %s379 = sphi 0, %s379
      %s381 = sphi 0, %s379
      %s382 = sphi 0, %s381
      %s396 = sphi 0, %s382
      %s402 = sphi 0, %s404
      %s405 = sphi 0, %s402
      %s406 = sphi 0, %s405
      %s422 = sphi 0, %s406
    $region4: #{_lambda_.2} parent=1 // loop_header_branch
      %28 = sbr.rel (%p26) target = $region8
    $region5: #{_lambda_.2} parent=1 // loop_body
      %s30 = ssub.s32 %s25, 1
      %s31 = ssub.s32 %s25, 2
      %s32 = sadd.s32 %s25, 1
      %s33 = ssub.s32 %s25, %s32
      %p34 = scmp.eq.s32.totalorder %s33, 0
      %s36 = sadd.s32 %s35, 1
      %s37 = scalar_select %p34, %s35, %s36
      %p40 = pneg %p34
      %p41 = scmp.eq.s32.totalorder %s25, 1
      %p42 = por %p40, %p41
      %p43 = scmp.ne.s32.totalorder %s35, %s38
      %p44 = scmp.eq.s32.totalorder %s25, 0
      %p45 = por %p43, %p44
      %p46 = scmp.ne.s32.totalorder %s35, %s38
      %p47 = scmp.eq.s32.totalorder %s30, 1
      %p48 = por %p46, %p47
      %p49 = scmp.ne.s32.totalorder %s38, %s39
      %p50 = scmp.eq.s32.totalorder %s30, 0
      %p51 = por %p49, %p50
      %p52 = scmp.ne.s32.totalorder %s38, %s39
      %p53 = scmp.eq.s32.totalorder %s31, 1
      %p54 = por %p52, %p53
      %p56 = scmp.ne.s32.totalorder %s39, %s55
      %p57 = scmp.eq.s32.totalorder %s31, 0
      %p58 = por %p56, %p57
      %s59 = ssub.s32 %s25, %s32
      %p60 = scmp.eq.s32.totalorder %s59, 0
      %s62 = sadd.s32 %s61, 1
      %s63 = scalar_select %p60, %s61, %s62
      %p66 = pneg %p60
      %p67 = scmp.eq.s32.totalorder %s25, 1
      %p68 = por %p66, %p67
      %p69 = scmp.ne.s32.totalorder %s61, %s64
      %p70 = scmp.eq.s32.totalorder %s25, 0
      %p71 = por %p69, %p70
      %p72 = scmp.ne.s32.totalorder %s61, %s64
      %p73 = scmp.eq.s32.totalorder %s30, 1
      %p74 = por %p72, %p73
      %p75 = scmp.ne.s32.totalorder %s64, %s65
      %p76 = scmp.eq.s32.totalorder %s30, 0
      %p77 = por %p75, %p76
      %p78 = scmp.ne.s32.totalorder %s64, %s65
      %p79 = scmp.eq.s32.totalorder %s31, 1
      %p80 = por %p78, %p79
      %p82 = scmp.ne.s32.totalorder %s65, %s81
      %p83 = scmp.eq.s32.totalorder %s31, 0
      %p84 = por %p82, %p83
      %s86 = sadd.s32 %s85, 1
      %p89 = scmp.eq.s32.totalorder %s25, 1
      %p90 = scmp.ne.s32.totalorder %s85, %s87
      %p91 = scmp.eq.s32.totalorder %s25, 0
      %p92 = por %p90, %p91
      %p93 = scmp.ne.s32.totalorder %s85, %s87
      %p94 = scmp.eq.s32.totalorder %s30, 1
      %p95 = por %p93, %p94
      %p96 = scmp.ne.s32.totalorder %s87, %s88
      %p97 = scmp.eq.s32.totalorder %s30, 0
      %p98 = por %p96, %p97
      %p99 = scmp.ne.s32.totalorder %s87, %s88
      %p100 = scmp.eq.s32.totalorder %s31, 1
      %p101 = por %p99, %p100
      %p103 = scmp.ne.s32.totalorder %s88, %s102
      %p104 = scmp.eq.s32.totalorder %s31, 0
      %p105 = por %p103, %p104
      %s107 = sadd.s32 %s106, 1
      %p110 = scmp.eq.s32.totalorder %s25, 1
      %p111 = scmp.ne.s32.totalorder %s106, %s108
      %p112 = scmp.eq.s32.totalorder %s25, 0
      %p113 = por %p111, %p112
      %p114 = scmp.ne.s32.totalorder %s106, %s108
      %p115 = scmp.eq.s32.totalorder %s30, 1
      %p116 = por %p114, %p115
      %p117 = scmp.ne.s32.totalorder %s108, %s109
      %p118 = scmp.eq.s32.totalorder %s30, 0
      %p119 = por %p117, %p118
      %p120 = scmp.ne.s32.totalorder %s108, %s109
      %p121 = scmp.eq.s32.totalorder %s31, 1
      %p122 = por %p120, %p121
      %p124 = scmp.ne.s32.totalorder %s109, %s123
      %p125 = scmp.eq.s32.totalorder %s31, 0
      %p126 = por %p124, %p125
      %s128 = sadd.s32 %s127, 1
      %p131 = scmp.eq.s32.totalorder %s25, 1
      %p132 = scmp.ne.s32.totalorder %s127, %s129
      %p133 = scmp.eq.s32.totalorder %s25, 0
      %p134 = por %p132, %p133
      %p135 = scmp.ne.s32.totalorder %s127, %s129
      %p136 = scmp.eq.s32.totalorder %s30, 1
      %p137 = por %p135, %p136
      %p138 = scmp.ne.s32.totalorder %s129, %s130
      %p139 = scmp.eq.s32.totalorder %s30, 0
      %p140 = por %p138, %p139
      %p141 = scmp.ne.s32.totalorder %s129, %s130
      %p142 = scmp.eq.s32.totalorder %s31, 1
      %p143 = por %p141, %p142
      %p145 = scmp.ne.s32.totalorder %s130, %s144
      %p146 = scmp.eq.s32.totalorder %s31, 0
      %p147 = por %p145, %p146
      %s149 = sadd.s32 %s148, 1
      %p152 = scmp.eq.s32.totalorder %s25, 1
      %p153 = scmp.ne.s32.totalorder %s148, %s150
      %p154 = scmp.eq.s32.totalorder %s25, 0
      %p155 = por %p153, %p154
      %p156 = scmp.ne.s32.totalorder %s148, %s150
      %p157 = scmp.eq.s32.totalorder %s30, 1
      %p158 = por %p156, %p157
      %p159 = scmp.ne.s32.totalorder %s150, %s151
      %p160 = scmp.eq.s32.totalorder %s30, 0
      %p161 = por %p159, %p160
      %p162 = scmp.ne.s32.totalorder %s150, %s151
      %p163 = scmp.eq.s32.totalorder %s31, 1
      %p164 = por %p162, %p163
      %p166 = scmp.ne.s32.totalorder %s151, %s165
      %p167 = scmp.eq.s32.totalorder %s31, 0
      %p168 = por %p166, %p167
      %s170 = sadd.s32 %s169, 1
      %p173 = scmp.eq.s32.totalorder %s25, 1
      %p174 = scmp.ne.s32.totalorder %s169, %s171
      %p175 = scmp.eq.s32.totalorder %s25, 0
      %p176 = por %p174, %p175
      %p177 = scmp.ne.s32.totalorder %s169, %s171
      %p178 = scmp.eq.s32.totalorder %s30, 1
      %p179 = por %p177, %p178
      %p180 = scmp.ne.s32.totalorder %s171, %s172
      %p181 = scmp.eq.s32.totalorder %s30, 0
      %p182 = por %p180, %p181
      %p183 = scmp.ne.s32.totalorder %s171, %s172
      %p184 = scmp.eq.s32.totalorder %s31, 1
      %p185 = por %p183, %p184
      %p187 = scmp.ne.s32.totalorder %s172, %s186
      %p188 = scmp.eq.s32.totalorder %s31, 0
      %p189 = por %p187, %p188
      %s191 = sadd.s32 %s190, 1
      %p194 = scmp.eq.s32.totalorder %s25, 1
      %p195 = scmp.ne.s32.totalorder %s190, %s192
      %p196 = scmp.eq.s32.totalorder %s25, 0
      %p197 = por %p195, %p196
      %p198 = scmp.ne.s32.totalorder %s190, %s192
      %p199 = scmp.eq.s32.totalorder %s30, 1
      %p200 = por %p198, %p199
      %p201 = scmp.ne.s32.totalorder %s192, %s193
      %p202 = scmp.eq.s32.totalorder %s30, 0
      %p203 = por %p201, %p202
      %p204 = scmp.ne.s32.totalorder %s192, %s193
      %p205 = scmp.eq.s32.totalorder %s31, 1
      %p206 = por %p204, %p205
      %p208 = scmp.ne.s32.totalorder %s193, %s207
      %p209 = scmp.eq.s32.totalorder %s31, 0
      %p210 = por %p208, %p209
      %s212 = sadd.s32 %s211, 1
      %p215 = scmp.eq.s32.totalorder %s25, 1
      %p216 = scmp.ne.s32.totalorder %s211, %s213
      %p217 = scmp.eq.s32.totalorder %s25, 0
      %p218 = por %p216, %p217
      %p219 = scmp.ne.s32.totalorder %s211, %s213
      %p220 = scmp.eq.s32.totalorder %s30, 1
      %p221 = por %p219, %p220
      %p222 = scmp.ne.s32.totalorder %s213, %s214
      %p223 = scmp.eq.s32.totalorder %s30, 0
      %p224 = por %p222, %p223
      %p225 = scmp.ne.s32.totalorder %s213, %s214
      %p226 = scmp.eq.s32.totalorder %s31, 1
      %p227 = por %p225, %p226
      %p229 = scmp.ne.s32.totalorder %s214, %s228
      %p230 = scmp.eq.s32.totalorder %s31, 0
      %p231 = por %p229, %p230
      %s233 = sadd.s32 %s232, 1
      %p236 = scmp.eq.s32.totalorder %s25, 1
      %p237 = scmp.ne.s32.totalorder %s232, %s234
      %p238 = scmp.eq.s32.totalorder %s25, 0
      %p239 = por %p237, %p238
      %p240 = scmp.ne.s32.totalorder %s232, %s234
      %p241 = scmp.eq.s32.totalorder %s30, 1
      %p242 = por %p240, %p241
      %p243 = scmp.ne.s32.totalorder %s234, %s235
      %p244 = scmp.eq.s32.totalorder %s30, 0
      %p245 = por %p243, %p244
      %p246 = scmp.ne.s32.totalorder %s234, %s235
      %p247 = scmp.eq.s32.totalorder %s31, 1
      %p248 = por %p246, %p247
      %p250 = scmp.ne.s32.totalorder %s235, %s249
      %p251 = scmp.eq.s32.totalorder %s31, 0
      %p252 = por %p250, %p251
      %s254 = sadd.s32 %s253, 1
      %p257 = scmp.eq.s32.totalorder %s25, 1
      %p258 = scmp.ne.s32.totalorder %s253, %s255
      %p259 = scmp.eq.s32.totalorder %s25, 0
      %p260 = por %p258, %p259
      %p261 = scmp.ne.s32.totalorder %s253, %s255
      %p262 = scmp.eq.s32.totalorder %s30, 1
      %p263 = por %p261, %p262
      %p264 = scmp.ne.s32.totalorder %s255, %s256
      %p265 = scmp.eq.s32.totalorder %s30, 0
      %p266 = por %p264, %p265
      %p267 = scmp.ne.s32.totalorder %s255, %s256
      %p268 = scmp.eq.s32.totalorder %s31, 1
      %p269 = por %p267, %p268
      %p271 = scmp.ne.s32.totalorder %s256, %s270
      %p272 = scmp.eq.s32.totalorder %s31, 0
      %p273 = por %p271, %p272
      %s275 = sadd.s32 %s274, 1
      %p278 = scmp.eq.s32.totalorder %s25, 1
      %p279 = scmp.ne.s32.totalorder %s274, %s276
      %p280 = scmp.eq.s32.totalorder %s25, 0
      %p281 = por %p279, %p280
      %p282 = scmp.ne.s32.totalorder %s274, %s276
      %p283 = scmp.eq.s32.totalorder %s30, 1
      %p284 = por %p282, %p283
      %p285 = scmp.ne.s32.totalorder %s276, %s277
      %p286 = scmp.eq.s32.totalorder %s30, 0
      %p287 = por %p285, %p286
      %p288 = scmp.ne.s32.totalorder %s276, %s277
      %p289 = scmp.eq.s32.totalorder %s31, 1
      %p290 = por %p288, %p289
      %p292 = scmp.ne.s32.totalorder %s277, %s291
      %p293 = scmp.eq.s32.totalorder %s31, 0
      %p294 = por %p292, %p293
      %s296 = sadd.s32 %s295, 1
      %p299 = scmp.eq.s32.totalorder %s25, 1
      %p300 = scmp.ne.s32.totalorder %s295, %s297
      %p301 = scmp.eq.s32.totalorder %s25, 0
      %p302 = por %p300, %p301
      %p303 = scmp.ne.s32.totalorder %s295, %s297
      %p304 = scmp.eq.s32.totalorder %s30, 1
      %p305 = por %p303, %p304
      %p306 = scmp.ne.s32.totalorder %s297, %s298
      %p307 = scmp.eq.s32.totalorder %s30, 0
      %p308 = por %p306, %p307
      %p309 = scmp.ne.s32.totalorder %s297, %s298
      %p310 = scmp.eq.s32.totalorder %s31, 1
      %p311 = por %p309, %p310
      %p313 = scmp.ne.s32.totalorder %s298, %s312
      %p314 = scmp.eq.s32.totalorder %s31, 0
      %p315 = por %p313, %p314
      %s317 = sadd.s32 %s316, 1
      %p320 = scmp.eq.s32.totalorder %s25, 1
      %p321 = scmp.ne.s32.totalorder %s316, %s318
      %p322 = scmp.eq.s32.totalorder %s25, 0
      %p323 = por %p321, %p322
      %p324 = scmp.ne.s32.totalorder %s316, %s318
      %p325 = scmp.eq.s32.totalorder %s30, 1
      %p326 = por %p324, %p325
      %p327 = scmp.ne.s32.totalorder %s318, %s319
      %p328 = scmp.eq.s32.totalorder %s30, 0
      %p329 = por %p327, %p328
      %p330 = scmp.ne.s32.totalorder %s318, %s319
      %p331 = scmp.eq.s32.totalorder %s31, 1
      %p332 = por %p330, %p331
      %p334 = scmp.ne.s32.totalorder %s319, %s333
      %p335 = scmp.eq.s32.totalorder %s31, 0
      %p336 = por %p334, %p335
      %s338 = sadd.s32 %s337, 1
      %p341 = scmp.eq.s32.totalorder %s25, 1
      %p342 = scmp.ne.s32.totalorder %s337, %s339
      %p343 = scmp.eq.s32.totalorder %s25, 0
      %p344 = por %p342, %p343
      %p345 = scmp.ne.s32.totalorder %s337, %s339
      %p346 = scmp.eq.s32.totalorder %s30, 1
      %p347 = por %p345, %p346
      %p348 = scmp.ne.s32.totalorder %s339, %s340
      %p349 = scmp.eq.s32.totalorder %s30, 0
      %p350 = por %p348, %p349
      %p351 = scmp.ne.s32.totalorder %s339, %s340
      %p352 = scmp.eq.s32.totalorder %s31, 1
      %p353 = por %p351, %p352
      %p355 = scmp.ne.s32.totalorder %s340, %s354
      %p356 = scmp.eq.s32.totalorder %s31, 0
      %p357 = por %p355, %p356
      %s359 = sadd.s32 %s358, 1
      %p362 = scmp.eq.s32.totalorder %s25, 1
      %p363 = scmp.ne.s32.totalorder %s358, %s360
      %p364 = scmp.eq.s32.totalorder %s25, 0
      %p365 = por %p363, %p364
      %p366 = scmp.ne.s32.totalorder %s358, %s360
      %p367 = scmp.eq.s32.totalorder %s30, 1
      %p368 = por %p366, %p367
      %p369 = scmp.ne.s32.totalorder %s360, %s361
      %p370 = scmp.eq.s32.totalorder %s30, 0
      %p371 = por %p369, %p370
      %p372 = scmp.ne.s32.totalorder %s360, %s361
      %p373 = scmp.eq.s32.totalorder %s31, 1
      %p374 = por %p372, %p373
      %p376 = scmp.ne.s32.totalorder %s361, %s375
      %p377 = scmp.eq.s32.totalorder %s31, 0
      %p378 = por %p376, %p377
      %s380 = sadd.s32 %s379, 1
      %p383 = scmp.eq.s32.totalorder %s25, 1
      %p384 = scmp.ne.s32.totalorder %s379, %s381
      %p385 = scmp.eq.s32.totalorder %s25, 0
      %p386 = por %p384, %p385
      %p387 = scmp.ne.s32.totalorder %s379, %s381
      %p388 = scmp.eq.s32.totalorder %s30, 1
      %p389 = por %p387, %p388
      %p390 = scmp.ne.s32.totalorder %s381, %s382
      %p391 = scmp.eq.s32.totalorder %s30, 0
      %p392 = por %p390, %p391
      %p393 = scmp.ne.s32.totalorder %s381, %s382
      %p394 = scmp.eq.s32.totalorder %s31, 1
      %p395 = por %p393, %p394
      %p397 = scmp.ne.s32.totalorder %s382, %s396
      %p398 = scmp.eq.s32.totalorder %s31, 0
      %p399 = por %p397, %p398
      %s400 = ssub.s32 %s25, %s32
      %p401 = scmp.eq.s32.totalorder %s400, 0
      %s403 = sadd.s32 %s402, 1
      %s404 = scalar_select %p401, %s402, %s403
      %p407 = pneg %p401
      %p408 = scmp.eq.s32.totalorder %s25, 1
      %p409 = por %p407, %p408
      %p410 = scmp.ne.s32.totalorder %s402, %s405
      %p411 = scmp.eq.s32.totalorder %s25, 0
      %p412 = por %p410, %p411
      %p413 = scmp.ne.s32.totalorder %s402, %s405
      %p414 = scmp.eq.s32.totalorder %s30, 1
      %p415 = por %p413, %p414
      %p416 = scmp.ne.s32.totalorder %s405, %s406
      %p417 = scmp.eq.s32.totalorder %s30, 0
      %p418 = por %p416, %p417
      %p419 = scmp.ne.s32.totalorder %s405, %s406
      %p420 = scmp.eq.s32.totalorder %s31, 1
      %p421 = por %p419, %p420
      %p423 = scmp.ne.s32.totalorder %s406, %s422
      %p424 = scmp.eq.s32.totalorder %s31, 0
      %p425 = por %p423, %p424
      %p426 = scmp.le.s32.totalorder 1, %s25
      %p427 = scmp.lt.s32.totalorder %s25, 3
      %p428 = pnand %p426, %p427
      %p429 = pneg %p428
      // Predicated region
      $region9: #{_lambda_.2} parent=5 // pred_check
        _
      $region10: #{_lambda_.2} parent=5 // pred_check_branch
        %431 = sbr.rel (%p428) target = $region12
      $region11: #{_lambda_.2} parent=5 // pred_region
        %s432 = ssub.s32 %s25, 1
        // Predicated region
        $region13: #{_lambda_.2} parent=11 // pred_check
          %p433 = pneg %p98
        $region14: #{_lambda_.2} parent=11 // pred_check_branch
          %435 = sbr.rel (%p433) target = $region16
        $region15: #{_lambda_.2} parent=11 // pred_region
          _
        $region16: #{_lambda_.2} parent=11 // pred_fallthru
          _
        // Predicated region
        $region17: #{_lambda_.2} parent=11 // pred_check
          %p436 = pneg %p119
        $region18: #{_lambda_.2} parent=11 // pred_check_branch
          %438 = sbr.rel (%p436) target = $region20
        $region19: #{_lambda_.2} parent=11 // pred_region
          _
        $region20: #{_lambda_.2} parent=11 // pred_fallthru
          _
        // Predicated region
        $region21: #{_lambda_.2} parent=11 // pred_check
          %p439 = pneg %p140
        $region22: #{_lambda_.2} parent=11 // pred_check_branch
          %441 = sbr.rel (%p439) target = $region24
        $region23: #{_lambda_.2} parent=11 // pred_region
          _
        $region24: #{_lambda_.2} parent=11 // pred_fallthru
          _
        // Predicated region
        $region25: #{_lambda_.2} parent=11 // pred_check
          %p442 = pneg %p161
        $region26: #{_lambda_.2} parent=11 // pred_check_branch
          %444 = sbr.rel (%p442) target = $region28
        $region27: #{_lambda_.2} parent=11 // pred_region
          _
        $region28: #{_lambda_.2} parent=11 // pred_fallthru
          _
        // Predicated region
        $region29: #{_lambda_.2} parent=11 // pred_check
          %p445 = pneg %p182
        $region30: #{_lambda_.2} parent=11 // pred_check_branch
          %447 = sbr.rel (%p445) target = $region32
        $region31: #{_lambda_.2} parent=11 // pred_region
          _
        $region32: #{_lambda_.2} parent=11 // pred_fallthru
          _
        // Predicated region
        $region33: #{_lambda_.2} parent=11 // pred_check
          %p448 = pneg %p203
        $region34: #{_lambda_.2} parent=11 // pred_check_branch
          %450 = sbr.rel (%p448) target = $region36
        $region35: #{_lambda_.2} parent=11 // pred_region
          %452 = vsyncadd [#allocation3], 0
          %s453 = sshll.u32 %s7, 4
          %s454 = int_to_ptr.hbm [resolvable:$true] %s453
          %s455 = sshll.u32 [#allocation2], 4
          %s456 = int_to_ptr.vmem [resolvable:$true] %s455
          %461 = dma.hbm_to_vmem [thread:$0]  %s454, 3072, %s456, [#allocation3], 64, 64, 4
        $region36: #{_lambda_.2} parent=11 // pred_fallthru
          _
        // Predicated region
        $region37: #{_lambda_.2} parent=11 // pred_check
          %p462 = pneg %p224
        $region38: #{_lambda_.2} parent=11 // pred_check_branch
          %464 = sbr.rel (%p462) target = $region40
        $region39: #{_lambda_.2} parent=11 // pred_region
          _
        $region40: #{_lambda_.2} parent=11 // pred_fallthru
          _
        // Predicated region
        $region41: #{_lambda_.2} parent=11 // pred_check
          %p465 = pneg %p245
        $region42: #{_lambda_.2} parent=11 // pred_check_branch
          %467 = sbr.rel (%p465) target = $region44
        $region43: #{_lambda_.2} parent=11 // pred_region
          _
        $region44: #{_lambda_.2} parent=11 // pred_fallthru
          _
        // Predicated region
        $region45: #{_lambda_.2} parent=11 // pred_check
          %p468 = pneg %p266
        $region46: #{_lambda_.2} parent=11 // pred_check_branch
          %470 = sbr.rel (%p468) target = $region48
        $region47: #{_lambda_.2} parent=11 // pred_region
          _
        $region48: #{_lambda_.2} parent=11 // pred_fallthru
          _
        // Predicated region
        $region49: #{_lambda_.2} parent=11 // pred_check
          %p471 = pneg %p287
        $region50: #{_lambda_.2} parent=11 // pred_check_branch
          %473 = sbr.rel (%p471) target = $region52
        $region51: #{_lambda_.2} parent=11 // pred_region
          %475 = vsyncadd [#allocation5], 0
          %s476 = sshll.u32 %s11, 4
          %s477 = int_to_ptr.hbm [resolvable:$true] %s476
          %s478 = sshll.u32 [#allocation4], 4
          %s479 = int_to_ptr.vmem [resolvable:$true] %s478
          %484 = dma.hbm_to_vmem [thread:$0]  %s477, 3072, %s479, [#allocation5], 64, 64, 4
        $region52: #{_lambda_.2} parent=11 // pred_fallthru
          _
        // Predicated region
        $region53: #{_lambda_.2} parent=11 // pred_check
          %p485 = pneg %p308
        $region54: #{_lambda_.2} parent=11 // pred_check_branch
          %487 = sbr.rel (%p485) target = $region56
        $region55: #{_lambda_.2} parent=11 // pred_region
          _
        $region56: #{_lambda_.2} parent=11 // pred_fallthru
          _
        // Predicated region
        $region57: #{_lambda_.2} parent=11 // pred_check
          %p488 = pneg %p329
        $region58: #{_lambda_.2} parent=11 // pred_check_branch
          %490 = sbr.rel (%p488) target = $region60
        $region59: #{_lambda_.2} parent=11 // pred_region
          _
        $region60: #{_lambda_.2} parent=11 // pred_fallthru
          _
        // Predicated region
        $region61: #{_lambda_.2} parent=11 // pred_check
          %p491 = pneg %p350
        $region62: #{_lambda_.2} parent=11 // pred_check_branch
          %493 = sbr.rel (%p491) target = $region64
        $region63: #{_lambda_.2} parent=11 // pred_region
          _
        $region64: #{_lambda_.2} parent=11 // pred_fallthru
          _
        // Predicated region
        $region65: #{_lambda_.2} parent=11 // pred_check
          %p494 = pneg %p371
        $region66: #{_lambda_.2} parent=11 // pred_check_branch
          %496 = sbr.rel (%p494) target = $region68
        $region67: #{_lambda_.2} parent=11 // pred_region
          _
        $region68: #{_lambda_.2} parent=11 // pred_fallthru
          _
        // Predicated region
        $region69: #{_lambda_.2} parent=11 // pred_check
          %p497 = pneg %p392
        $region70: #{_lambda_.2} parent=11 // pred_check_branch
          %499 = sbr.rel (%p497) target = $region72
        $region71: #{_lambda_.2} parent=11 // pred_region
          _
        $region72: #{_lambda_.2} parent=11 // pred_fallthru
          _
      $region12: #{_lambda_.2} parent=5 // pred_fallthru
        _
      %p500 = scmp.lt.s32.totalorder %s25, 2
      // Predicated region
      $region73: #{_lambda_.2} parent=5 // pred_check
        %p501 = pneg %p500
      $region74: #{_lambda_.2} parent=5 // pred_check_branch
        %503 = sbr.rel (%p501) target = $region76
      $region75: #{_lambda_.2} parent=5 // pred_region
        // Predicated region
        $region77: #{_lambda_.2} parent=75 // pred_check
          %p504 = pneg %p45
        $region78: #{_lambda_.2} parent=75 // pred_check_branch
          %506 = sbr.rel (%p504) target = $region80
        $region79: #{_lambda_.2} parent=75 // pred_region
          %p507 = scmp.lt.s32.totalorder %s25, 1
          %s508 = scalar_select %p507, %s25, 1
          %s509 = smul.addr %s508, 4
          %s510 = scalar_lea.vmem %s0, %s509
        $region80: #{_lambda_.2} parent=75 // pred_fallthru
          _
        // Predicated region
        $region81: #{_lambda_.2} parent=75 // pred_check
          %p511 = pneg %p71
        $region82: #{_lambda_.2} parent=75 // pred_check_branch
          %513 = sbr.rel (%p511) target = $region84
        $region83: #{_lambda_.2} parent=75 // pred_region
          %p514 = scmp.lt.s32.totalorder %s25, 1
          %s515 = scalar_select %p514, %s25, 1
          %s516 = smul.addr %s515, 4
          %s517 = scalar_lea.vmem %s1, %s516
        $region84: #{_lambda_.2} parent=75 // pred_fallthru
          _
      $region76: #{_lambda_.2} parent=5 // pred_fallthru
        _
      %p518 = scmp.le.s32.totalorder 1, %s25
      %p519 = scmp.lt.s32.totalorder %s25, 3
      %p520 = pnand %p518, %p519
      %p521 = pneg %p520
      // Predicated region
      $region85: #{_lambda_.2} parent=5 // pred_check
        _
      $region86: #{_lambda_.2} parent=5 // pred_check_branch
        %523 = sbr.rel (%p520) target = $region88
      $region87: #{_lambda_.2} parent=5 // pred_region
        %s524 = ssub.s32 %s25, 1
        // Predicated region
        $region89: #{_lambda_.2} parent=87 // pred_check
          %p525 = pneg %p203
        $region90: #{_lambda_.2} parent=87 // pred_check_branch
          %527 = sbr.rel (%p525) target = $region92
        $region91: #{_lambda_.2} parent=87 // pred_region
          %529 = dma.done [#allocation3], 3072
        $region92: #{_lambda_.2} parent=87 // pred_fallthru
          _
        // Predicated region
        $region93: #{_lambda_.2} parent=87 // pred_check
          %p530 = pneg %p287
        $region94: #{_lambda_.2} parent=87 // pred_check_branch
          %532 = sbr.rel (%p530) target = $region96
        $region95: #{_lambda_.2} parent=87 // pred_region
          %534 = dma.done [#allocation5], 3072
        $region96: #{_lambda_.2} parent=87 // pred_fallthru
          _
        %p535 = scmp.lt.s32.totalorder %s30, 1
        %s536 = scalar_select %p535, %s30, 1
        %s537 = smul.addr %s536, 4
        %s538 = scalar_lea.vmem %s0, %s537
        %p539 = pneg %p51
        %p540 = pneg %p48
        %p541 = scmp.lt.s32.totalorder %s30, 1
        %s542 = scalar_select %p541, %s30, 1
        %s543 = smul.addr %s542, 4
        %s544 = scalar_lea.vmem %s1, %s543
        %p545 = pneg %p77
        %p546 = pneg %p74
        %p547 = pneg %p98
        %p548 = pneg %p95
        %p549 = pneg %p119
        %p550 = pneg %p116
        %p551 = pneg %p140
        %p552 = pneg %p137
        %p553 = pneg %p161
        %p554 = pneg %p158
        %p555 = pneg %p182
        %p556 = pneg %p179
        %p557 = pneg %p203
        %p558 = pneg %p200
        %p559 = pneg %p224
        %p560 = pneg %p221
        %p561 = pneg %p245
        %p562 = pneg %p242
        %p563 = pneg %p266
        %p564 = pneg %p263
        %p565 = pneg %p287
        %p566 = pneg %p284
        %p567 = pneg %p308
        %p568 = pneg %p305
        %p569 = pneg %p329
        %p570 = pneg %p326
        %p571 = pneg %p350
        %p572 = pneg %p347
        %p573 = pneg %p371
        %p574 = pneg %p368
        %p575 = pneg %p392
        %p576 = pneg %p389
        %p577 = pneg %p418
        %p578 = pneg %p415
        %p579 = scmp.lt.s32.totalorder %s30, 1
        %s580 = scalar_select %p579, %s30, 1
        %s581 = smul.addr %s580, 4
        %s582 = scalar_lea.vmem %s17, %s581
        %p583 = scmp.lt.s32.totalorder %s30, 1
        %s584 = scalar_select %p583, %s30, 1
        %s585 = smul.addr %s584, 4
        %s586 = scalar_lea.vmem %s0, %s585
        %p587 = scmp.lt.s32.totalorder %s30, 1
        %s588 = scalar_select %p587, %s30, 1
        %s589 = smul.addr %s588, 4
        %s590 = scalar_lea.vmem %s1, %s589
        %p591 = scmp.lt.s32.totalorder %s30, 1
        %s592 = scalar_select %p591, %s30, 1
        %s593 = smul.addr %s592, 4
        %s594 = scalar_lea.vmem %s17, %s593
        %v596 = vld [vmem:[%s586] sm:$0xf]
        %v597 = vld [vmem:[%s590] sm:$0xf]
        %v598 = vld [vmem:[%s4] sm:$0xf]
        %v599 = vld [vmem:[%s4 + $0x4] sm:$0xf]
        %v600 = vld [vmem:[%s4 + $0x8] sm:$0xf]
        %v601 = vld [vmem:[%s4 + $0xc] sm:$0xf]
        %v606 = vunpack.c.l.b16 %v598
        %v607 = vunpack.c.l.b16 %v599
        %v608 = vunpack.c.l.b16 %v600
        %v609 = vunpack.c.l.b16 %v601
        %v610 = vpack.c.b16 %v607, %v606
        %v611 = vpack.c.b16 %v609, %v608
        %vm614 = vcmask 261120
        %v616 = vsel %vm614, %v596, 0
        %618 = vmatpush.bf16.msra.mxu0 0
        %619 = vmatpush.bf16.msra.mxu0 0
        %620 = vmatpush.bf16.msra.mxu0 0
        %621 = vmatpush.bf16.msra.mxu0 0
        %622 = vmatpush.bf16.msra.mxu0 0
        %623 = vmatpush.bf16.msra.mxu0 0
        %624 = vmatpush.bf16.msra.mxu0 %v611
        %625 = vmatpush.bf16.msra.mxu0 %v610
        %626 = vmatmul.bf16.gmra.mxu0 %v616
        %v627 = vpop.f32.mrf.mxu0
        %v628 = vadd.f32 0.0, %v627
        %v629 = vpop.f32.mrf.mxu0
        %630 = vdwg.mxu0
        %v631 = vld [vmem:[%s2] sm:$0xff]
        %s632 = scalar_lea.vmem %s4, 16
        %v633 = vld [vmem:[%s632] sm:$0xf]
        %v634 = vld [vmem:[%s632 + $0x4] sm:$0xf]
        %v635 = vld [vmem:[%s632 + $0x8] sm:$0xf]
        %v636 = vld [vmem:[%s632 + $0xc] sm:$0xf]
        %v641 = vunpack.c.l.b16 %v633
        %v642 = vunpack.c.l.b16 %v634
        %v643 = vunpack.c.l.b16 %v635
        %v644 = vunpack.c.l.b16 %v636
        %v645 = vpack.c.b16 %v642, %v641
        %v646 = vpack.c.b16 %v644, %v643
        %649 = vmatpush.bf16.msra.mxu0 0
        %650 = vmatpush.bf16.msra.mxu0 0
        %651 = vmatpush.bf16.msra.mxu0 0
        %652 = vmatpush.bf16.msra.mxu0 0
        %653 = vmatpush.bf16.msra.mxu0 0
        %654 = vmatpush.bf16.msra.mxu0 0
        %655 = vmatpush.bf16.msra.mxu0 %v646
        %656 = vmatpush.bf16.msra.mxu0 %v645
        %657 = vmatmul.bf16.gmra.mxu0 %v616
        %v658 = vpop.f32.mrf.mxu0
        %v659 = vadd.f32 0.0, %v658
        %v660 = vpop.f32.mrf.mxu0
        %661 = vdwg.mxu0
        %s662 = scalar_lea.vmem %s2, 8
        %v663 = vld [vmem:[%s662] sm:$0xff]
        %vm664 = vcmask 64512
        %v666 = vsel %vm664, %v663, 0
        %668 = vmatpush.msra.mxu0 0.0
        %669 = vmatpush.msra.mxu0 0.0
        %670 = vmatpush.msra.mxu0 0.0
        %671 = vmatpush.msra.mxu0 0.0
        %672 = vmatpush.msra.mxu0 0.0
        %673 = vmatpush.msra.mxu0 0.0
        %674 = vmatpush.msra.mxu0 0.0
        %675 = vmatpush.msra.mxu0 0.0
        %676 = vmatpush.msra.mxu0 0.0
        %677 = vmatpush.msra.mxu0 0.0
        %678 = vmatpush.msra.mxu0 0.0
        %679 = vmatpush.msra.mxu0 0.0
        %680 = vmatpush.msra.mxu0 0.0
        %681 = vmatpush.msra.mxu0 0.0
        %682 = vmatpush.msra.mxu0 0.0
        %683 = vmatpush.msra.mxu0 %v659
        %684 = vmatmul.f32.gmra.mxu0 %v666
        %v685 = vpop.f32.mrf.mxu0
        %v686 = vadd.f32 0.0, %v685
        %687 = vdwg.mxu0
        %v689 = vsel %vm664, %v631, 0
        %691 = vmatpush.msra.mxu0 0.0
        %692 = vmatpush.msra.mxu0 0.0
        %693 = vmatpush.msra.mxu0 0.0
        %694 = vmatpush.msra.mxu0 0.0
        %695 = vmatpush.msra.mxu0 0.0
        %696 = vmatpush.msra.mxu0 0.0
        %697 = vmatpush.msra.mxu0 0.0
        %698 = vmatpush.msra.mxu0 0.0
        %699 = vmatpush.msra.mxu0 0.0
        %700 = vmatpush.msra.mxu0 0.0
        %701 = vmatpush.msra.mxu0 0.0
        %702 = vmatpush.msra.mxu0 0.0
        %703 = vmatpush.msra.mxu0 0.0
        %704 = vmatpush.msra.mxu0 0.0
        %705 = vmatpush.msra.mxu0 0.0
        %706 = vmatpush.msra.mxu0 %v628
        %707 = vmatmul.f32.gmra.mxu0 %v689
        %v708 = vpop.f32.mrf.mxu0
        %v709 = vadd.f32 %v686, %v708
        %710 = vdwg.mxu0
        %s711 = scalar_lea.vmem %s4, 32
        %v712 = vld [vmem:[%s711] sm:$0xf]
        %v713 = vld [vmem:[%s711 + $0x4] sm:$0xf]
        %v714 = vld [vmem:[%s711 + $0x8] sm:$0xf]
        %v715 = vld [vmem:[%s711 + $0xc] sm:$0xf]
        %v720 = vunpack.c.l.b16 %v712
        %v721 = vunpack.c.l.b16 %v713
        %v722 = vunpack.c.l.b16 %v714
        %v723 = vunpack.c.l.b16 %v715
        %v724 = vpack.c.b16 %v721, %v720
        %v725 = vpack.c.b16 %v723, %v722
        %728 = vmatpush.bf16.msra.mxu0 0
        %729 = vmatpush.bf16.msra.mxu0 0
        %730 = vmatpush.bf16.msra.mxu0 0
        %731 = vmatpush.bf16.msra.mxu0 0
        %732 = vmatpush.bf16.msra.mxu0 0
        %733 = vmatpush.bf16.msra.mxu0 0
        %734 = vmatpush.bf16.msra.mxu0 %v725
        %735 = vmatpush.bf16.msra.mxu0 %v724
        %736 = vmatmul.bf16.gmra.mxu0 %v616
        %v737 = vpop.f32.mrf.mxu0
        %v738 = vadd.f32 0.0, %v737
        %v739 = vpop.f32.mrf.mxu0
        %740 = vdwg.mxu0
        %s741 = scalar_lea.vmem %s2, 16
        %v742 = vld [vmem:[%s741] sm:$0xff]
        %v744 = vsel %vm664, %v742, 0
        %746 = vmatpush.msra.mxu0 0.0
        %747 = vmatpush.msra.mxu0 0.0
        %748 = vmatpush.msra.mxu0 0.0
        %749 = vmatpush.msra.mxu0 0.0
        %750 = vmatpush.msra.mxu0 0.0
        %751 = vmatpush.msra.mxu0 0.0
        %752 = vmatpush.msra.mxu0 0.0
        %753 = vmatpush.msra.mxu0 0.0
        %754 = vmatpush.msra.mxu0 0.0
        %755 = vmatpush.msra.mxu0 0.0
        %756 = vmatpush.msra.mxu0 0.0
        %757 = vmatpush.msra.mxu0 0.0
        %758 = vmatpush.msra.mxu0 0.0
        %759 = vmatpush.msra.mxu0 0.0
        %760 = vmatpush.msra.mxu0 0.0
        %761 = vmatpush.msra.mxu0 %v738
        %762 = vmatmul.f32.gmra.mxu0 %v744
        %v763 = vpop.f32.mrf.mxu0
        %v764 = vadd.f32 0.0, %v763
        %765 = vdwg.mxu0
        %v766 = vadd.f32 %v709, %v764
        %v767 = vld [vmem:[%s5] sm:$0x1]
        %v769 = vperm.slane %v767, 0
        %v771 = vmul.f32 %v766, %v769
        %v772 = vld [vmem:[%s6] sm:$0x1]
        %v774 = vperm.slane %v772, 0
        %v776 = vadd.f32 %v771, %v774
        %v777 = vmax.f32 %v776, 0.0
        %v778 = vpack.c.bf16 %v777, %v777
        %v779 = vld [vmem:[%s16] sm:$0x1]
        %v780 = vld [vmem:[%s14] sm:$0xf]
        %v781 = vld [vmem:[%s14 + $0x4] sm:$0xf]
        %v782 = vld [vmem:[%s14 + $0x8] sm:$0xf]
        %v783 = vld [vmem:[%s14 + $0xc] sm:$0xf]
        %v784 = vld [vmem:[%s14 + $0x10] sm:$0xf]
        %v785 = vld [vmem:[%s14 + $0x14] sm:$0xf]
        %v786 = vld [vmem:[%s14 + $0x18] sm:$0xf]
        %v787 = vld [vmem:[%s14 + $0x1c] sm:$0xf]
        %v788 = vld [vmem:[%s14 + $0x20] sm:$0xf]
        %v789 = vld [vmem:[%s14 + $0x24] sm:$0xf]
        %v790 = vld [vmem:[%s14 + $0x28] sm:$0xf]
        %v791 = vld [vmem:[%s14 + $0x2c] sm:$0xf]
        %v792 = vld [vmem:[%s14 + $0x30] sm:$0xf]
        %v793 = vld [vmem:[%s14 + $0x34] sm:$0xf]
        %v794 = vld [vmem:[%s14 + $0x38] sm:$0xf]
        %v795 = vld [vmem:[%s14 + $0x3c] sm:$0xf]
        %v812 = vunpack.c.l.b16 %v780
        %v813 = vunpack.c.l.b16 %v781
        %v814 = vunpack.c.l.b16 %v782
        %v815 = vunpack.c.l.b16 %v783
        %v816 = vunpack.c.l.b16 %v784
        %v817 = vunpack.c.l.b16 %v785
        %v818 = vunpack.c.l.b16 %v786
        %v819 = vunpack.c.l.b16 %v787
        %v820 = vunpack.c.l.b16 %v788
        %v821 = vunpack.c.l.b16 %v789
        %v822 = vunpack.c.l.b16 %v790
        %v823 = vunpack.c.l.b16 %v791
        %v824 = vunpack.c.l.b16 %v792
        %v825 = vunpack.c.l.b16 %v793
        %v826 = vunpack.c.l.b16 %v794
        %v827 = vunpack.c.l.b16 %v795
        %v828 = vpack.c.b16 %v813, %v812
        %v829 = vpack.c.b16 %v815, %v814
        %v830 = vpack.c.b16 %v817, %v816
        %v831 = vpack.c.b16 %v819, %v818
        %v832 = vpack.c.b16 %v821, %v820
        %v833 = vpack.c.b16 %v823, %v822
        %v834 = vpack.c.b16 %v825, %v824
        %v835 = vpack.c.b16 %v827, %v826
        %844 = vmatpush.bf16.msra.mxu0 %v835
        %845 = vmatpush.bf16.msra.mxu0 %v834
        %846 = vmatpush.bf16.msra.mxu0 %v833
        %847 = vmatpush.bf16.msra.mxu0 %v832
        %848 = vmatpush.bf16.msra.mxu0 %v831
        %849 = vmatpush.bf16.msra.mxu0 %v830
        %850 = vmatpush.bf16.msra.mxu0 %v829
        %851 = vmatpush.bf16.msra.mxu0 %v828
        %852 = vmatmul.bf16.gmra.mxu0 %v778
        %v853 = vpop.f32.mrf.mxu0
        %v854 = vadd.f32 0.0, %v853
        %v855 = vpop.f32.mrf.mxu0
        %856 = vdwg.mxu0
        %v858 = vperm.slane %v779, 0
        %v860 = vadd.f32 %v858, %v854
        %v861 = vld [vmem:[%s15] sm:$0xf]
        %v862 = vld [vmem:[%s15 + $0x4] sm:$0xf]
        %v863 = vld [vmem:[%s15 + $0x8] sm:$0xf]
        %v864 = vld [vmem:[%s15 + $0xc] sm:$0xf]
        %v869 = vunpack.c.l.b16 %v861
        %v870 = vunpack.c.l.b16 %v862
        %v871 = vunpack.c.l.b16 %v863
        %v872 = vunpack.c.l.b16 %v864
        %v873 = vpack.c.b16 %v870, %v869
        %v874 = vpack.c.b16 %v872, %v871
        %v878 = vsel %vm614, %v597, 0
        %880 = vmatpush.bf16.msra.mxu0 0
        %881 = vmatpush.bf16.msra.mxu0 0
        %882 = vmatpush.bf16.msra.mxu0 0
        %883 = vmatpush.bf16.msra.mxu0 0
        %884 = vmatpush.bf16.msra.mxu0 0
        %885 = vmatpush.bf16.msra.mxu0 0
        %886 = vmatpush.bf16.msra.mxu0 %v874
        %887 = vmatpush.bf16.msra.mxu0 %v873
        %888 = vmatmul.bf16.gmra.mxu0 %v878
        %v889 = vpop.f32.mrf.mxu0
        %v890 = vadd.f32 0.0, %v889
        %v891 = vpop.f32.mrf.mxu0
        %892 = vdwg.mxu0
        %v893 = vadd.f32 %v860, %v890
        %v894 = vld [vmem:[#allocation2] sm:$0xf]
        %v895 = vld [vmem:[#allocation2 + $0x4] sm:$0xf]
        %v896 = vld [vmem:[#allocation2 + $0x8] sm:$0xf]
        %v897 = vld [vmem:[#allocation2 + $0xc] sm:$0xf]
        %v898 = vld [vmem:[#allocation2 + $0x10] sm:$0xf]
        %v899 = vld [vmem:[#allocation2 + $0x14] sm:$0xf]
        %v900 = vld [vmem:[#allocation2 + $0x18] sm:$0xf]
        %v901 = vld [vmem:[#allocation2 + $0x1c] sm:$0xf]
        %v902 = vld [vmem:[#allocation2 + $0x20] sm:$0xf]
        %v903 = vld [vmem:[#allocation2 + $0x24] sm:$0xf]
        %v904 = vld [vmem:[#allocation2 + $0x28] sm:$0xf]
        %v905 = vld [vmem:[#allocation2 + $0x2c] sm:$0xf]
        %v906 = vld [vmem:[#allocation2 + $0x30] sm:$0xf]
        %v907 = vld [vmem:[#allocation2 + $0x34] sm:$0xf]
        %v908 = vld [vmem:[#allocation2 + $0x38] sm:$0xf]
        %v909 = vld [vmem:[#allocation2 + $0x3c] sm:$0xf]
        %v910 = vld [vmem:[%s8] sm:$0xf]
        %v911 = vld [vmem:[%s8 + $0x4] sm:$0xf]
        %v912 = vld [vmem:[%s8 + $0x8] sm:$0xf]
        %v913 = vld [vmem:[%s8 + $0xc] sm:$0xf]
        %v918 = vunpack.c.l.b16 %v910
        %v919 = vunpack.c.l.b16 %v911
        %v920 = vunpack.c.l.b16 %v912
        %v921 = vunpack.c.l.b16 %v913
        %v922 = vpack.c.b16 %v919, %v918
        %v923 = vpack.c.b16 %v921, %v920
        %926 = vmatpush.bf16.msra.mxu0 0
        %927 = vmatpush.bf16.msra.mxu0 0
        %928 = vmatpush.bf16.msra.mxu0 0
        %929 = vmatpush.bf16.msra.mxu0 0
        %930 = vmatpush.bf16.msra.mxu0 0
        %931 = vmatpush.bf16.msra.mxu0 0
        %932 = vmatpush.bf16.msra.mxu0 %v923
        %933 = vmatpush.bf16.msra.mxu0 %v922
        %934 = vmatmul.bf16.gmra.mxu0 %v878
        %v935 = vpop.f32.mrf.mxu0
        %v936 = vadd.f32 0.0, %v935
        %v937 = vpop.f32.mrf.mxu0
        %938 = vdwg.mxu0
        %v955 = vunpack.c.l.b16 %v894
        %v956 = vunpack.c.l.b16 %v895
        %v957 = vunpack.c.l.b16 %v896
        %v958 = vunpack.c.l.b16 %v897
        %v959 = vunpack.c.l.b16 %v898
        %v960 = vunpack.c.l.b16 %v899
        %v961 = vunpack.c.l.b16 %v900
        %v962 = vunpack.c.l.b16 %v901
        %v963 = vunpack.c.l.b16 %v902
        %v964 = vunpack.c.l.b16 %v903
        %v965 = vunpack.c.l.b16 %v904
        %v966 = vunpack.c.l.b16 %v905
        %v967 = vunpack.c.l.b16 %v906
        %v968 = vunpack.c.l.b16 %v907
        %v969 = vunpack.c.l.b16 %v908
        %v970 = vunpack.c.l.b16 %v909
        %v971 = vpack.c.b16 %v956, %v955
        %v972 = vpack.c.b16 %v958, %v957
        %v973 = vpack.c.b16 %v960, %v959
        %v974 = vpack.c.b16 %v962, %v961
        %v975 = vpack.c.b16 %v964, %v963
        %v976 = vpack.c.b16 %v966, %v965
        %v977 = vpack.c.b16 %v968, %v967
        %v978 = vpack.c.b16 %v970, %v969
        %987 = vmatpush.bf16.msra.mxu0 %v978
        %988 = vmatpush.bf16.msra.mxu0 %v977
        %989 = vmatpush.bf16.msra.mxu0 %v976
        %990 = vmatpush.bf16.msra.mxu0 %v975
        %991 = vmatpush.bf16.msra.mxu0 %v974
        %992 = vmatpush.bf16.msra.mxu0 %v973
        %993 = vmatpush.bf16.msra.mxu0 %v972
        %994 = vmatpush.bf16.msra.mxu0 %v971
        %995 = vmatmul.bf16.gmra.mxu0 %v778
        %v996 = vpop.f32.mrf.mxu0
        %v997 = vadd.f32 %v936, %v996
        %v998 = vpop.f32.mrf.mxu0
        %999 = vdwg.mxu0
        %v1000 = vld [vmem:[%s3] sm:$0xff]
        %s1001 = scalar_lea.vmem [#allocation2], 64
        %v1002 = vld [vmem:[%s1001] sm:$0xf]
        %v1003 = vld [vmem:[%s1001 + $0x4] sm:$0xf]
        %v1004 = vld [vmem:[%s1001 + $0x8] sm:$0xf]
        %v1005 = vld [vmem:[%s1001 + $0xc] sm:$0xf]
        %v1006 = vld [vmem:[%s1001 + $0x10] sm:$0xf]
        %v1007 = vld [vmem:[%s1001 + $0x14] sm:$0xf]
        %v1008 = vld [vmem:[%s1001 + $0x18] sm:$0xf]
        %v1009 = vld [vmem:[%s1001 + $0x1c] sm:$0xf]
        %v1010 = vld [vmem:[%s1001 + $0x20] sm:$0xf]
        %v1011 = vld [vmem:[%s1001 + $0x24] sm:$0xf]
        %v1012 = vld [vmem:[%s1001 + $0x28] sm:$0xf]
        %v1013 = vld [vmem:[%s1001 + $0x2c] sm:$0xf]
        %v1014 = vld [vmem:[%s1001 + $0x30] sm:$0xf]
        %v1015 = vld [vmem:[%s1001 + $0x34] sm:$0xf]
        %v1016 = vld [vmem:[%s1001 + $0x38] sm:$0xf]
        %v1017 = vld [vmem:[%s1001 + $0x3c] sm:$0xf]
        %s1018 = scalar_lea.vmem %s8, 16
        %v1019 = vld [vmem:[%s1018] sm:$0xf]
        %v1020 = vld [vmem:[%s1018 + $0x4] sm:$0xf]
        %v1021 = vld [vmem:[%s1018 + $0x8] sm:$0xf]
        %v1022 = vld [vmem:[%s1018 + $0xc] sm:$0xf]
        %v1027 = vunpack.c.l.b16 %v1019
        %v1028 = vunpack.c.l.b16 %v1020
        %v1029 = vunpack.c.l.b16 %v1021
        %v1030 = vunpack.c.l.b16 %v1022
        %v1031 = vpack.c.b16 %v1028, %v1027
        %v1032 = vpack.c.b16 %v1030, %v1029
        %1035 = vmatpush.bf16.msra.mxu0 0
        %1036 = vmatpush.bf16.msra.mxu0 0
        %1037 = vmatpush.bf16.msra.mxu0 0
        %1038 = vmatpush.bf16.msra.mxu0 0
        %1039 = vmatpush.bf16.msra.mxu0 0
        %1040 = vmatpush.bf16.msra.mxu0 0
        %1041 = vmatpush.bf16.msra.mxu0 %v1032
        %1042 = vmatpush.bf16.msra.mxu0 %v1031
        %1043 = vmatmul.bf16.gmra.mxu0 %v878
        %v1044 = vpop.f32.mrf.mxu0
        %v1045 = vadd.f32 0.0, %v1044
        %v1046 = vpop.f32.mrf.mxu0
        %1047 = vdwg.mxu0
        %v1064 = vunpack.c.l.b16 %v1002
        %v1065 = vunpack.c.l.b16 %v1003
        %v1066 = vunpack.c.l.b16 %v1004
        %v1067 = vunpack.c.l.b16 %v1005
        %v1068 = vunpack.c.l.b16 %v1006
        %v1069 = vunpack.c.l.b16 %v1007
        %v1070 = vunpack.c.l.b16 %v1008
        %v1071 = vunpack.c.l.b16 %v1009
        %v1072 = vunpack.c.l.b16 %v1010
        %v1073 = vunpack.c.l.b16 %v1011
        %v1074 = vunpack.c.l.b16 %v1012
        %v1075 = vunpack.c.l.b16 %v1013
        %v1076 = vunpack.c.l.b16 %v1014
        %v1077 = vunpack.c.l.b16 %v1015
        %v1078 = vunpack.c.l.b16 %v1016
        %v1079 = vunpack.c.l.b16 %v1017
        %v1080 = vpack.c.b16 %v1065, %v1064
        %v1081 = vpack.c.b16 %v1067, %v1066
        %v1082 = vpack.c.b16 %v1069, %v1068
        %v1083 = vpack.c.b16 %v1071, %v1070
        %v1084 = vpack.c.b16 %v1073, %v1072
        %v1085 = vpack.c.b16 %v1075, %v1074
        %v1086 = vpack.c.b16 %v1077, %v1076
        %v1087 = vpack.c.b16 %v1079, %v1078
        %1096 = vmatpush.bf16.msra.mxu0 %v1087
        %1097 = vmatpush.bf16.msra.mxu0 %v1086
        %1098 = vmatpush.bf16.msra.mxu0 %v1085
        %1099 = vmatpush.bf16.msra.mxu0 %v1084
        %1100 = vmatpush.bf16.msra.mxu0 %v1083
        %1101 = vmatpush.bf16.msra.mxu0 %v1082
        %1102 = vmatpush.bf16.msra.mxu0 %v1081
        %1103 = vmatpush.bf16.msra.mxu0 %v1080
        %1104 = vmatmul.bf16.gmra.mxu0 %v778
        %v1105 = vpop.f32.mrf.mxu0
        %v1106 = vadd.f32 %v1045, %v1105
        %v1107 = vpop.f32.mrf.mxu0
        %1108 = vdwg.mxu0
        %s1109 = scalar_lea.vmem %s3, 8
        %v1110 = vld [vmem:[%s1109] sm:$0xff]
        %v1112 = vsel %vm664, %v1110, 0
        %1114 = vmatpush.msra.mxu0 0.0
        %1115 = vmatpush.msra.mxu0 0.0
        %1116 = vmatpush.msra.mxu0 0.0
        %1117 = vmatpush.msra.mxu0 0.0
        %1118 = vmatpush.msra.mxu0 0.0
        %1119 = vmatpush.msra.mxu0 0.0
        %1120 = vmatpush.msra.mxu0 0.0
        %1121 = vmatpush.msra.mxu0 0.0
        %1122 = vmatpush.msra.mxu0 0.0
        %1123 = vmatpush.msra.mxu0 0.0
        %1124 = vmatpush.msra.mxu0 0.0
        %1125 = vmatpush.msra.mxu0 0.0
        %1126 = vmatpush.msra.mxu0 0.0
        %1127 = vmatpush.msra.mxu0 0.0
        %1128 = vmatpush.msra.mxu0 0.0
        %1129 = vmatpush.msra.mxu0 %v1106
        %1130 = vmatmul.f32.gmra.mxu0 %v1112
        %v1131 = vpop.f32.mrf.mxu0
        %v1132 = vadd.f32 0.0, %v1131
        %1133 = vdwg.mxu0
        %v1135 = vsel %vm664, %v1000, 0
        %1137 = vmatpush.msra.mxu0 0.0
        %1138 = vmatpush.msra.mxu0 0.0
        %1139 = vmatpush.msra.mxu0 0.0
        %1140 = vmatpush.msra.mxu0 0.0
        %1141 = vmatpush.msra.mxu0 0.0
        %1142 = vmatpush.msra.mxu0 0.0
        %1143 = vmatpush.msra.mxu0 0.0
        %1144 = vmatpush.msra.mxu0 0.0
        %1145 = vmatpush.msra.mxu0 0.0
        %1146 = vmatpush.msra.mxu0 0.0
        %1147 = vmatpush.msra.mxu0 0.0
        %1148 = vmatpush.msra.mxu0 0.0
        %1149 = vmatpush.msra.mxu0 0.0
        %1150 = vmatpush.msra.mxu0 0.0
        %1151 = vmatpush.msra.mxu0 0.0
        %1152 = vmatpush.msra.mxu0 %v997
        %1153 = vmatmul.f32.gmra.mxu0 %v1135
        %v1154 = vpop.f32.mrf.mxu0
        %v1155 = vadd.f32 %v1132, %v1154
        %1156 = vdwg.mxu0
        %s1157 = scalar_lea.vmem [#allocation2], 128
        %v1158 = vld [vmem:[%s1157] sm:$0xf]
        %v1159 = vld [vmem:[%s1157 + $0x4] sm:$0xf]
        %v1160 = vld [vmem:[%s1157 + $0x8] sm:$0xf]
        %v1161 = vld [vmem:[%s1157 + $0xc] sm:$0xf]
        %v1162 = vld [vmem:[%s1157 + $0x10] sm:$0xf]
        %v1163 = vld [vmem:[%s1157 + $0x14] sm:$0xf]
        %v1164 = vld [vmem:[%s1157 + $0x18] sm:$0xf]
        %v1165 = vld [vmem:[%s1157 + $0x1c] sm:$0xf]
        %v1166 = vld [vmem:[%s1157 + $0x20] sm:$0xf]
        %v1167 = vld [vmem:[%s1157 + $0x24] sm:$0xf]
        %v1168 = vld [vmem:[%s1157 + $0x28] sm:$0xf]
        %v1169 = vld [vmem:[%s1157 + $0x2c] sm:$0xf]
        %v1170 = vld [vmem:[%s1157 + $0x30] sm:$0xf]
        %v1171 = vld [vmem:[%s1157 + $0x34] sm:$0xf]
        %v1172 = vld [vmem:[%s1157 + $0x38] sm:$0xf]
        %v1173 = vld [vmem:[%s1157 + $0x3c] sm:$0xf]
        %s1174 = scalar_lea.vmem %s8, 32
        %v1175 = vld [vmem:[%s1174] sm:$0xf]
        %v1176 = vld [vmem:[%s1174 + $0x4] sm:$0xf]
        %v1177 = vld [vmem:[%s1174 + $0x8] sm:$0xf]
        %v1178 = vld [vmem:[%s1174 + $0xc] sm:$0xf]
        %v1183 = vunpack.c.l.b16 %v1175
        %v1184 = vunpack.c.l.b16 %v1176
        %v1185 = vunpack.c.l.b16 %v1177
        %v1186 = vunpack.c.l.b16 %v1178
        %v1187 = vpack.c.b16 %v1184, %v1183
        %v1188 = vpack.c.b16 %v1186, %v1185
        %1191 = vmatpush.bf16.msra.mxu0 0
        %1192 = vmatpush.bf16.msra.mxu0 0
        %1193 = vmatpush.bf16.msra.mxu0 0
        %1194 = vmatpush.bf16.msra.mxu0 0
        %1195 = vmatpush.bf16.msra.mxu0 0
        %1196 = vmatpush.bf16.msra.mxu0 0
        %1197 = vmatpush.bf16.msra.mxu0 %v1188
        %1198 = vmatpush.bf16.msra.mxu0 %v1187
        %1199 = vmatmul.bf16.gmra.mxu0 %v878
        %v1200 = vpop.f32.mrf.mxu0
        %v1201 = vadd.f32 0.0, %v1200
        %v1202 = vpop.f32.mrf.mxu0
        %1203 = vdwg.mxu0
        %v1220 = vunpack.c.l.b16 %v1158
        %v1221 = vunpack.c.l.b16 %v1159
        %v1222 = vunpack.c.l.b16 %v1160
        %v1223 = vunpack.c.l.b16 %v1161
        %v1224 = vunpack.c.l.b16 %v1162
        %v1225 = vunpack.c.l.b16 %v1163
        %v1226 = vunpack.c.l.b16 %v1164
        %v1227 = vunpack.c.l.b16 %v1165
        %v1228 = vunpack.c.l.b16 %v1166
        %v1229 = vunpack.c.l.b16 %v1167
        %v1230 = vunpack.c.l.b16 %v1168
        %v1231 = vunpack.c.l.b16 %v1169
        %v1232 = vunpack.c.l.b16 %v1170
        %v1233 = vunpack.c.l.b16 %v1171
        %v1234 = vunpack.c.l.b16 %v1172
        %v1235 = vunpack.c.l.b16 %v1173
        %v1236 = vpack.c.b16 %v1221, %v1220
        %v1237 = vpack.c.b16 %v1223, %v1222
        %v1238 = vpack.c.b16 %v1225, %v1224
        %v1239 = vpack.c.b16 %v1227, %v1226
        %v1240 = vpack.c.b16 %v1229, %v1228
        %v1241 = vpack.c.b16 %v1231, %v1230
        %v1242 = vpack.c.b16 %v1233, %v1232
        %v1243 = vpack.c.b16 %v1235, %v1234
        %1252 = vmatpush.bf16.msra.mxu0 %v1243
        %1253 = vmatpush.bf16.msra.mxu0 %v1242
        %1254 = vmatpush.bf16.msra.mxu0 %v1241
        %1255 = vmatpush.bf16.msra.mxu0 %v1240
        %1256 = vmatpush.bf16.msra.mxu0 %v1239
        %1257 = vmatpush.bf16.msra.mxu0 %v1238
        %1258 = vmatpush.bf16.msra.mxu0 %v1237
        %1259 = vmatpush.bf16.msra.mxu0 %v1236
        %1260 = vmatmul.bf16.gmra.mxu0 %v778
        %v1261 = vpop.f32.mrf.mxu0
        %v1262 = vadd.f32 %v1201, %v1261
        %v1263 = vpop.f32.mrf.mxu0
        %1264 = vdwg.mxu0
        %s1265 = scalar_lea.vmem %s3, 16
        %v1266 = vld [vmem:[%s1265] sm:$0xff]
        %v1268 = vsel %vm664, %v1266, 0
        %1270 = vmatpush.msra.mxu0 0.0
        %1271 = vmatpush.msra.mxu0 0.0
        %1272 = vmatpush.msra.mxu0 0.0
        %1273 = vmatpush.msra.mxu0 0.0
        %1274 = vmatpush.msra.mxu0 0.0
        %1275 = vmatpush.msra.mxu0 0.0
        %1276 = vmatpush.msra.mxu0 0.0
        %1277 = vmatpush.msra.mxu0 0.0
        %1278 = vmatpush.msra.mxu0 0.0
        %1279 = vmatpush.msra.mxu0 0.0
        %1280 = vmatpush.msra.mxu0 0.0
        %1281 = vmatpush.msra.mxu0 0.0
        %1282 = vmatpush.msra.mxu0 0.0
        %1283 = vmatpush.msra.mxu0 0.0
        %1284 = vmatpush.msra.mxu0 0.0
        %1285 = vmatpush.msra.mxu0 %v1262
        %1286 = vmatmul.f32.gmra.mxu0 %v1268
        %v1287 = vpop.f32.mrf.mxu0
        %v1288 = vadd.f32 0.0, %v1287
        %1289 = vdwg.mxu0
        %v1290 = vadd.f32 %v1155, %v1288
        %v1291 = vld [vmem:[%s9] sm:$0x1]
        %v1293 = vperm.slane %v1291, 0
        %v1295 = vmul.f32 %v1290, %v1293
        %v1296 = vld [vmem:[%s10] sm:$0x1]
        %v1298 = vperm.slane %v1296, 0
        %v1300 = vadd.f32 %v1295, %v1298
        %v1301 = vmax.f32 %v1300, 0.0
        %v1302 = vpack.c.bf16 %v1301, %v1301
        %v1303 = vld [vmem:[#allocation4] sm:$0xf]
        %v1304 = vld [vmem:[#allocation4 + $0x4] sm:$0xf]
        %v1305 = vld [vmem:[#allocation4 + $0x8] sm:$0xf]
        %v1306 = vld [vmem:[#allocation4 + $0xc] sm:$0xf]
        %v1307 = vld [vmem:[#allocation4 + $0x10] sm:$0xf]
        %v1308 = vld [vmem:[#allocation4 + $0x14] sm:$0xf]
        %v1309 = vld [vmem:[#allocation4 + $0x18] sm:$0xf]
        %v1310 = vld [vmem:[#allocation4 + $0x1c] sm:$0xf]
        %v1311 = vld [vmem:[#allocation4 + $0x20] sm:$0xf]
        %v1312 = vld [vmem:[#allocation4 + $0x24] sm:$0xf]
        %v1313 = vld [vmem:[#allocation4 + $0x28] sm:$0xf]
        %v1314 = vld [vmem:[#allocation4 + $0x2c] sm:$0xf]
        %v1315 = vld [vmem:[#allocation4 + $0x30] sm:$0xf]
        %v1316 = vld [vmem:[#allocation4 + $0x34] sm:$0xf]
        %v1317 = vld [vmem:[#allocation4 + $0x38] sm:$0xf]
        %v1318 = vld [vmem:[#allocation4 + $0x3c] sm:$0xf]
        %v1335 = vunpack.c.l.b16 %v1303
        %v1336 = vunpack.c.l.b16 %v1304
        %v1337 = vunpack.c.l.b16 %v1305
        %v1338 = vunpack.c.l.b16 %v1306
        %v1339 = vunpack.c.l.b16 %v1307
        %v1340 = vunpack.c.l.b16 %v1308
        %v1341 = vunpack.c.l.b16 %v1309
        %v1342 = vunpack.c.l.b16 %v1310
        %v1343 = vunpack.c.l.b16 %v1311
        %v1344 = vunpack.c.l.b16 %v1312
        %v1345 = vunpack.c.l.b16 %v1313
        %v1346 = vunpack.c.l.b16 %v1314
        %v1347 = vunpack.c.l.b16 %v1315
        %v1348 = vunpack.c.l.b16 %v1316
        %v1349 = vunpack.c.l.b16 %v1317
        %v1350 = vunpack.c.l.b16 %v1318
        %v1351 = vpack.c.b16 %v1336, %v1335
        %v1352 = vpack.c.b16 %v1338, %v1337
        %v1353 = vpack.c.b16 %v1340, %v1339
        %v1354 = vpack.c.b16 %v1342, %v1341
        %v1355 = vpack.c.b16 %v1344, %v1343
        %v1356 = vpack.c.b16 %v1346, %v1345
        %v1357 = vpack.c.b16 %v1348, %v1347
        %v1358 = vpack.c.b16 %v1350, %v1349
        %1367 = vmatpush.bf16.msra.mxu0 %v1358
        %1368 = vmatpush.bf16.msra.mxu0 %v1357
        %1369 = vmatpush.bf16.msra.mxu0 %v1356
        %1370 = vmatpush.bf16.msra.mxu0 %v1355
        %1371 = vmatpush.bf16.msra.mxu0 %v1354
        %1372 = vmatpush.bf16.msra.mxu0 %v1353
        %1373 = vmatpush.bf16.msra.mxu0 %v1352
        %1374 = vmatpush.bf16.msra.mxu0 %v1351
        %1375 = vmatmul.bf16.gmra.mxu0 %v1302
        %v1376 = vpop.f32.mrf.mxu0
        %v1377 = vadd.f32 0.0, %v1376
        %v1378 = vpop.f32.mrf.mxu0
        %1379 = vdwg.mxu0
        %s1380 = scalar_lea.vmem [#allocation4], 64
        %v1381 = vld [vmem:[%s1380] sm:$0xf]
        %v1382 = vld [vmem:[%s1380 + $0x4] sm:$0xf]
        %v1383 = vld [vmem:[%s1380 + $0x8] sm:$0xf]
        %v1384 = vld [vmem:[%s1380 + $0xc] sm:$0xf]
        %v1385 = vld [vmem:[%s1380 + $0x10] sm:$0xf]
        %v1386 = vld [vmem:[%s1380 + $0x14] sm:$0xf]
        %v1387 = vld [vmem:[%s1380 + $0x18] sm:$0xf]
        %v1388 = vld [vmem:[%s1380 + $0x1c] sm:$0xf]
        %v1389 = vld [vmem:[%s1380 + $0x20] sm:$0xf]
        %v1390 = vld [vmem:[%s1380 + $0x24] sm:$0xf]
        %v1391 = vld [vmem:[%s1380 + $0x28] sm:$0xf]
        %v1392 = vld [vmem:[%s1380 + $0x2c] sm:$0xf]
        %v1393 = vld [vmem:[%s1380 + $0x30] sm:$0xf]
        %v1394 = vld [vmem:[%s1380 + $0x34] sm:$0xf]
        %v1395 = vld [vmem:[%s1380 + $0x38] sm:$0xf]
        %v1396 = vld [vmem:[%s1380 + $0x3c] sm:$0xf]
        %v1413 = vunpack.c.l.b16 %v1381
        %v1414 = vunpack.c.l.b16 %v1382
        %v1415 = vunpack.c.l.b16 %v1383
        %v1416 = vunpack.c.l.b16 %v1384
        %v1417 = vunpack.c.l.b16 %v1385
        %v1418 = vunpack.c.l.b16 %v1386
        %v1419 = vunpack.c.l.b16 %v1387
        %v1420 = vunpack.c.l.b16 %v1388
        %v1421 = vunpack.c.l.b16 %v1389
        %v1422 = vunpack.c.l.b16 %v1390
        %v1423 = vunpack.c.l.b16 %v1391
        %v1424 = vunpack.c.l.b16 %v1392
        %v1425 = vunpack.c.l.b16 %v1393
        %v1426 = vunpack.c.l.b16 %v1394
        %v1427 = vunpack.c.l.b16 %v1395
        %v1428 = vunpack.c.l.b16 %v1396
        %v1429 = vpack.c.b16 %v1414, %v1413
        %v1430 = vpack.c.b16 %v1416, %v1415
        %v1431 = vpack.c.b16 %v1418, %v1417
        %v1432 = vpack.c.b16 %v1420, %v1419
        %v1433 = vpack.c.b16 %v1422, %v1421
        %v1434 = vpack.c.b16 %v1424, %v1423
        %v1435 = vpack.c.b16 %v1426, %v1425
        %v1436 = vpack.c.b16 %v1428, %v1427
        %1445 = vmatpush.bf16.msra.mxu0 %v1436
        %1446 = vmatpush.bf16.msra.mxu0 %v1435
        %1447 = vmatpush.bf16.msra.mxu0 %v1434
        %1448 = vmatpush.bf16.msra.mxu0 %v1433
        %1449 = vmatpush.bf16.msra.mxu0 %v1432
        %1450 = vmatpush.bf16.msra.mxu0 %v1431
        %1451 = vmatpush.bf16.msra.mxu0 %v1430
        %1452 = vmatpush.bf16.msra.mxu0 %v1429
        %1453 = vmatmul.bf16.gmra.mxu0 %v1302
        %v1454 = vpop.f32.mrf.mxu0
        %v1455 = vadd.f32 0.0, %v1454
        %v1456 = vpop.f32.mrf.mxu0
        %1457 = vdwg.mxu0
        %1458 = vmatpush.msra.mxu0 0.0
        %1459 = vmatpush.msra.mxu0 0.0
        %1460 = vmatpush.msra.mxu0 0.0
        %1461 = vmatpush.msra.mxu0 0.0
        %1462 = vmatpush.msra.mxu0 0.0
        %1463 = vmatpush.msra.mxu0 0.0
        %1464 = vmatpush.msra.mxu0 0.0
        %1465 = vmatpush.msra.mxu0 0.0
        %1466 = vmatpush.msra.mxu0 0.0
        %1467 = vmatpush.msra.mxu0 0.0
        %1468 = vmatpush.msra.mxu0 0.0
        %1469 = vmatpush.msra.mxu0 0.0
        %1470 = vmatpush.msra.mxu0 0.0
        %1471 = vmatpush.msra.mxu0 0.0
        %1472 = vmatpush.msra.mxu0 0.0
        %1473 = vmatpush.msra.mxu0 %v1455
        %1474 = vmatmul.f32.gmra.mxu0 %v1112
        %v1475 = vpop.f32.mrf.mxu0
        %v1476 = vadd.f32 0.0, %v1475
        %1477 = vdwg.mxu0
        %1478 = vmatpush.msra.mxu0 0.0
        %1479 = vmatpush.msra.mxu0 0.0
        %1480 = vmatpush.msra.mxu0 0.0
        %1481 = vmatpush.msra.mxu0 0.0
        %1482 = vmatpush.msra.mxu0 0.0
        %1483 = vmatpush.msra.mxu0 0.0
        %1484 = vmatpush.msra.mxu0 0.0
        %1485 = vmatpush.msra.mxu0 0.0
        %1486 = vmatpush.msra.mxu0 0.0
        %1487 = vmatpush.msra.mxu0 0.0
        %1488 = vmatpush.msra.mxu0 0.0
        %1489 = vmatpush.msra.mxu0 0.0
        %1490 = vmatpush.msra.mxu0 0.0
        %1491 = vmatpush.msra.mxu0 0.0
        %1492 = vmatpush.msra.mxu0 0.0
        %1493 = vmatpush.msra.mxu0 %v1377
        %1494 = vmatmul.f32.gmra.mxu0 %v1135
        %v1495 = vpop.f32.mrf.mxu0
        %v1496 = vadd.f32 %v1476, %v1495
        %1497 = vdwg.mxu0
        %s1498 = scalar_lea.vmem [#allocation4], 128
        %v1499 = vld [vmem:[%s1498] sm:$0xf]
        %v1500 = vld [vmem:[%s1498 + $0x4] sm:$0xf]
        %v1501 = vld [vmem:[%s1498 + $0x8] sm:$0xf]
        %v1502 = vld [vmem:[%s1498 + $0xc] sm:$0xf]
        %v1503 = vld [vmem:[%s1498 + $0x10] sm:$0xf]
        %v1504 = vld [vmem:[%s1498 + $0x14] sm:$0xf]
        %v1505 = vld [vmem:[%s1498 + $0x18] sm:$0xf]
        %v1506 = vld [vmem:[%s1498 + $0x1c] sm:$0xf]
        %v1507 = vld [vmem:[%s1498 + $0x20] sm:$0xf]
        %v1508 = vld [vmem:[%s1498 + $0x24] sm:$0xf]
        %v1509 = vld [vmem:[%s1498 + $0x28] sm:$0xf]
        %v1510 = vld [vmem:[%s1498 + $0x2c] sm:$0xf]
        %v1511 = vld [vmem:[%s1498 + $0x30] sm:$0xf]
        %v1512 = vld [vmem:[%s1498 + $0x34] sm:$0xf]
        %v1513 = vld [vmem:[%s1498 + $0x38] sm:$0xf]
        %v1514 = vld [vmem:[%s1498 + $0x3c] sm:$0xf]
        %v1531 = vunpack.c.l.b16 %v1499
        %v1532 = vunpack.c.l.b16 %v1500
        %v1533 = vunpack.c.l.b16 %v1501
        %v1534 = vunpack.c.l.b16 %v1502
        %v1535 = vunpack.c.l.b16 %v1503
        %v1536 = vunpack.c.l.b16 %v1504
        %v1537 = vunpack.c.l.b16 %v1505
        %v1538 = vunpack.c.l.b16 %v1506
        %v1539 = vunpack.c.l.b16 %v1507
        %v1540 = vunpack.c.l.b16 %v1508
        %v1541 = vunpack.c.l.b16 %v1509
        %v1542 = vunpack.c.l.b16 %v1510
        %v1543 = vunpack.c.l.b16 %v1511
        %v1544 = vunpack.c.l.b16 %v1512
        %v1545 = vunpack.c.l.b16 %v1513
        %v1546 = vunpack.c.l.b16 %v1514
        %v1547 = vpack.c.b16 %v1532, %v1531
        %v1548 = vpack.c.b16 %v1534, %v1533
        %v1549 = vpack.c.b16 %v1536, %v1535
        %v1550 = vpack.c.b16 %v1538, %v1537
        %v1551 = vpack.c.b16 %v1540, %v1539
        %v1552 = vpack.c.b16 %v1542, %v1541
        %v1553 = vpack.c.b16 %v1544, %v1543
        %v1554 = vpack.c.b16 %v1546, %v1545
        %1563 = vmatpush.bf16.msra.mxu0 %v1554
        %1564 = vmatpush.bf16.msra.mxu0 %v1553
        %1565 = vmatpush.bf16.msra.mxu0 %v1552
        %1566 = vmatpush.bf16.msra.mxu0 %v1551
        %1567 = vmatpush.bf16.msra.mxu0 %v1550
        %1568 = vmatpush.bf16.msra.mxu0 %v1549
        %1569 = vmatpush.bf16.msra.mxu0 %v1548
        %1570 = vmatpush.bf16.msra.mxu0 %v1547
        %1571 = vmatmul.bf16.gmra.mxu0 %v1302
        %v1572 = vpop.f32.mrf.mxu0
        %v1573 = vadd.f32 0.0, %v1572
        %v1574 = vpop.f32.mrf.mxu0
        %1575 = vdwg.mxu0
        %1576 = vmatpush.msra.mxu0 0.0
        %1577 = vmatpush.msra.mxu0 0.0
        %1578 = vmatpush.msra.mxu0 0.0
        %1579 = vmatpush.msra.mxu0 0.0
        %1580 = vmatpush.msra.mxu0 0.0
        %1581 = vmatpush.msra.mxu0 0.0
        %1582 = vmatpush.msra.mxu0 0.0
        %1583 = vmatpush.msra.mxu0 0.0
        %1584 = vmatpush.msra.mxu0 0.0
        %1585 = vmatpush.msra.mxu0 0.0
        %1586 = vmatpush.msra.mxu0 0.0
        %1587 = vmatpush.msra.mxu0 0.0
        %1588 = vmatpush.msra.mxu0 0.0
        %1589 = vmatpush.msra.mxu0 0.0
        %1590 = vmatpush.msra.mxu0 0.0
        %1591 = vmatpush.msra.mxu0 %v1573
        %1592 = vmatmul.f32.gmra.mxu0 %v1268
        %v1593 = vpop.f32.mrf.mxu0
        %v1594 = vadd.f32 0.0, %v1593
        %1595 = vdwg.mxu0
        %v1596 = vadd.f32 %v1496, %v1594
        %v1597 = vld [vmem:[%s12] sm:$0x1]
        %v1599 = vperm.slane %v1597, 0
        %v1601 = vmul.f32 %v1596, %v1599
        %v1602 = vld [vmem:[%s13] sm:$0x1]
        %v1604 = vperm.slane %v1602, 0
        %v1606 = vadd.f32 %v1601, %v1604
        %v1607 = vadd.f32 %v1606, %v893
        %v1608 = vmax.f32 %v1607, 0.0
        %v1609 = vpack.c.bf16 %v1608, %v1608
        %1610 = vst [vmem:[%s594] sm:$0xf] %v1609
        %p1611 = scmp.lt.s32.totalorder %s30, 1
        %s1612 = scalar_select %p1611, %s30, 1
        %s1613 = smul.addr %s1612, 4
        %s1614 = scalar_lea.vmem %s17, %s1613
        // Predicated region
        $region97: #{_lambda_.2} parent=87 // pred_check
          %p1615 = pneg %p415
        $region98: #{_lambda_.2} parent=87 // pred_check_branch
          %1617 = sbr.rel (%p1615) target = $region100
        $region99: #{_lambda_.2} parent=87 // pred_region
          _
        $region100: #{_lambda_.2} parent=87 // pred_fallthru
          _
      $region88: #{_lambda_.2} parent=5 // pred_fallthru
        _
      %p1618 = scmp.le.s32.totalorder 2, %s25
      // Predicated region
      $region101: #{_lambda_.2} parent=5 // pred_check
        %p1619 = pneg %p1618
      $region102: #{_lambda_.2} parent=5 // pred_check_branch
        %1621 = sbr.rel (%p1619) target = $region104
      $region103: #{_lambda_.2} parent=5 // pred_region
        %s1622 = ssub.s32 %s25, 2
        // Predicated region
        $region105: #{_lambda_.2} parent=103 // pred_check
          %p1623 = pneg %p421
        $region106: #{_lambda_.2} parent=103 // pred_check_branch
          %1625 = sbr.rel (%p1623) target = $region108
        $region107: #{_lambda_.2} parent=103 // pred_region
          %p1626 = scmp.lt.s32.totalorder %s31, 1
          %s1627 = scalar_select %p1626, %s31, 1
          %s1628 = smul.addr %s1627, 4
          %s1629 = scalar_lea.vmem %s17, %s1628
        $region108: #{_lambda_.2} parent=103 // pred_fallthru
          _
      $region104: #{_lambda_.2} parent=5 // pred_fallthru
        _
    $region6: #{_lambda_.2} parent=1 // loop_footer
      %s29 = sadd.s32 1, %s25
    $region7: #{_lambda_.2} parent=1 // loop_footer_branch
      %24 = sbr.rel target = $region3
    $region8: #{_lambda_.2} parent=1 // loop_exit
      _
    %1630 = vsyncpa [#allocation3], 1
    %s1631 = scalar_lea.sflag [#allocation3], 1
    %1632 = vsyncpa %s1631, 1
    %1633 = vsyncpa [#allocation5], 1

// kernel: _lambda_.3
$region0: #{_lambda_.3}
  #allocation0 [shape = 'u32[]', space=smem, size = 0x4, offset = 0x4, fixed_abs, tag = 'smem constant byte address 0x4 - core index']
  #allocation1 [shape = 'u32[72,128]{1,0:T(1,128)}', space=vmem, size = 0x9000, scoped, tag = 'internal scratch']
  %s0 = inlined_call_operand.vmem [shape: bf16[2,8,128], index: 0, kind: input, shape index: {}]
  %s1 = inlined_call_operand.vmem [shape: bf16[2,8,32], index: 1, kind: input, shape index: {}]
  %s2 = inlined_call_operand.vmem [shape: f32[3,8,8], index: 2, kind: input, shape index: {}]
  %s3 = inlined_call_operand.vmem [shape: f32[3,8,8], index: 3, kind: input, shape index: {}]
  %s4 = inlined_call_operand.hbm [shape: bf16[3,128,128], index: 4, kind: input, shape index: {}]
  %s5 = inlined_call_operand.vmem [shape: f32[1,128], index: 5, kind: input, shape index: {}]
  %s6 = inlined_call_operand.hbm [shape: f32[1,128], index: 6, kind: input, shape index: {}]
  %s7 = inlined_call_operand.hbm [shape: bf16[3,128,128], index: 7, kind: input, shape index: {}]
  %s8 = inlined_call_operand.vmem [shape: bf16[3,32,128], index: 8, kind: input, shape index: {}]
  %s9 = inlined_call_operand.hbm [shape: f32[1,128], index: 9, kind: input, shape index: {}]
  %s10 = inlined_call_operand.hbm [shape: f32[1,128], index: 10, kind: input, shape index: {}]
  %s11 = inlined_call_operand.hbm [shape: bf16[3,128,128], index: 11, kind: input, shape index: {}]
  %s12 = inlined_call_operand.hbm [shape: f32[1,128], index: 12, kind: input, shape index: {}]
  %s13 = inlined_call_operand.hbm [shape: f32[1,128], index: 13, kind: input, shape index: {}]
  %s14 = inlined_call_operand.vmem [shape: bf16[1,128,128], index: 14, kind: input, shape index: {}]
  %s15 = inlined_call_operand.hbm [shape: bf16[1,32,128], index: 15, kind: input, shape index: {}]
  %s16 = inlined_call_operand.hbm [shape: f32[1,128], index: 16, kind: input, shape index: {}]
  %s17 = inlined_call_operand.vmem [shape: bf16[2,8,128], index: 17, kind: output, shape index: {}]
  %s18 = sld [smem:[#allocation0]]
  $region141: #{_lambda_.3} parent=0
    _
  %s20 = ssub.s32 1, %s18
  %s21 = scalar_select 0, %s20, %s18
  $region1: #{_lambda_.3} parent=0
    #allocation2 [shape = 'u8[98304]{0}', space=vmem, size = 0x18000, scoped, tag = 'input window, operand 4, single buffered']
    #allocation3 [shape = 's32[2]{0}', space=sflag, size = 0x8, scoped, tag = 'scoped memory for _lambda_.3']
    #allocation4 [shape = 'u8[512]{0}', space=vmem, size = 0x400, scoped, tag = 'input window, operand 6, single buffered']
    #allocation5 [shape = 's32[1]{0}', space=sflag, size = 0x4, scoped, tag = 'scoped memory for _lambda_.3']
    #allocation6 [shape = 'u8[98304]{0}', space=vmem, size = 0x18000, scoped, tag = 'input window, operand 7, single buffered']
    #allocation7 [shape = 'u8[512]{0}', space=vmem, size = 0x400, scoped, tag = 'input window, operand 9, single buffered']
    #allocation8 [shape = 's32[1]{0}', space=sflag, size = 0x4, scoped, tag = 'scoped memory for _lambda_.3']
    #allocation9 [shape = 'u8[512]{0}', space=vmem, size = 0x400, scoped, tag = 'input window, operand 10, single buffered']
    #allocation10 [shape = 'u8[98304]{0}', space=vmem, size = 0x18000, scoped, tag = 'input window, operand 11, single buffered']
    #allocation11 [shape = 's32[1]{0}', space=sflag, size = 0x4, scoped, tag = 'scoped memory for _lambda_.3']
    #allocation12 [shape = 'u8[512]{0}', space=vmem, size = 0x400, scoped, tag = 'input window, operand 12, single buffered']
    #allocation13 [shape = 'u8[512]{0}', space=vmem, size = 0x400, scoped, tag = 'input window, operand 13, single buffered']
    #allocation14 [shape = 's32[1]{0}', space=sflag, size = 0x4, scoped, tag = 'scoped memory for _lambda_.3']
    #allocation15 [shape = 'u8[8192]{0}', space=vmem, size = 0x2000, scoped, tag = 'input window, operand 15, single buffered']
    #allocation16 [shape = 'u8[512]{0}', space=vmem, size = 0x400, scoped, tag = 'input window, operand 16, single buffered']
    #allocation17 [shape = 's32[1]{0}', space=sflag, size = 0x4, scoped, tag = 'scoped memory for _lambda_.3']
    %22 = vsyncpa [#allocation3], 0
    %23 = vsyncpa [#allocation5], 0
    %24 = vsyncpa [#allocation8], 0
    %25 = vsyncpa [#allocation11], 0
    %26 = vsyncpa [#allocation14], 0
    %27 = vsyncpa [#allocation17], 0
    loop: start=0, step=1, limit=4
    $region2: #{_lambda_.3} parent=1 // loop_pre_header
      _
    $region3: #{_lambda_.3} parent=1 // loop_header
      %s29 = sphi 0, %s33
      %p30 = scmp.ge.s32.totalorder %s29, 4
      %s39 = sphi 0, %s41
      %s42 = sphi 0, %s39
      %s43 = sphi 0, %s42
      %s59 = sphi 0, %s43
      %s65 = sphi 0, %s67
      %s68 = sphi 0, %s65
      %s69 = sphi 0, %s68
      %s85 = sphi 0, %s69
      %s89 = sphi 0, %s89
      %s91 = sphi 0, %s89
      %s92 = sphi 0, %s91
      %s106 = sphi 0, %s92
      %s110 = sphi 0, %s110
      %s112 = sphi 0, %s110
      %s113 = sphi 0, %s112
      %s127 = sphi 0, %s113
      %s131 = sphi 0, %s131
      %s133 = sphi 0, %s131
      %s134 = sphi 0, %s133
      %s148 = sphi 0, %s134
      %s152 = sphi 0, %s152
      %s154 = sphi 0, %s152
      %s155 = sphi 0, %s154
      %s169 = sphi 0, %s155
      %s173 = sphi 0, %s173
      %s175 = sphi 0, %s173
      %s176 = sphi 0, %s175
      %s190 = sphi 0, %s176
      %s194 = sphi 0, %s194
      %s196 = sphi 0, %s194
      %s197 = sphi 0, %s196
      %s211 = sphi 0, %s197
      %s215 = sphi 0, %s215
      %s217 = sphi 0, %s215
      %s218 = sphi 0, %s217
      %s232 = sphi 0, %s218
      %s236 = sphi 0, %s236
      %s238 = sphi 0, %s236
      %s239 = sphi 0, %s238
      %s253 = sphi 0, %s239
      %s257 = sphi 0, %s257
      %s259 = sphi 0, %s257
      %s260 = sphi 0, %s259
      %s274 = sphi 0, %s260
      %s278 = sphi 0, %s278
      %s280 = sphi 0, %s278
      %s281 = sphi 0, %s280
      %s295 = sphi 0, %s281
      %s299 = sphi 0, %s299
      %s301 = sphi 0, %s299
      %s302 = sphi 0, %s301
      %s316 = sphi 0, %s302
      %s320 = sphi 0, %s320
      %s322 = sphi 0, %s320
      %s323 = sphi 0, %s322
      %s337 = sphi 0, %s323
      %s341 = sphi 0, %s341
      %s343 = sphi 0, %s341
      %s344 = sphi 0, %s343
      %s358 = sphi 0, %s344
      %s362 = sphi 0, %s362
      %s364 = sphi 0, %s362
      %s365 = sphi 0, %s364
      %s379 = sphi 0, %s365
      %s383 = sphi 0, %s383
      %s385 = sphi 0, %s383
      %s386 = sphi 0, %s385
      %s400 = sphi 0, %s386
      %s406 = sphi 0, %s408
      %s409 = sphi 0, %s406
      %s410 = sphi 0, %s409
      %s426 = sphi 0, %s410
    $region4: #{_lambda_.3} parent=1 // loop_header_branch
      %32 = sbr.rel (%p30) target = $region8
    $region5: #{_lambda_.3} parent=1 // loop_body
      %s34 = ssub.s32 %s29, 1
      %s35 = ssub.s32 %s29, 2
      %s36 = sadd.s32 %s29, 1
      %s37 = ssub.s32 %s29, %s36
      %p38 = scmp.eq.s32.totalorder %s37, 0
      %s40 = sadd.s32 %s39, 1
      %s41 = scalar_select %p38, %s39, %s40
      %p44 = pneg %p38
      %p45 = scmp.eq.s32.totalorder %s29, 1
      %p46 = por %p44, %p45
      %p47 = scmp.ne.s32.totalorder %s39, %s42
      %p48 = scmp.eq.s32.totalorder %s29, 0
      %p49 = por %p47, %p48
      %p50 = scmp.ne.s32.totalorder %s39, %s42
      %p51 = scmp.eq.s32.totalorder %s34, 1
      %p52 = por %p50, %p51
      %p53 = scmp.ne.s32.totalorder %s42, %s43
      %p54 = scmp.eq.s32.totalorder %s34, 0
      %p55 = por %p53, %p54
      %p56 = scmp.ne.s32.totalorder %s42, %s43
      %p57 = scmp.eq.s32.totalorder %s35, 1
      %p58 = por %p56, %p57
      %p60 = scmp.ne.s32.totalorder %s43, %s59
      %p61 = scmp.eq.s32.totalorder %s35, 0
      %p62 = por %p60, %p61
      %s63 = ssub.s32 %s29, %s36
      %p64 = scmp.eq.s32.totalorder %s63, 0
      %s66 = sadd.s32 %s65, 1
      %s67 = scalar_select %p64, %s65, %s66
      %p70 = pneg %p64
      %p71 = scmp.eq.s32.totalorder %s29, 1
      %p72 = por %p70, %p71
      %p73 = scmp.ne.s32.totalorder %s65, %s68
      %p74 = scmp.eq.s32.totalorder %s29, 0
      %p75 = por %p73, %p74
      %p76 = scmp.ne.s32.totalorder %s65, %s68
      %p77 = scmp.eq.s32.totalorder %s34, 1
      %p78 = por %p76, %p77
      %p79 = scmp.ne.s32.totalorder %s68, %s69
      %p80 = scmp.eq.s32.totalorder %s34, 0
      %p81 = por %p79, %p80
      %p82 = scmp.ne.s32.totalorder %s68, %s69
      %p83 = scmp.eq.s32.totalorder %s35, 1
      %p84 = por %p82, %p83
      %p86 = scmp.ne.s32.totalorder %s69, %s85
      %p87 = scmp.eq.s32.totalorder %s35, 0
      %p88 = por %p86, %p87
      %s90 = sadd.s32 %s89, 1
      %p93 = scmp.eq.s32.totalorder %s29, 1
      %p94 = scmp.ne.s32.totalorder %s89, %s91
      %p95 = scmp.eq.s32.totalorder %s29, 0
      %p96 = por %p94, %p95
      %p97 = scmp.ne.s32.totalorder %s89, %s91
      %p98 = scmp.eq.s32.totalorder %s34, 1
      %p99 = por %p97, %p98
      %p100 = scmp.ne.s32.totalorder %s91, %s92
      %p101 = scmp.eq.s32.totalorder %s34, 0
      %p102 = por %p100, %p101
      %p103 = scmp.ne.s32.totalorder %s91, %s92
      %p104 = scmp.eq.s32.totalorder %s35, 1
      %p105 = por %p103, %p104
      %p107 = scmp.ne.s32.totalorder %s92, %s106
      %p108 = scmp.eq.s32.totalorder %s35, 0
      %p109 = por %p107, %p108
      %s111 = sadd.s32 %s110, 1
      %p114 = scmp.eq.s32.totalorder %s29, 1
      %p115 = scmp.ne.s32.totalorder %s110, %s112
      %p116 = scmp.eq.s32.totalorder %s29, 0
      %p117 = por %p115, %p116
      %p118 = scmp.ne.s32.totalorder %s110, %s112
      %p119 = scmp.eq.s32.totalorder %s34, 1
      %p120 = por %p118, %p119
      %p121 = scmp.ne.s32.totalorder %s112, %s113
      %p122 = scmp.eq.s32.totalorder %s34, 0
      %p123 = por %p121, %p122
      %p124 = scmp.ne.s32.totalorder %s112, %s113
      %p125 = scmp.eq.s32.totalorder %s35, 1
      %p126 = por %p124, %p125
      %p128 = scmp.ne.s32.totalorder %s113, %s127
      %p129 = scmp.eq.s32.totalorder %s35, 0
      %p130 = por %p128, %p129
      %s132 = sadd.s32 %s131, 1
      %p135 = scmp.eq.s32.totalorder %s29, 1
      %p136 = scmp.ne.s32.totalorder %s131, %s133
      %p137 = scmp.eq.s32.totalorder %s29, 0
      %p138 = por %p136, %p137
      %p139 = scmp.ne.s32.totalorder %s131, %s133
      %p140 = scmp.eq.s32.totalorder %s34, 1
      %p141 = por %p139, %p140
      %p142 = scmp.ne.s32.totalorder %s133, %s134
      %p143 = scmp.eq.s32.totalorder %s34, 0
      %p144 = por %p142, %p143
      %p145 = scmp.ne.s32.totalorder %s133, %s134
      %p146 = scmp.eq.s32.totalorder %s35, 1
      %p147 = por %p145, %p146
      %p149 = scmp.ne.s32.totalorder %s134, %s148
      %p150 = scmp.eq.s32.totalorder %s35, 0
      %p151 = por %p149, %p150
      %s153 = sadd.s32 %s152, 1
      %p156 = scmp.eq.s32.totalorder %s29, 1
      %p157 = scmp.ne.s32.totalorder %s152, %s154
      %p158 = scmp.eq.s32.totalorder %s29, 0
      %p159 = por %p157, %p158
      %p160 = scmp.ne.s32.totalorder %s152, %s154
      %p161 = scmp.eq.s32.totalorder %s34, 1
      %p162 = por %p160, %p161
      %p163 = scmp.ne.s32.totalorder %s154, %s155
      %p164 = scmp.eq.s32.totalorder %s34, 0
      %p165 = por %p163, %p164
      %p166 = scmp.ne.s32.totalorder %s154, %s155
      %p167 = scmp.eq.s32.totalorder %s35, 1
      %p168 = por %p166, %p167
      %p170 = scmp.ne.s32.totalorder %s155, %s169
      %p171 = scmp.eq.s32.totalorder %s35, 0
      %p172 = por %p170, %p171
      %s174 = sadd.s32 %s173, 1
      %p177 = scmp.eq.s32.totalorder %s29, 1
      %p178 = scmp.ne.s32.totalorder %s173, %s175
      %p179 = scmp.eq.s32.totalorder %s29, 0
      %p180 = por %p178, %p179
      %p181 = scmp.ne.s32.totalorder %s173, %s175
      %p182 = scmp.eq.s32.totalorder %s34, 1
      %p183 = por %p181, %p182
      %p184 = scmp.ne.s32.totalorder %s175, %s176
      %p185 = scmp.eq.s32.totalorder %s34, 0
      %p186 = por %p184, %p185
      %p187 = scmp.ne.s32.totalorder %s175, %s176
      %p188 = scmp.eq.s32.totalorder %s35, 1
      %p189 = por %p187, %p188
      %p191 = scmp.ne.s32.totalorder %s176, %s190
      %p192 = scmp.eq.s32.totalorder %s35, 0
      %p193 = por %p191, %p192
      %s195 = sadd.s32 %s194, 1
      %p198 = scmp.eq.s32.totalorder %s29, 1
      %p199 = scmp.ne.s32.totalorder %s194, %s196
      %p200 = scmp.eq.s32.totalorder %s29, 0
      %p201 = por %p199, %p200
      %p202 = scmp.ne.s32.totalorder %s194, %s196
      %p203 = scmp.eq.s32.totalorder %s34, 1
      %p204 = por %p202, %p203
      %p205 = scmp.ne.s32.totalorder %s196, %s197
      %p206 = scmp.eq.s32.totalorder %s34, 0
      %p207 = por %p205, %p206
      %p208 = scmp.ne.s32.totalorder %s196, %s197
      %p209 = scmp.eq.s32.totalorder %s35, 1
      %p210 = por %p208, %p209
      %p212 = scmp.ne.s32.totalorder %s197, %s211
      %p213 = scmp.eq.s32.totalorder %s35, 0
      %p214 = por %p212, %p213
      %s216 = sadd.s32 %s215, 1
      %p219 = scmp.eq.s32.totalorder %s29, 1
      %p220 = scmp.ne.s32.totalorder %s215, %s217
      %p221 = scmp.eq.s32.totalorder %s29, 0
      %p222 = por %p220, %p221
      %p223 = scmp.ne.s32.totalorder %s215, %s217
      %p224 = scmp.eq.s32.totalorder %s34, 1
      %p225 = por %p223, %p224
      %p226 = scmp.ne.s32.totalorder %s217, %s218
      %p227 = scmp.eq.s32.totalorder %s34, 0
      %p228 = por %p226, %p227
      %p229 = scmp.ne.s32.totalorder %s217, %s218
      %p230 = scmp.eq.s32.totalorder %s35, 1
      %p231 = por %p229, %p230
      %p233 = scmp.ne.s32.totalorder %s218, %s232
      %p234 = scmp.eq.s32.totalorder %s35, 0
      %p235 = por %p233, %p234
      %s237 = sadd.s32 %s236, 1
      %p240 = scmp.eq.s32.totalorder %s29, 1
      %p241 = scmp.ne.s32.totalorder %s236, %s238
      %p242 = scmp.eq.s32.totalorder %s29, 0
      %p243 = por %p241, %p242
      %p244 = scmp.ne.s32.totalorder %s236, %s238
      %p245 = scmp.eq.s32.totalorder %s34, 1
      %p246 = por %p244, %p245
      %p247 = scmp.ne.s32.totalorder %s238, %s239
      %p248 = scmp.eq.s32.totalorder %s34, 0
      %p249 = por %p247, %p248
      %p250 = scmp.ne.s32.totalorder %s238, %s239
      %p251 = scmp.eq.s32.totalorder %s35, 1
      %p252 = por %p250, %p251
      %p254 = scmp.ne.s32.totalorder %s239, %s253
      %p255 = scmp.eq.s32.totalorder %s35, 0
      %p256 = por %p254, %p255
      %s258 = sadd.s32 %s257, 1
      %p261 = scmp.eq.s32.totalorder %s29, 1
      %p262 = scmp.ne.s32.totalorder %s257, %s259
      %p263 = scmp.eq.s32.totalorder %s29, 0
      %p264 = por %p262, %p263
      %p265 = scmp.ne.s32.totalorder %s257, %s259
      %p266 = scmp.eq.s32.totalorder %s34, 1
      %p267 = por %p265, %p266
      %p268 = scmp.ne.s32.totalorder %s259, %s260
      %p269 = scmp.eq.s32.totalorder %s34, 0
      %p270 = por %p268, %p269
      %p271 = scmp.ne.s32.totalorder %s259, %s260
      %p272 = scmp.eq.s32.totalorder %s35, 1
      %p273 = por %p271, %p272
      %p275 = scmp.ne.s32.totalorder %s260, %s274
      %p276 = scmp.eq.s32.totalorder %s35, 0
      %p277 = por %p275, %p276
      %s279 = sadd.s32 %s278, 1
      %p282 = scmp.eq.s32.totalorder %s29, 1
      %p283 = scmp.ne.s32.totalorder %s278, %s280
      %p284 = scmp.eq.s32.totalorder %s29, 0
      %p285 = por %p283, %p284
      %p286 = scmp.ne.s32.totalorder %s278, %s280
      %p287 = scmp.eq.s32.totalorder %s34, 1
      %p288 = por %p286, %p287
      %p289 = scmp.ne.s32.totalorder %s280, %s281
      %p290 = scmp.eq.s32.totalorder %s34, 0
      %p291 = por %p289, %p290
      %p292 = scmp.ne.s32.totalorder %s280, %s281
      %p293 = scmp.eq.s32.totalorder %s35, 1
      %p294 = por %p292, %p293
      %p296 = scmp.ne.s32.totalorder %s281, %s295
      %p297 = scmp.eq.s32.totalorder %s35, 0
      %p298 = por %p296, %p297
      %s300 = sadd.s32 %s299, 1
      %p303 = scmp.eq.s32.totalorder %s29, 1
      %p304 = scmp.ne.s32.totalorder %s299, %s301
      %p305 = scmp.eq.s32.totalorder %s29, 0
      %p306 = por %p304, %p305
      %p307 = scmp.ne.s32.totalorder %s299, %s301
      %p308 = scmp.eq.s32.totalorder %s34, 1
      %p309 = por %p307, %p308
      %p310 = scmp.ne.s32.totalorder %s301, %s302
      %p311 = scmp.eq.s32.totalorder %s34, 0
      %p312 = por %p310, %p311
      %p313 = scmp.ne.s32.totalorder %s301, %s302
      %p314 = scmp.eq.s32.totalorder %s35, 1
      %p315 = por %p313, %p314
      %p317 = scmp.ne.s32.totalorder %s302, %s316
      %p318 = scmp.eq.s32.totalorder %s35, 0
      %p319 = por %p317, %p318
      %s321 = sadd.s32 %s320, 1
      %p324 = scmp.eq.s32.totalorder %s29, 1
      %p325 = scmp.ne.s32.totalorder %s320, %s322
      %p326 = scmp.eq.s32.totalorder %s29, 0
      %p327 = por %p325, %p326
      %p328 = scmp.ne.s32.totalorder %s320, %s322
      %p329 = scmp.eq.s32.totalorder %s34, 1
      %p330 = por %p328, %p329
      %p331 = scmp.ne.s32.totalorder %s322, %s323
      %p332 = scmp.eq.s32.totalorder %s34, 0
      %p333 = por %p331, %p332
      %p334 = scmp.ne.s32.totalorder %s322, %s323
      %p335 = scmp.eq.s32.totalorder %s35, 1
      %p336 = por %p334, %p335
      %p338 = scmp.ne.s32.totalorder %s323, %s337
      %p339 = scmp.eq.s32.totalorder %s35, 0
      %p340 = por %p338, %p339
      %s342 = sadd.s32 %s341, 1
      %p345 = scmp.eq.s32.totalorder %s29, 1
      %p346 = scmp.ne.s32.totalorder %s341, %s343
      %p347 = scmp.eq.s32.totalorder %s29, 0
      %p348 = por %p346, %p347
      %p349 = scmp.ne.s32.totalorder %s341, %s343
      %p350 = scmp.eq.s32.totalorder %s34, 1
      %p351 = por %p349, %p350
      %p352 = scmp.ne.s32.totalorder %s343, %s344
      %p353 = scmp.eq.s32.totalorder %s34, 0
      %p354 = por %p352, %p353
      %p355 = scmp.ne.s32.totalorder %s343, %s344
      %p356 = scmp.eq.s32.totalorder %s35, 1
      %p357 = por %p355, %p356
      %p359 = scmp.ne.s32.totalorder %s344, %s358
      %p360 = scmp.eq.s32.totalorder %s35, 0
      %p361 = por %p359, %p360
      %s363 = sadd.s32 %s362, 1
      %p366 = scmp.eq.s32.totalorder %s29, 1
      %p367 = scmp.ne.s32.totalorder %s362, %s364
      %p368 = scmp.eq.s32.totalorder %s29, 0
      %p369 = por %p367, %p368
      %p370 = scmp.ne.s32.totalorder %s362, %s364
      %p371 = scmp.eq.s32.totalorder %s34, 1
      %p372 = por %p370, %p371
      %p373 = scmp.ne.s32.totalorder %s364, %s365
      %p374 = scmp.eq.s32.totalorder %s34, 0
      %p375 = por %p373, %p374
      %p376 = scmp.ne.s32.totalorder %s364, %s365
      %p377 = scmp.eq.s32.totalorder %s35, 1
      %p378 = por %p376, %p377
      %p380 = scmp.ne.s32.totalorder %s365, %s379
      %p381 = scmp.eq.s32.totalorder %s35, 0
      %p382 = por %p380, %p381
      %s384 = sadd.s32 %s383, 1
      %p387 = scmp.eq.s32.totalorder %s29, 1
      %p388 = scmp.ne.s32.totalorder %s383, %s385
      %p389 = scmp.eq.s32.totalorder %s29, 0
      %p390 = por %p388, %p389
      %p391 = scmp.ne.s32.totalorder %s383, %s385
      %p392 = scmp.eq.s32.totalorder %s34, 1
      %p393 = por %p391, %p392
      %p394 = scmp.ne.s32.totalorder %s385, %s386
      %p395 = scmp.eq.s32.totalorder %s34, 0
      %p396 = por %p394, %p395
      %p397 = scmp.ne.s32.totalorder %s385, %s386
      %p398 = scmp.eq.s32.totalorder %s35, 1
      %p399 = por %p397, %p398
      %p401 = scmp.ne.s32.totalorder %s386, %s400
      %p402 = scmp.eq.s32.totalorder %s35, 0
      %p403 = por %p401, %p402
      %s404 = ssub.s32 %s29, %s36
      %p405 = scmp.eq.s32.totalorder %s404, 0
      %s407 = sadd.s32 %s406, 1
      %s408 = scalar_select %p405, %s406, %s407
      %p411 = pneg %p405
      %p412 = scmp.eq.s32.totalorder %s29, 1
      %p413 = por %p411, %p412
      %p414 = scmp.ne.s32.totalorder %s406, %s409
      %p415 = scmp.eq.s32.totalorder %s29, 0
      %p416 = por %p414, %p415
      %p417 = scmp.ne.s32.totalorder %s406, %s409
      %p418 = scmp.eq.s32.totalorder %s34, 1
      %p419 = por %p417, %p418
      %p420 = scmp.ne.s32.totalorder %s409, %s410
      %p421 = scmp.eq.s32.totalorder %s34, 0
      %p422 = por %p420, %p421
      %p423 = scmp.ne.s32.totalorder %s409, %s410
      %p424 = scmp.eq.s32.totalorder %s35, 1
      %p425 = por %p423, %p424
      %p427 = scmp.ne.s32.totalorder %s410, %s426
      %p428 = scmp.eq.s32.totalorder %s35, 0
      %p429 = por %p427, %p428
      %p430 = scmp.le.s32.totalorder 1, %s29
      %p431 = scmp.lt.s32.totalorder %s29, 3
      %p432 = pnand %p430, %p431
      %p433 = pneg %p432
      // Predicated region
      $region9: #{_lambda_.3} parent=5 // pred_check
        _
      $region10: #{_lambda_.3} parent=5 // pred_check_branch
        %435 = sbr.rel (%p432) target = $region12
      $region11: #{_lambda_.3} parent=5 // pred_region
        %s436 = ssub.s32 %s29, 1
        // Predicated region
        $region13: #{_lambda_.3} parent=11 // pred_check
          %p437 = pneg %p102
        $region14: #{_lambda_.3} parent=11 // pred_check_branch
          %439 = sbr.rel (%p437) target = $region16
        $region15: #{_lambda_.3} parent=11 // pred_region
          _
        $region16: #{_lambda_.3} parent=11 // pred_fallthru
          _
        // Predicated region
        $region17: #{_lambda_.3} parent=11 // pred_check
          %p440 = pneg %p123
        $region18: #{_lambda_.3} parent=11 // pred_check_branch
          %442 = sbr.rel (%p440) target = $region20
        $region19: #{_lambda_.3} parent=11 // pred_region
          _
        $region20: #{_lambda_.3} parent=11 // pred_fallthru
          _
        // Predicated region
        $region21: #{_lambda_.3} parent=11 // pred_check
          %p443 = pneg %p144
        $region22: #{_lambda_.3} parent=11 // pred_check_branch
          %445 = sbr.rel (%p443) target = $region24
        $region23: #{_lambda_.3} parent=11 // pred_region
          %447 = vsyncadd [#allocation3], 0
          %s448 = sshll.u32 %s4, 4
          %s449 = int_to_ptr.hbm [resolvable:$true] %s448
          %s450 = sshll.u32 [#allocation2], 4
          %s451 = int_to_ptr.vmem [resolvable:$true] %s450
          %456 = dma.hbm_to_vmem [thread:$0]  %s449, 3072, %s451, [#allocation3], 64, 64, 4
        $region24: #{_lambda_.3} parent=11 // pred_fallthru
          _
        // Predicated region
        $region25: #{_lambda_.3} parent=11 // pred_check
          %p457 = pneg %p165
        $region26: #{_lambda_.3} parent=11 // pred_check_branch
          %459 = sbr.rel (%p457) target = $region28
        $region27: #{_lambda_.3} parent=11 // pred_region
          _
        $region28: #{_lambda_.3} parent=11 // pred_fallthru
          _
        // Predicated region
        $region29: #{_lambda_.3} parent=11 // pred_check
          %p460 = pneg %p186
        $region30: #{_lambda_.3} parent=11 // pred_check_branch
          %462 = sbr.rel (%p460) target = $region32
        $region31: #{_lambda_.3} parent=11 // pred_region
          %464 = vsyncadd [#allocation5], 0
          %s466 = sshll.u32 %s6, 4
          %s467 = int_to_ptr.hbm [resolvable:$true] %s466
          %s468 = sshll.u32 [#allocation4], 4
          %s469 = int_to_ptr.vmem [resolvable:$true] %s468
          %471 = dma.hbm_to_vmem [thread:$0]  %s467, 16, %s469, [#allocation5]
        $region32: #{_lambda_.3} parent=11 // pred_fallthru
          _
        // Predicated region
        $region33: #{_lambda_.3} parent=11 // pred_check
          %p472 = pneg %p207
        $region34: #{_lambda_.3} parent=11 // pred_check_branch
          %474 = sbr.rel (%p472) target = $region36
        $region35: #{_lambda_.3} parent=11 // pred_region
          %476 = vsyncadd [#allocation5], 0
          %s477 = sshll.u32 %s7, 4
          %s478 = int_to_ptr.hbm [resolvable:$true] %s477
          %s479 = sshll.u32 [#allocation6], 4
          %s480 = int_to_ptr.vmem [resolvable:$true] %s479
          %485 = dma.hbm_to_vmem [thread:$0]  %s478, 3072, %s480, [#allocation5], 64, 64, 4
        $region36: #{_lambda_.3} parent=11 // pred_fallthru
          _
        // Predicated region
        $region37: #{_lambda_.3} parent=11 // pred_check
          %p486 = pneg %p228
        $region38: #{_lambda_.3} parent=11 // pred_check_branch
          %488 = sbr.rel (%p486) target = $region40
        $region39: #{_lambda_.3} parent=11 // pred_region
          _
        $region40: #{_lambda_.3} parent=11 // pred_fallthru
          _
        // Predicated region
        $region41: #{_lambda_.3} parent=11 // pred_check
          %p489 = pneg %p249
        $region42: #{_lambda_.3} parent=11 // pred_check_branch
          %491 = sbr.rel (%p489) target = $region44
        $region43: #{_lambda_.3} parent=11 // pred_region
          %493 = vsyncadd [#allocation8], 0
          %s495 = sshll.u32 %s9, 4
          %s496 = int_to_ptr.hbm [resolvable:$true] %s495
          %s497 = sshll.u32 [#allocation7], 4
          %s498 = int_to_ptr.vmem [resolvable:$true] %s497
          %500 = dma.hbm_to_vmem [thread:$0]  %s496, 16, %s498, [#allocation8]
        $region44: #{_lambda_.3} parent=11 // pred_fallthru
          _
        // Predicated region
        $region45: #{_lambda_.3} parent=11 // pred_check
          %p501 = pneg %p270
        $region46: #{_lambda_.3} parent=11 // pred_check_branch
          %503 = sbr.rel (%p501) target = $region48
        $region47: #{_lambda_.3} parent=11 // pred_region
          %505 = vsyncadd [#allocation8], 0
          %s507 = sshll.u32 %s10, 4
          %s508 = int_to_ptr.hbm [resolvable:$true] %s507
          %s509 = sshll.u32 [#allocation9], 4
          %s510 = int_to_ptr.vmem [resolvable:$true] %s509
          %512 = dma.hbm_to_vmem [thread:$0]  %s508, 16, %s510, [#allocation8]
        $region48: #{_lambda_.3} parent=11 // pred_fallthru
          _
        // Predicated region
        $region49: #{_lambda_.3} parent=11 // pred_check
          %p513 = pneg %p291
        $region50: #{_lambda_.3} parent=11 // pred_check_branch
          %515 = sbr.rel (%p513) target = $region52
        $region51: #{_lambda_.3} parent=11 // pred_region
          %517 = vsyncadd [#allocation11], 0
          %s518 = sshll.u32 %s11, 4
          %s519 = int_to_ptr.hbm [resolvable:$true] %s518
          %s520 = sshll.u32 [#allocation10], 4
          %s521 = int_to_ptr.vmem [resolvable:$true] %s520
          %526 = dma.hbm_to_vmem [thread:$0]  %s519, 3072, %s521, [#allocation11], 64, 64, 4
        $region52: #{_lambda_.3} parent=11 // pred_fallthru
          _
        // Predicated region
        $region53: #{_lambda_.3} parent=11 // pred_check
          %p527 = pneg %p312
        $region54: #{_lambda_.3} parent=11 // pred_check_branch
          %529 = sbr.rel (%p527) target = $region56
        $region55: #{_lambda_.3} parent=11 // pred_region
          %531 = vsyncadd [#allocation11], 0
          %s533 = sshll.u32 %s12, 4
          %s534 = int_to_ptr.hbm [resolvable:$true] %s533
          %s535 = sshll.u32 [#allocation12], 4
          %s536 = int_to_ptr.vmem [resolvable:$true] %s535
          %538 = dma.hbm_to_vmem [thread:$0]  %s534, 16, %s536, [#allocation11]
        $region56: #{_lambda_.3} parent=11 // pred_fallthru
          _
        // Predicated region
        $region57: #{_lambda_.3} parent=11 // pred_check
          %p539 = pneg %p333
        $region58: #{_lambda_.3} parent=11 // pred_check_branch
          %541 = sbr.rel (%p539) target = $region60
        $region59: #{_lambda_.3} parent=11 // pred_region
          %543 = vsyncadd [#allocation14], 0
          %s545 = sshll.u32 %s13, 4
          %s546 = int_to_ptr.hbm [resolvable:$true] %s545
          %s547 = sshll.u32 [#allocation13], 4
          %s548 = int_to_ptr.vmem [resolvable:$true] %s547
          %550 = dma.hbm_to_vmem [thread:$0]  %s546, 16, %s548, [#allocation14]
        $region60: #{_lambda_.3} parent=11 // pred_fallthru
          _
        // Predicated region
        $region61: #{_lambda_.3} parent=11 // pred_check
          %p551 = pneg %p354
        $region62: #{_lambda_.3} parent=11 // pred_check_branch
          %553 = sbr.rel (%p551) target = $region64
        $region63: #{_lambda_.3} parent=11 // pred_region
          _
        $region64: #{_lambda_.3} parent=11 // pred_fallthru
          _
        // Predicated region
        $region65: #{_lambda_.3} parent=11 // pred_check
          %p554 = pneg %p375
        $region66: #{_lambda_.3} parent=11 // pred_check_branch
          %556 = sbr.rel (%p554) target = $region68
        $region67: #{_lambda_.3} parent=11 // pred_region
          %558 = vsyncadd [#allocation14], 0
          %s559 = sshll.u32 %s15, 4
          %s560 = int_to_ptr.hbm [resolvable:$true] %s559
          %s561 = sshll.u32 [#allocation15], 4
          %s562 = int_to_ptr.vmem [resolvable:$true] %s561
          %567 = dma.hbm_to_vmem [thread:$0]  %s560, 256, %s562, [#allocation14], 64, 64, 4
        $region68: #{_lambda_.3} parent=11 // pred_fallthru
          _
        // Predicated region
        $region69: #{_lambda_.3} parent=11 // pred_check
          %p568 = pneg %p396
        $region70: #{_lambda_.3} parent=11 // pred_check_branch
          %570 = sbr.rel (%p568) target = $region72
        $region71: #{_lambda_.3} parent=11 // pred_region
          %572 = vsyncadd [#allocation17], 0
          %s574 = sshll.u32 %s16, 4
          %s575 = int_to_ptr.hbm [resolvable:$true] %s574
          %s576 = sshll.u32 [#allocation16], 4
          %s577 = int_to_ptr.vmem [resolvable:$true] %s576
          %579 = dma.hbm_to_vmem [thread:$0]  %s575, 16, %s577, [#allocation17]
        $region72: #{_lambda_.3} parent=11 // pred_fallthru
          _
      $region12: #{_lambda_.3} parent=5 // pred_fallthru
        _
      %p580 = scmp.lt.s32.totalorder %s29, 2
      // Predicated region
      $region73: #{_lambda_.3} parent=5 // pred_check
        %p581 = pneg %p580
      $region74: #{_lambda_.3} parent=5 // pred_check_branch
        %583 = sbr.rel (%p581) target = $region76
      $region75: #{_lambda_.3} parent=5 // pred_region
        // Predicated region
        $region77: #{_lambda_.3} parent=75 // pred_check
          %p584 = pneg %p49
        $region78: #{_lambda_.3} parent=75 // pred_check_branch
          %586 = sbr.rel (%p584) target = $region80
        $region79: #{_lambda_.3} parent=75 // pred_region
          %p587 = scmp.lt.s32.totalorder %s29, 1
          %s588 = scalar_select %p587, %s29, 1
          %s589 = smul.addr %s588, 4
          %s590 = scalar_lea.vmem %s0, %s589
        $region80: #{_lambda_.3} parent=75 // pred_fallthru
          _
        // Predicated region
        $region81: #{_lambda_.3} parent=75 // pred_check
          %p591 = pneg %p75
        $region82: #{_lambda_.3} parent=75 // pred_check_branch
          %593 = sbr.rel (%p591) target = $region84
        $region83: #{_lambda_.3} parent=75 // pred_region
          %p594 = scmp.lt.s32.totalorder %s29, 1
          %s595 = scalar_select %p594, %s29, 1
          %s596 = smul.addr %s595, 4
          %s597 = scalar_lea.vmem %s1, %s596
        $region84: #{_lambda_.3} parent=75 // pred_fallthru
          _
      $region76: #{_lambda_.3} parent=5 // pred_fallthru
        _
      %p598 = scmp.le.s32.totalorder 1, %s29
      %p599 = scmp.lt.s32.totalorder %s29, 3
      %p600 = pnand %p598, %p599
      %p601 = pneg %p600
      // Predicated region
      $region85: #{_lambda_.3} parent=5 // pred_check
        _
      $region86: #{_lambda_.3} parent=5 // pred_check_branch
        %603 = sbr.rel (%p600) target = $region88
      $region87: #{_lambda_.3} parent=5 // pred_region
        %s604 = ssub.s32 %s29, 1
        // Predicated region
        $region89: #{_lambda_.3} parent=87 // pred_check
          %p605 = pneg %p144
        $region90: #{_lambda_.3} parent=87 // pred_check_branch
          %607 = sbr.rel (%p605) target = $region92
        $region91: #{_lambda_.3} parent=87 // pred_region
          %609 = dma.done [#allocation3], 3072
        $region92: #{_lambda_.3} parent=87 // pred_fallthru
          _
        // Predicated region
        $region93: #{_lambda_.3} parent=87 // pred_check
          %p610 = pneg %p186
        $region94: #{_lambda_.3} parent=87 // pred_check_branch
          %612 = sbr.rel (%p610) target = $region96
        $region95: #{_lambda_.3} parent=87 // pred_region
          %614 = dma.done [#allocation5], 16
        $region96: #{_lambda_.3} parent=87 // pred_fallthru
          _
        // Predicated region
        $region97: #{_lambda_.3} parent=87 // pred_check
          %p615 = pneg %p207
        $region98: #{_lambda_.3} parent=87 // pred_check_branch
          %617 = sbr.rel (%p615) target = $region100
        $region99: #{_lambda_.3} parent=87 // pred_region
          %619 = dma.done [#allocation5], 3072
        $region100: #{_lambda_.3} parent=87 // pred_fallthru
          _
        // Predicated region
        $region101: #{_lambda_.3} parent=87 // pred_check
          %p620 = pneg %p249
        $region102: #{_lambda_.3} parent=87 // pred_check_branch
          %622 = sbr.rel (%p620) target = $region104
        $region103: #{_lambda_.3} parent=87 // pred_region
          %624 = dma.done [#allocation8], 16
        $region104: #{_lambda_.3} parent=87 // pred_fallthru
          _
        // Predicated region
        $region105: #{_lambda_.3} parent=87 // pred_check
          %p625 = pneg %p270
        $region106: #{_lambda_.3} parent=87 // pred_check_branch
          %627 = sbr.rel (%p625) target = $region108
        $region107: #{_lambda_.3} parent=87 // pred_region
          %629 = dma.done [#allocation8], 16
        $region108: #{_lambda_.3} parent=87 // pred_fallthru
          _
        // Predicated region
        $region109: #{_lambda_.3} parent=87 // pred_check
          %p630 = pneg %p291
        $region110: #{_lambda_.3} parent=87 // pred_check_branch
          %632 = sbr.rel (%p630) target = $region112
        $region111: #{_lambda_.3} parent=87 // pred_region
          %634 = dma.done [#allocation11], 3072
        $region112: #{_lambda_.3} parent=87 // pred_fallthru
          _
        // Predicated region
        $region113: #{_lambda_.3} parent=87 // pred_check
          %p635 = pneg %p312
        $region114: #{_lambda_.3} parent=87 // pred_check_branch
          %637 = sbr.rel (%p635) target = $region116
        $region115: #{_lambda_.3} parent=87 // pred_region
          %639 = dma.done [#allocation11], 16
        $region116: #{_lambda_.3} parent=87 // pred_fallthru
          _
        // Predicated region
        $region117: #{_lambda_.3} parent=87 // pred_check
          %p640 = pneg %p333
        $region118: #{_lambda_.3} parent=87 // pred_check_branch
          %642 = sbr.rel (%p640) target = $region120
        $region119: #{_lambda_.3} parent=87 // pred_region
          %644 = dma.done [#allocation14], 16
        $region120: #{_lambda_.3} parent=87 // pred_fallthru
          _
        // Predicated region
        $region121: #{_lambda_.3} parent=87 // pred_check
          %p645 = pneg %p375
        $region122: #{_lambda_.3} parent=87 // pred_check_branch
          %647 = sbr.rel (%p645) target = $region124
        $region123: #{_lambda_.3} parent=87 // pred_region
          %649 = dma.done [#allocation14], 256
        $region124: #{_lambda_.3} parent=87 // pred_fallthru
          _
        // Predicated region
        $region125: #{_lambda_.3} parent=87 // pred_check
          %p650 = pneg %p396
        $region126: #{_lambda_.3} parent=87 // pred_check_branch
          %652 = sbr.rel (%p650) target = $region128
        $region127: #{_lambda_.3} parent=87 // pred_region
          %654 = dma.done [#allocation17], 16
        $region128: #{_lambda_.3} parent=87 // pred_fallthru
          _
        %p655 = scmp.lt.s32.totalorder %s34, 1
        %s656 = scalar_select %p655, %s34, 1
        %s657 = smul.addr %s656, 4
        %s658 = scalar_lea.vmem %s0, %s657
        %p659 = pneg %p55
        %p660 = pneg %p52
        %p661 = scmp.lt.s32.totalorder %s34, 1
        %s662 = scalar_select %p661, %s34, 1
        %s663 = smul.addr %s662, 4
        %s664 = scalar_lea.vmem %s1, %s663
        %p665 = pneg %p81
        %p666 = pneg %p78
        %p667 = pneg %p102
        %p668 = pneg %p99
        %p669 = pneg %p123
        %p670 = pneg %p120
        %p671 = pneg %p144
        %p672 = pneg %p141
        %p673 = pneg %p165
        %p674 = pneg %p162
        %p675 = pneg %p186
        %p676 = pneg %p183
        %p677 = pneg %p207
        %p678 = pneg %p204
        %p679 = pneg %p228
        %p680 = pneg %p225
        %p681 = pneg %p249
        %p682 = pneg %p246
        %p683 = pneg %p270
        %p684 = pneg %p267
        %p685 = pneg %p291
        %p686 = pneg %p288
        %p687 = pneg %p312
        %p688 = pneg %p309
        %p689 = pneg %p333
        %p690 = pneg %p330
        %p691 = pneg %p354
        %p692 = pneg %p351
        %p693 = pneg %p375
        %p694 = pneg %p372
        %p695 = pneg %p396
        %p696 = pneg %p393
        %p697 = pneg %p422
        %p698 = pneg %p419
        %p699 = scmp.lt.s32.totalorder %s34, 1
        %s700 = scalar_select %p699, %s34, 1
        %s701 = smul.addr %s700, 4
        %s702 = scalar_lea.vmem %s17, %s701
        %p703 = scmp.lt.s32.totalorder %s34, 1
        %s704 = scalar_select %p703, %s34, 1
        %s705 = smul.addr %s704, 4
        %s706 = scalar_lea.vmem %s0, %s705
        %p707 = scmp.lt.s32.totalorder %s34, 1
        %s708 = scalar_select %p707, %s34, 1
        %s709 = smul.addr %s708, 4
        %s710 = scalar_lea.vmem %s1, %s709
        %p711 = scmp.lt.s32.totalorder %s34, 1
        %s712 = scalar_select %p711, %s34, 1
        %s713 = smul.addr %s712, 4
        %s714 = scalar_lea.vmem %s17, %s713
        %v716 = vld [vmem:[%s706] sm:$0xf]
        %v717 = vld [vmem:[%s710] sm:$0xf]
        %v718 = vld [vmem:[#allocation2] sm:$0xf]
        %v719 = vld [vmem:[#allocation2 + $0x4] sm:$0xf]
        %v720 = vld [vmem:[#allocation2 + $0x8] sm:$0xf]
        %v721 = vld [vmem:[#allocation2 + $0xc] sm:$0xf]
        %v722 = vld [vmem:[#allocation2 + $0x10] sm:$0xf]
        %v723 = vld [vmem:[#allocation2 + $0x14] sm:$0xf]
        %v724 = vld [vmem:[#allocation2 + $0x18] sm:$0xf]
        %v725 = vld [vmem:[#allocation2 + $0x1c] sm:$0xf]
        %v726 = vld [vmem:[#allocation2 + $0x20] sm:$0xf]
        %v727 = vld [vmem:[#allocation2 + $0x24] sm:$0xf]
        %v728 = vld [vmem:[#allocation2 + $0x28] sm:$0xf]
        %v729 = vld [vmem:[#allocation2 + $0x2c] sm:$0xf]
        %v730 = vld [vmem:[#allocation2 + $0x30] sm:$0xf]
        %v731 = vld [vmem:[#allocation2 + $0x34] sm:$0xf]
        %v732 = vld [vmem:[#allocation2 + $0x38] sm:$0xf]
        %v733 = vld [vmem:[#allocation2 + $0x3c] sm:$0xf]
        %v750 = vunpack.c.l.b16 %v718
        %v751 = vunpack.c.l.b16 %v719
        %v752 = vunpack.c.l.b16 %v720
        %v753 = vunpack.c.l.b16 %v721
        %v754 = vunpack.c.l.b16 %v722
        %v755 = vunpack.c.l.b16 %v723
        %v756 = vunpack.c.l.b16 %v724
        %v757 = vunpack.c.l.b16 %v725
        %v758 = vunpack.c.l.b16 %v726
        %v759 = vunpack.c.l.b16 %v727
        %v760 = vunpack.c.l.b16 %v728
        %v761 = vunpack.c.l.b16 %v729
        %v762 = vunpack.c.l.b16 %v730
        %v763 = vunpack.c.l.b16 %v731
        %v764 = vunpack.c.l.b16 %v732
        %v765 = vunpack.c.l.b16 %v733
        %v766 = vpack.c.b16 %v751, %v750
        %v767 = vpack.c.b16 %v753, %v752
        %v768 = vpack.c.b16 %v755, %v754
        %v769 = vpack.c.b16 %v757, %v756
        %v770 = vpack.c.b16 %v759, %v758
        %v771 = vpack.c.b16 %v761, %v760
        %v772 = vpack.c.b16 %v763, %v762
        %v773 = vpack.c.b16 %v765, %v764
        %782 = vmatpush.bf16.msra.mxu0 %v773
        %783 = vmatpush.bf16.msra.mxu0 %v772
        %784 = vmatpush.bf16.msra.mxu0 %v771
        %785 = vmatpush.bf16.msra.mxu0 %v770
        %786 = vmatpush.bf16.msra.mxu0 %v769
        %787 = vmatpush.bf16.msra.mxu0 %v768
        %788 = vmatpush.bf16.msra.mxu0 %v767
        %789 = vmatpush.bf16.msra.mxu0 %v766
        %790 = vmatmul.bf16.gmra.mxu0 %v716
        %v791 = vpop.f32.mrf.mxu0
        %v792 = vadd.f32 0.0, %v791
        %v793 = vpop.f32.mrf.mxu0
        %794 = vdwg.mxu0
        %v795 = vld [vmem:[%s2] sm:$0xff]
        %s796 = scalar_lea.vmem [#allocation2], 64
        %v797 = vld [vmem:[%s796] sm:$0xf]
        %v798 = vld [vmem:[%s796 + $0x4] sm:$0xf]
        %v799 = vld [vmem:[%s796 + $0x8] sm:$0xf]
        %v800 = vld [vmem:[%s796 + $0xc] sm:$0xf]
        %v801 = vld [vmem:[%s796 + $0x10] sm:$0xf]
        %v802 = vld [vmem:[%s796 + $0x14] sm:$0xf]
        %v803 = vld [vmem:[%s796 + $0x18] sm:$0xf]
        %v804 = vld [vmem:[%s796 + $0x1c] sm:$0xf]
        %v805 = vld [vmem:[%s796 + $0x20] sm:$0xf]
        %v806 = vld [vmem:[%s796 + $0x24] sm:$0xf]
        %v807 = vld [vmem:[%s796 + $0x28] sm:$0xf]
        %v808 = vld [vmem:[%s796 + $0x2c] sm:$0xf]
        %v809 = vld [vmem:[%s796 + $0x30] sm:$0xf]
        %v810 = vld [vmem:[%s796 + $0x34] sm:$0xf]
        %v811 = vld [vmem:[%s796 + $0x38] sm:$0xf]
        %v812 = vld [vmem:[%s796 + $0x3c] sm:$0xf]
        %v829 = vunpack.c.l.b16 %v797
        %v830 = vunpack.c.l.b16 %v798
        %v831 = vunpack.c.l.b16 %v799
        %v832 = vunpack.c.l.b16 %v800
        %v833 = vunpack.c.l.b16 %v801
        %v834 = vunpack.c.l.b16 %v802
        %v835 = vunpack.c.l.b16 %v803
        %v836 = vunpack.c.l.b16 %v804
        %v837 = vunpack.c.l.b16 %v805
        %v838 = vunpack.c.l.b16 %v806
        %v839 = vunpack.c.l.b16 %v807
        %v840 = vunpack.c.l.b16 %v808
        %v841 = vunpack.c.l.b16 %v809
        %v842 = vunpack.c.l.b16 %v810
        %v843 = vunpack.c.l.b16 %v811
        %v844 = vunpack.c.l.b16 %v812
        %v845 = vpack.c.b16 %v830, %v829
        %v846 = vpack.c.b16 %v832, %v831
        %v847 = vpack.c.b16 %v834, %v833
        %v848 = vpack.c.b16 %v836, %v835
        %v849 = vpack.c.b16 %v838, %v837
        %v850 = vpack.c.b16 %v840, %v839
        %v851 = vpack.c.b16 %v842, %v841
        %v852 = vpack.c.b16 %v844, %v843
        %861 = vmatpush.bf16.msra.mxu0 %v852
        %862 = vmatpush.bf16.msra.mxu0 %v851
        %863 = vmatpush.bf16.msra.mxu0 %v850
        %864 = vmatpush.bf16.msra.mxu0 %v849
        %865 = vmatpush.bf16.msra.mxu0 %v848
        %866 = vmatpush.bf16.msra.mxu0 %v847
        %867 = vmatpush.bf16.msra.mxu0 %v846
        %868 = vmatpush.bf16.msra.mxu0 %v845
        %869 = vmatmul.bf16.gmra.mxu0 %v716
        %v870 = vpop.f32.mrf.mxu0
        %v871 = vadd.f32 0.0, %v870
        %v872 = vpop.f32.mrf.mxu0
        %873 = vdwg.mxu0
        %s874 = scalar_lea.vmem %s2, 8
        %v875 = vld [vmem:[%s874] sm:$0xff]
        %vm876 = vcmask 64512
        %v878 = vsel %vm876, %v875, 0
        %880 = vmatpush.msra.mxu0 0.0
        %881 = vmatpush.msra.mxu0 0.0
        %882 = vmatpush.msra.mxu0 0.0
        %883 = vmatpush.msra.mxu0 0.0
        %884 = vmatpush.msra.mxu0 0.0
        %885 = vmatpush.msra.mxu0 0.0
        %886 = vmatpush.msra.mxu0 0.0
        %887 = vmatpush.msra.mxu0 0.0
        %888 = vmatpush.msra.mxu0 0.0
        %889 = vmatpush.msra.mxu0 0.0
        %890 = vmatpush.msra.mxu0 0.0
        %891 = vmatpush.msra.mxu0 0.0
        %892 = vmatpush.msra.mxu0 0.0
        %893 = vmatpush.msra.mxu0 0.0
        %894 = vmatpush.msra.mxu0 0.0
        %895 = vmatpush.msra.mxu0 %v871
        %896 = vmatmul.f32.gmra.mxu0 %v878
        %v897 = vpop.f32.mrf.mxu0
        %v898 = vadd.f32 0.0, %v897
        %899 = vdwg.mxu0
        %v901 = vsel %vm876, %v795, 0
        %903 = vmatpush.msra.mxu0 0.0
        %904 = vmatpush.msra.mxu0 0.0
        %905 = vmatpush.msra.mxu0 0.0
        %906 = vmatpush.msra.mxu0 0.0
        %907 = vmatpush.msra.mxu0 0.0
        %908 = vmatpush.msra.mxu0 0.0
        %909 = vmatpush.msra.mxu0 0.0
        %910 = vmatpush.msra.mxu0 0.0
        %911 = vmatpush.msra.mxu0 0.0
        %912 = vmatpush.msra.mxu0 0.0
        %913 = vmatpush.msra.mxu0 0.0
        %914 = vmatpush.msra.mxu0 0.0
        %915 = vmatpush.msra.mxu0 0.0
        %916 = vmatpush.msra.mxu0 0.0
        %917 = vmatpush.msra.mxu0 0.0
        %918 = vmatpush.msra.mxu0 %v792
        %919 = vmatmul.f32.gmra.mxu0 %v901
        %v920 = vpop.f32.mrf.mxu0
        %v921 = vadd.f32 %v898, %v920
        %922 = vdwg.mxu0
        %s923 = scalar_lea.vmem [#allocation2], 128
        %v924 = vld [vmem:[%s923] sm:$0xf]
        %v925 = vld [vmem:[%s923 + $0x4] sm:$0xf]
        %v926 = vld [vmem:[%s923 + $0x8] sm:$0xf]
        %v927 = vld [vmem:[%s923 + $0xc] sm:$0xf]
        %v928 = vld [vmem:[%s923 + $0x10] sm:$0xf]
        %v929 = vld [vmem:[%s923 + $0x14] sm:$0xf]
        %v930 = vld [vmem:[%s923 + $0x18] sm:$0xf]
        %v931 = vld [vmem:[%s923 + $0x1c] sm:$0xf]
        %v932 = vld [vmem:[%s923 + $0x20] sm:$0xf]
        %v933 = vld [vmem:[%s923 + $0x24] sm:$0xf]
        %v934 = vld [vmem:[%s923 + $0x28] sm:$0xf]
        %v935 = vld [vmem:[%s923 + $0x2c] sm:$0xf]
        %v936 = vld [vmem:[%s923 + $0x30] sm:$0xf]
        %v937 = vld [vmem:[%s923 + $0x34] sm:$0xf]
        %v938 = vld [vmem:[%s923 + $0x38] sm:$0xf]
        %v939 = vld [vmem:[%s923 + $0x3c] sm:$0xf]
        %v956 = vunpack.c.l.b16 %v924
        %v957 = vunpack.c.l.b16 %v925
        %v958 = vunpack.c.l.b16 %v926
        %v959 = vunpack.c.l.b16 %v927
        %v960 = vunpack.c.l.b16 %v928
        %v961 = vunpack.c.l.b16 %v929
        %v962 = vunpack.c.l.b16 %v930
        %v963 = vunpack.c.l.b16 %v931
        %v964 = vunpack.c.l.b16 %v932
        %v965 = vunpack.c.l.b16 %v933
        %v966 = vunpack.c.l.b16 %v934
        %v967 = vunpack.c.l.b16 %v935
        %v968 = vunpack.c.l.b16 %v936
        %v969 = vunpack.c.l.b16 %v937
        %v970 = vunpack.c.l.b16 %v938
        %v971 = vunpack.c.l.b16 %v939
        %v972 = vpack.c.b16 %v957, %v956
        %v973 = vpack.c.b16 %v959, %v958
        %v974 = vpack.c.b16 %v961, %v960
        %v975 = vpack.c.b16 %v963, %v962
        %v976 = vpack.c.b16 %v965, %v964
        %v977 = vpack.c.b16 %v967, %v966
        %v978 = vpack.c.b16 %v969, %v968
        %v979 = vpack.c.b16 %v971, %v970
        %988 = vmatpush.bf16.msra.mxu0 %v979
        %989 = vmatpush.bf16.msra.mxu0 %v978
        %990 = vmatpush.bf16.msra.mxu0 %v977
        %991 = vmatpush.bf16.msra.mxu0 %v976
        %992 = vmatpush.bf16.msra.mxu0 %v975
        %993 = vmatpush.bf16.msra.mxu0 %v974
        %994 = vmatpush.bf16.msra.mxu0 %v973
        %995 = vmatpush.bf16.msra.mxu0 %v972
        %996 = vmatmul.bf16.gmra.mxu0 %v716
        %v997 = vpop.f32.mrf.mxu0
        %v998 = vadd.f32 0.0, %v997
        %v999 = vpop.f32.mrf.mxu0
        %1000 = vdwg.mxu0
        %s1001 = scalar_lea.vmem %s2, 16
        %v1002 = vld [vmem:[%s1001] sm:$0xff]
        %v1004 = vsel %vm876, %v1002, 0
        %1006 = vmatpush.msra.mxu0 0.0
        %1007 = vmatpush.msra.mxu0 0.0
        %1008 = vmatpush.msra.mxu0 0.0
        %1009 = vmatpush.msra.mxu0 0.0
        %1010 = vmatpush.msra.mxu0 0.0
        %1011 = vmatpush.msra.mxu0 0.0
        %1012 = vmatpush.msra.mxu0 0.0
        %1013 = vmatpush.msra.mxu0 0.0
        %1014 = vmatpush.msra.mxu0 0.0
        %1015 = vmatpush.msra.mxu0 0.0
        %1016 = vmatpush.msra.mxu0 0.0
        %1017 = vmatpush.msra.mxu0 0.0
        %1018 = vmatpush.msra.mxu0 0.0
        %1019 = vmatpush.msra.mxu0 0.0
        %1020 = vmatpush.msra.mxu0 0.0
        %1021 = vmatpush.msra.mxu0 %v998
        %1022 = vmatmul.f32.gmra.mxu0 %v1004
        %v1023 = vpop.f32.mrf.mxu0
        %v1024 = vadd.f32 0.0, %v1023
        %1025 = vdwg.mxu0
        %v1026 = vadd.f32 %v921, %v1024
        %v1027 = vld [vmem:[%s5] sm:$0x1]
        %v1029 = vperm.slane %v1027, 0
        %v1031 = vmul.f32 %v1026, %v1029
        %v1032 = vld [vmem:[#allocation4] sm:$0x1]
        %v1034 = vperm.slane %v1032, 0
        %v1036 = vadd.f32 %v1031, %v1034
        %v1037 = vmax.f32 %v1036, 0.0
        %v1038 = vpack.c.bf16 %v1037, %v1037
        %v1039 = vld [vmem:[#allocation16] sm:$0x1]
        %v1040 = vld [vmem:[%s14] sm:$0xf]
        %v1041 = vld [vmem:[%s14 + $0x4] sm:$0xf]
        %v1042 = vld [vmem:[%s14 + $0x8] sm:$0xf]
        %v1043 = vld [vmem:[%s14 + $0xc] sm:$0xf]
        %v1044 = vld [vmem:[%s14 + $0x10] sm:$0xf]
        %v1045 = vld [vmem:[%s14 + $0x14] sm:$0xf]
        %v1046 = vld [vmem:[%s14 + $0x18] sm:$0xf]
        %v1047 = vld [vmem:[%s14 + $0x1c] sm:$0xf]
        %v1048 = vld [vmem:[%s14 + $0x20] sm:$0xf]
        %v1049 = vld [vmem:[%s14 + $0x24] sm:$0xf]
        %v1050 = vld [vmem:[%s14 + $0x28] sm:$0xf]
        %v1051 = vld [vmem:[%s14 + $0x2c] sm:$0xf]
        %v1052 = vld [vmem:[%s14 + $0x30] sm:$0xf]
        %v1053 = vld [vmem:[%s14 + $0x34] sm:$0xf]
        %v1054 = vld [vmem:[%s14 + $0x38] sm:$0xf]
        %v1055 = vld [vmem:[%s14 + $0x3c] sm:$0xf]
        %v1072 = vunpack.c.l.b16 %v1040
        %v1073 = vunpack.c.l.b16 %v1041
        %v1074 = vunpack.c.l.b16 %v1042
        %v1075 = vunpack.c.l.b16 %v1043
        %v1076 = vunpack.c.l.b16 %v1044
        %v1077 = vunpack.c.l.b16 %v1045
        %v1078 = vunpack.c.l.b16 %v1046
        %v1079 = vunpack.c.l.b16 %v1047
        %v1080 = vunpack.c.l.b16 %v1048
        %v1081 = vunpack.c.l.b16 %v1049
        %v1082 = vunpack.c.l.b16 %v1050
        %v1083 = vunpack.c.l.b16 %v1051
        %v1084 = vunpack.c.l.b16 %v1052
        %v1085 = vunpack.c.l.b16 %v1053
        %v1086 = vunpack.c.l.b16 %v1054
        %v1087 = vunpack.c.l.b16 %v1055
        %v1088 = vpack.c.b16 %v1073, %v1072
        %v1089 = vpack.c.b16 %v1075, %v1074
        %v1090 = vpack.c.b16 %v1077, %v1076
        %v1091 = vpack.c.b16 %v1079, %v1078
        %v1092 = vpack.c.b16 %v1081, %v1080
        %v1093 = vpack.c.b16 %v1083, %v1082
        %v1094 = vpack.c.b16 %v1085, %v1084
        %v1095 = vpack.c.b16 %v1087, %v1086
        %1104 = vmatpush.bf16.msra.mxu0 %v1095
        %1105 = vmatpush.bf16.msra.mxu0 %v1094
        %1106 = vmatpush.bf16.msra.mxu0 %v1093
        %1107 = vmatpush.bf16.msra.mxu0 %v1092
        %1108 = vmatpush.bf16.msra.mxu0 %v1091
        %1109 = vmatpush.bf16.msra.mxu0 %v1090
        %1110 = vmatpush.bf16.msra.mxu0 %v1089
        %1111 = vmatpush.bf16.msra.mxu0 %v1088
        %1112 = vmatmul.bf16.gmra.mxu0 %v1038
        %v1113 = vpop.f32.mrf.mxu0
        %v1114 = vadd.f32 0.0, %v1113
        %v1115 = vpop.f32.mrf.mxu0
        %1116 = vdwg.mxu0
        %v1118 = vperm.slane %v1039, 0
        %v1120 = vadd.f32 %v1118, %v1114
        %v1121 = vld [vmem:[#allocation15] sm:$0xf]
        %v1122 = vld [vmem:[#allocation15 + $0x4] sm:$0xf]
        %v1123 = vld [vmem:[#allocation15 + $0x8] sm:$0xf]
        %v1124 = vld [vmem:[#allocation15 + $0xc] sm:$0xf]
        %v1129 = vunpack.c.l.b16 %v1121
        %v1130 = vunpack.c.l.b16 %v1122
        %v1131 = vunpack.c.l.b16 %v1123
        %v1132 = vunpack.c.l.b16 %v1124
        %v1133 = vpack.c.b16 %v1130, %v1129
        %v1134 = vpack.c.b16 %v1132, %v1131
        %vm1137 = vcmask 261120
        %v1139 = vsel %vm1137, %v717, 0
        %1141 = vmatpush.bf16.msra.mxu0 0
        %1142 = vmatpush.bf16.msra.mxu0 0
        %1143 = vmatpush.bf16.msra.mxu0 0
        %1144 = vmatpush.bf16.msra.mxu0 0
        %1145 = vmatpush.bf16.msra.mxu0 0
        %1146 = vmatpush.bf16.msra.mxu0 0
        %1147 = vmatpush.bf16.msra.mxu0 %v1134
        %1148 = vmatpush.bf16.msra.mxu0 %v1133
        %1149 = vmatmul.bf16.gmra.mxu0 %v1139
        %v1150 = vpop.f32.mrf.mxu0
        %v1151 = vadd.f32 0.0, %v1150
        %v1152 = vpop.f32.mrf.mxu0
        %1153 = vdwg.mxu0
        %v1154 = vadd.f32 %v1120, %v1151
        %v1155 = vld [vmem:[#allocation6] sm:$0xf]
        %v1156 = vld [vmem:[#allocation6 + $0x4] sm:$0xf]
        %v1157 = vld [vmem:[#allocation6 + $0x8] sm:$0xf]
        %v1158 = vld [vmem:[#allocation6 + $0xc] sm:$0xf]
        %v1159 = vld [vmem:[#allocation6 + $0x10] sm:$0xf]
        %v1160 = vld [vmem:[#allocation6 + $0x14] sm:$0xf]
        %v1161 = vld [vmem:[#allocation6 + $0x18] sm:$0xf]
        %v1162 = vld [vmem:[#allocation6 + $0x1c] sm:$0xf]
        %v1163 = vld [vmem:[#allocation6 + $0x20] sm:$0xf]
        %v1164 = vld [vmem:[#allocation6 + $0x24] sm:$0xf]
        %v1165 = vld [vmem:[#allocation6 + $0x28] sm:$0xf]
        %v1166 = vld [vmem:[#allocation6 + $0x2c] sm:$0xf]
        %v1167 = vld [vmem:[#allocation6 + $0x30] sm:$0xf]
        %v1168 = vld [vmem:[#allocation6 + $0x34] sm:$0xf]
        %v1169 = vld [vmem:[#allocation6 + $0x38] sm:$0xf]
        %v1170 = vld [vmem:[#allocation6 + $0x3c] sm:$0xf]
        %v1171 = vld [vmem:[%s8] sm:$0xf]
        %v1172 = vld [vmem:[%s8 + $0x4] sm:$0xf]
        %v1173 = vld [vmem:[%s8 + $0x8] sm:$0xf]
        %v1174 = vld [vmem:[%s8 + $0xc] sm:$0xf]
        %v1179 = vunpack.c.l.b16 %v1171
        %v1180 = vunpack.c.l.b16 %v1172
        %v1181 = vunpack.c.l.b16 %v1173
        %v1182 = vunpack.c.l.b16 %v1174
        %v1183 = vpack.c.b16 %v1180, %v1179
        %v1184 = vpack.c.b16 %v1182, %v1181
        %1187 = vmatpush.bf16.msra.mxu0 0
        %1188 = vmatpush.bf16.msra.mxu0 0
        %1189 = vmatpush.bf16.msra.mxu0 0
        %1190 = vmatpush.bf16.msra.mxu0 0
        %1191 = vmatpush.bf16.msra.mxu0 0
        %1192 = vmatpush.bf16.msra.mxu0 0
        %1193 = vmatpush.bf16.msra.mxu0 %v1184
        %1194 = vmatpush.bf16.msra.mxu0 %v1183
        %1195 = vmatmul.bf16.gmra.mxu0 %v1139
        %v1196 = vpop.f32.mrf.mxu0
        %v1197 = vadd.f32 0.0, %v1196
        %v1198 = vpop.f32.mrf.mxu0
        %1199 = vdwg.mxu0
        %v1216 = vunpack.c.l.b16 %v1155
        %v1217 = vunpack.c.l.b16 %v1156
        %v1218 = vunpack.c.l.b16 %v1157
        %v1219 = vunpack.c.l.b16 %v1158
        %v1220 = vunpack.c.l.b16 %v1159
        %v1221 = vunpack.c.l.b16 %v1160
        %v1222 = vunpack.c.l.b16 %v1161
        %v1223 = vunpack.c.l.b16 %v1162
        %v1224 = vunpack.c.l.b16 %v1163
        %v1225 = vunpack.c.l.b16 %v1164
        %v1226 = vunpack.c.l.b16 %v1165
        %v1227 = vunpack.c.l.b16 %v1166
        %v1228 = vunpack.c.l.b16 %v1167
        %v1229 = vunpack.c.l.b16 %v1168
        %v1230 = vunpack.c.l.b16 %v1169
        %v1231 = vunpack.c.l.b16 %v1170
        %v1232 = vpack.c.b16 %v1217, %v1216
        %v1233 = vpack.c.b16 %v1219, %v1218
        %v1234 = vpack.c.b16 %v1221, %v1220
        %v1235 = vpack.c.b16 %v1223, %v1222
        %v1236 = vpack.c.b16 %v1225, %v1224
        %v1237 = vpack.c.b16 %v1227, %v1226
        %v1238 = vpack.c.b16 %v1229, %v1228
        %v1239 = vpack.c.b16 %v1231, %v1230
        %1248 = vmatpush.bf16.msra.mxu0 %v1239
        %1249 = vmatpush.bf16.msra.mxu0 %v1238
        %1250 = vmatpush.bf16.msra.mxu0 %v1237
        %1251 = vmatpush.bf16.msra.mxu0 %v1236
        %1252 = vmatpush.bf16.msra.mxu0 %v1235
        %1253 = vmatpush.bf16.msra.mxu0 %v1234
        %1254 = vmatpush.bf16.msra.mxu0 %v1233
        %1255 = vmatpush.bf16.msra.mxu0 %v1232
        %1256 = vmatmul.bf16.gmra.mxu0 %v1038
        %v1257 = vpop.f32.mrf.mxu0
        %v1258 = vadd.f32 %v1197, %v1257
        %v1259 = vpop.f32.mrf.mxu0
        %1260 = vdwg.mxu0
        %v1261 = vld [vmem:[%s3] sm:$0xff]
        %s1262 = scalar_lea.vmem [#allocation6], 64
        %v1263 = vld [vmem:[%s1262] sm:$0xf]
        %v1264 = vld [vmem:[%s1262 + $0x4] sm:$0xf]
        %v1265 = vld [vmem:[%s1262 + $0x8] sm:$0xf]
        %v1266 = vld [vmem:[%s1262 + $0xc] sm:$0xf]
        %v1267 = vld [vmem:[%s1262 + $0x10] sm:$0xf]
        %v1268 = vld [vmem:[%s1262 + $0x14] sm:$0xf]
        %v1269 = vld [vmem:[%s1262 + $0x18] sm:$0xf]
        %v1270 = vld [vmem:[%s1262 + $0x1c] sm:$0xf]
        %v1271 = vld [vmem:[%s1262 + $0x20] sm:$0xf]
        %v1272 = vld [vmem:[%s1262 + $0x24] sm:$0xf]
        %v1273 = vld [vmem:[%s1262 + $0x28] sm:$0xf]
        %v1274 = vld [vmem:[%s1262 + $0x2c] sm:$0xf]
        %v1275 = vld [vmem:[%s1262 + $0x30] sm:$0xf]
        %v1276 = vld [vmem:[%s1262 + $0x34] sm:$0xf]
        %v1277 = vld [vmem:[%s1262 + $0x38] sm:$0xf]
        %v1278 = vld [vmem:[%s1262 + $0x3c] sm:$0xf]
        %s1279 = scalar_lea.vmem %s8, 16
        %v1280 = vld [vmem:[%s1279] sm:$0xf]
        %v1281 = vld [vmem:[%s1279 + $0x4] sm:$0xf]
        %v1282 = vld [vmem:[%s1279 + $0x8] sm:$0xf]
        %v1283 = vld [vmem:[%s1279 + $0xc] sm:$0xf]
        %v1288 = vunpack.c.l.b16 %v1280
        %v1289 = vunpack.c.l.b16 %v1281
        %v1290 = vunpack.c.l.b16 %v1282
        %v1291 = vunpack.c.l.b16 %v1283
        %v1292 = vpack.c.b16 %v1289, %v1288
        %v1293 = vpack.c.b16 %v1291, %v1290
        %1296 = vmatpush.bf16.msra.mxu0 0
        %1297 = vmatpush.bf16.msra.mxu0 0
        %1298 = vmatpush.bf16.msra.mxu0 0
        %1299 = vmatpush.bf16.msra.mxu0 0
        %1300 = vmatpush.bf16.msra.mxu0 0
        %1301 = vmatpush.bf16.msra.mxu0 0
        %1302 = vmatpush.bf16.msra.mxu0 %v1293
        %1303 = vmatpush.bf16.msra.mxu0 %v1292
        %1304 = vmatmul.bf16.gmra.mxu0 %v1139
        %v1305 = vpop.f32.mrf.mxu0
        %v1306 = vadd.f32 0.0, %v1305
        %v1307 = vpop.f32.mrf.mxu0
        %1308 = vdwg.mxu0
        %v1325 = vunpack.c.l.b16 %v1263
        %v1326 = vunpack.c.l.b16 %v1264
        %v1327 = vunpack.c.l.b16 %v1265
        %v1328 = vunpack.c.l.b16 %v1266
        %v1329 = vunpack.c.l.b16 %v1267
        %v1330 = vunpack.c.l.b16 %v1268
        %v1331 = vunpack.c.l.b16 %v1269
        %v1332 = vunpack.c.l.b16 %v1270
        %v1333 = vunpack.c.l.b16 %v1271
        %v1334 = vunpack.c.l.b16 %v1272
        %v1335 = vunpack.c.l.b16 %v1273
        %v1336 = vunpack.c.l.b16 %v1274
        %v1337 = vunpack.c.l.b16 %v1275
        %v1338 = vunpack.c.l.b16 %v1276
        %v1339 = vunpack.c.l.b16 %v1277
        %v1340 = vunpack.c.l.b16 %v1278
        %v1341 = vpack.c.b16 %v1326, %v1325
        %v1342 = vpack.c.b16 %v1328, %v1327
        %v1343 = vpack.c.b16 %v1330, %v1329
        %v1344 = vpack.c.b16 %v1332, %v1331
        %v1345 = vpack.c.b16 %v1334, %v1333
        %v1346 = vpack.c.b16 %v1336, %v1335
        %v1347 = vpack.c.b16 %v1338, %v1337
        %v1348 = vpack.c.b16 %v1340, %v1339
        %1357 = vmatpush.bf16.msra.mxu0 %v1348
        %1358 = vmatpush.bf16.msra.mxu0 %v1347
        %1359 = vmatpush.bf16.msra.mxu0 %v1346
        %1360 = vmatpush.bf16.msra.mxu0 %v1345
        %1361 = vmatpush.bf16.msra.mxu0 %v1344
        %1362 = vmatpush.bf16.msra.mxu0 %v1343
        %1363 = vmatpush.bf16.msra.mxu0 %v1342
        %1364 = vmatpush.bf16.msra.mxu0 %v1341
        %1365 = vmatmul.bf16.gmra.mxu0 %v1038
        %v1366 = vpop.f32.mrf.mxu0
        %v1367 = vadd.f32 %v1306, %v1366
        %v1368 = vpop.f32.mrf.mxu0
        %1369 = vdwg.mxu0
        %s1370 = scalar_lea.vmem %s3, 8
        %v1371 = vld [vmem:[%s1370] sm:$0xff]
        %v1373 = vsel %vm876, %v1371, 0
        %1375 = vmatpush.msra.mxu0 0.0
        %1376 = vmatpush.msra.mxu0 0.0
        %1377 = vmatpush.msra.mxu0 0.0
        %1378 = vmatpush.msra.mxu0 0.0
        %1379 = vmatpush.msra.mxu0 0.0
        %1380 = vmatpush.msra.mxu0 0.0
        %1381 = vmatpush.msra.mxu0 0.0
        %1382 = vmatpush.msra.mxu0 0.0
        %1383 = vmatpush.msra.mxu0 0.0
        %1384 = vmatpush.msra.mxu0 0.0
        %1385 = vmatpush.msra.mxu0 0.0
        %1386 = vmatpush.msra.mxu0 0.0
        %1387 = vmatpush.msra.mxu0 0.0
        %1388 = vmatpush.msra.mxu0 0.0
        %1389 = vmatpush.msra.mxu0 0.0
        %1390 = vmatpush.msra.mxu0 %v1367
        %1391 = vmatmul.f32.gmra.mxu0 %v1373
        %v1392 = vpop.f32.mrf.mxu0
        %v1393 = vadd.f32 0.0, %v1392
        %1394 = vdwg.mxu0
        %v1396 = vsel %vm876, %v1261, 0
        %1398 = vmatpush.msra.mxu0 0.0
        %1399 = vmatpush.msra.mxu0 0.0
        %1400 = vmatpush.msra.mxu0 0.0
        %1401 = vmatpush.msra.mxu0 0.0
        %1402 = vmatpush.msra.mxu0 0.0
        %1403 = vmatpush.msra.mxu0 0.0
        %1404 = vmatpush.msra.mxu0 0.0
        %1405 = vmatpush.msra.mxu0 0.0
        %1406 = vmatpush.msra.mxu0 0.0
        %1407 = vmatpush.msra.mxu0 0.0
        %1408 = vmatpush.msra.mxu0 0.0
        %1409 = vmatpush.msra.mxu0 0.0
        %1410 = vmatpush.msra.mxu0 0.0
        %1411 = vmatpush.msra.mxu0 0.0
        %1412 = vmatpush.msra.mxu0 0.0
        %1413 = vmatpush.msra.mxu0 %v1258
        %1414 = vmatmul.f32.gmra.mxu0 %v1396
        %v1415 = vpop.f32.mrf.mxu0
        %v1416 = vadd.f32 %v1393, %v1415
        %1417 = vdwg.mxu0
        %s1418 = scalar_lea.vmem [#allocation6], 128
        %v1419 = vld [vmem:[%s1418] sm:$0xf]
        %v1420 = vld [vmem:[%s1418 + $0x4] sm:$0xf]
        %v1421 = vld [vmem:[%s1418 + $0x8] sm:$0xf]
        %v1422 = vld [vmem:[%s1418 + $0xc] sm:$0xf]
        %v1423 = vld [vmem:[%s1418 + $0x10] sm:$0xf]
        %v1424 = vld [vmem:[%s1418 + $0x14] sm:$0xf]
        %v1425 = vld [vmem:[%s1418 + $0x18] sm:$0xf]
        %v1426 = vld [vmem:[%s1418 + $0x1c] sm:$0xf]
        %v1427 = vld [vmem:[%s1418 + $0x20] sm:$0xf]
        %v1428 = vld [vmem:[%s1418 + $0x24] sm:$0xf]
        %v1429 = vld [vmem:[%s1418 + $0x28] sm:$0xf]
        %v1430 = vld [vmem:[%s1418 + $0x2c] sm:$0xf]
        %v1431 = vld [vmem:[%s1418 + $0x30] sm:$0xf]
        %v1432 = vld [vmem:[%s1418 + $0x34] sm:$0xf]
        %v1433 = vld [vmem:[%s1418 + $0x38] sm:$0xf]
        %v1434 = vld [vmem:[%s1418 + $0x3c] sm:$0xf]
        %s1435 = scalar_lea.vmem %s8, 32
        %v1436 = vld [vmem:[%s1435] sm:$0xf]
        %v1437 = vld [vmem:[%s1435 + $0x4] sm:$0xf]
        %v1438 = vld [vmem:[%s1435 + $0x8] sm:$0xf]
        %v1439 = vld [vmem:[%s1435 + $0xc] sm:$0xf]
        %v1444 = vunpack.c.l.b16 %v1436
        %v1445 = vunpack.c.l.b16 %v1437
        %v1446 = vunpack.c.l.b16 %v1438
        %v1447 = vunpack.c.l.b16 %v1439
        %v1448 = vpack.c.b16 %v1445, %v1444
        %v1449 = vpack.c.b16 %v1447, %v1446
        %1452 = vmatpush.bf16.msra.mxu0 0
        %1453 = vmatpush.bf16.msra.mxu0 0
        %1454 = vmatpush.bf16.msra.mxu0 0
        %1455 = vmatpush.bf16.msra.mxu0 0
        %1456 = vmatpush.bf16.msra.mxu0 0
        %1457 = vmatpush.bf16.msra.mxu0 0
        %1458 = vmatpush.bf16.msra.mxu0 %v1449
        %1459 = vmatpush.bf16.msra.mxu0 %v1448
        %1460 = vmatmul.bf16.gmra.mxu0 %v1139
        %v1461 = vpop.f32.mrf.mxu0
        %v1462 = vadd.f32 0.0, %v1461
        %v1463 = vpop.f32.mrf.mxu0
        %1464 = vdwg.mxu0
        %v1481 = vunpack.c.l.b16 %v1419
        %v1482 = vunpack.c.l.b16 %v1420
        %v1483 = vunpack.c.l.b16 %v1421
        %v1484 = vunpack.c.l.b16 %v1422
        %v1485 = vunpack.c.l.b16 %v1423
        %v1486 = vunpack.c.l.b16 %v1424
        %v1487 = vunpack.c.l.b16 %v1425
        %v1488 = vunpack.c.l.b16 %v1426
        %v1489 = vunpack.c.l.b16 %v1427
        %v1490 = vunpack.c.l.b16 %v1428
        %v1491 = vunpack.c.l.b16 %v1429
        %v1492 = vunpack.c.l.b16 %v1430
        %v1493 = vunpack.c.l.b16 %v1431
        %v1494 = vunpack.c.l.b16 %v1432
        %v1495 = vunpack.c.l.b16 %v1433
        %v1496 = vunpack.c.l.b16 %v1434
        %v1497 = vpack.c.b16 %v1482, %v1481
        %v1498 = vpack.c.b16 %v1484, %v1483
        %v1499 = vpack.c.b16 %v1486, %v1485
        %v1500 = vpack.c.b16 %v1488, %v1487
        %v1501 = vpack.c.b16 %v1490, %v1489
        %v1502 = vpack.c.b16 %v1492, %v1491
        %v1503 = vpack.c.b16 %v1494, %v1493
        %v1504 = vpack.c.b16 %v1496, %v1495
        %1513 = vmatpush.bf16.msra.mxu0 %v1504
        %1514 = vmatpush.bf16.msra.mxu0 %v1503
        %1515 = vmatpush.bf16.msra.mxu0 %v1502
        %1516 = vmatpush.bf16.msra.mxu0 %v1501
        %1517 = vmatpush.bf16.msra.mxu0 %v1500
        %1518 = vmatpush.bf16.msra.mxu0 %v1499
        %1519 = vmatpush.bf16.msra.mxu0 %v1498
        %1520 = vmatpush.bf16.msra.mxu0 %v1497
        %1521 = vmatmul.bf16.gmra.mxu0 %v1038
        %v1522 = vpop.f32.mrf.mxu0
        %v1523 = vadd.f32 %v1462, %v1522
        %v1524 = vpop.f32.mrf.mxu0
        %1525 = vdwg.mxu0
        %s1526 = scalar_lea.vmem %s3, 16
        %v1527 = vld [vmem:[%s1526] sm:$0xff]
        %v1529 = vsel %vm876, %v1527, 0
        %1531 = vmatpush.msra.mxu0 0.0
        %1532 = vmatpush.msra.mxu0 0.0
        %1533 = vmatpush.msra.mxu0 0.0
        %1534 = vmatpush.msra.mxu0 0.0
        %1535 = vmatpush.msra.mxu0 0.0
        %1536 = vmatpush.msra.mxu0 0.0
        %1537 = vmatpush.msra.mxu0 0.0
        %1538 = vmatpush.msra.mxu0 0.0
        %1539 = vmatpush.msra.mxu0 0.0
        %1540 = vmatpush.msra.mxu0 0.0
        %1541 = vmatpush.msra.mxu0 0.0
        %1542 = vmatpush.msra.mxu0 0.0
        %1543 = vmatpush.msra.mxu0 0.0
        %1544 = vmatpush.msra.mxu0 0.0
        %1545 = vmatpush.msra.mxu0 0.0
        %1546 = vmatpush.msra.mxu0 %v1523
        %1547 = vmatmul.f32.gmra.mxu0 %v1529
        %v1548 = vpop.f32.mrf.mxu0
        %v1549 = vadd.f32 0.0, %v1548
        %1550 = vdwg.mxu0
        %v1551 = vadd.f32 %v1416, %v1549
        %v1552 = vld [vmem:[#allocation7] sm:$0x1]
        %v1554 = vperm.slane %v1552, 0
        %v1556 = vmul.f32 %v1551, %v1554
        %v1557 = vld [vmem:[#allocation9] sm:$0x1]
        %v1559 = vperm.slane %v1557, 0
        %v1561 = vadd.f32 %v1556, %v1559
        %v1562 = vmax.f32 %v1561, 0.0
        %v1563 = vpack.c.bf16 %v1562, %v1562
        %v1564 = vld [vmem:[#allocation10] sm:$0xf]
        %v1565 = vld [vmem:[#allocation10 + $0x4] sm:$0xf]
        %v1566 = vld [vmem:[#allocation10 + $0x8] sm:$0xf]
        %v1567 = vld [vmem:[#allocation10 + $0xc] sm:$0xf]
        %v1568 = vld [vmem:[#allocation10 + $0x10] sm:$0xf]
        %v1569 = vld [vmem:[#allocation10 + $0x14] sm:$0xf]
        %v1570 = vld [vmem:[#allocation10 + $0x18] sm:$0xf]
        %v1571 = vld [vmem:[#allocation10 + $0x1c] sm:$0xf]
        %v1572 = vld [vmem:[#allocation10 + $0x20] sm:$0xf]
        %v1573 = vld [vmem:[#allocation10 + $0x24] sm:$0xf]
        %v1574 = vld [vmem:[#allocation10 + $0x28] sm:$0xf]
        %v1575 = vld [vmem:[#allocation10 + $0x2c] sm:$0xf]
        %v1576 = vld [vmem:[#allocation10 + $0x30] sm:$0xf]
        %v1577 = vld [vmem:[#allocation10 + $0x34] sm:$0xf]
        %v1578 = vld [vmem:[#allocation10 + $0x38] sm:$0xf]
        %v1579 = vld [vmem:[#allocation10 + $0x3c] sm:$0xf]
        %v1596 = vunpack.c.l.b16 %v1564
        %v1597 = vunpack.c.l.b16 %v1565
        %v1598 = vunpack.c.l.b16 %v1566
        %v1599 = vunpack.c.l.b16 %v1567
        %v1600 = vunpack.c.l.b16 %v1568
        %v1601 = vunpack.c.l.b16 %v1569
        %v1602 = vunpack.c.l.b16 %v1570
        %v1603 = vunpack.c.l.b16 %v1571
        %v1604 = vunpack.c.l.b16 %v1572
        %v1605 = vunpack.c.l.b16 %v1573
        %v1606 = vunpack.c.l.b16 %v1574
        %v1607 = vunpack.c.l.b16 %v1575
        %v1608 = vunpack.c.l.b16 %v1576
        %v1609 = vunpack.c.l.b16 %v1577
        %v1610 = vunpack.c.l.b16 %v1578
        %v1611 = vunpack.c.l.b16 %v1579
        %v1612 = vpack.c.b16 %v1597, %v1596
        %v1613 = vpack.c.b16 %v1599, %v1598
        %v1614 = vpack.c.b16 %v1601, %v1600
        %v1615 = vpack.c.b16 %v1603, %v1602
        %v1616 = vpack.c.b16 %v1605, %v1604
        %v1617 = vpack.c.b16 %v1607, %v1606
        %v1618 = vpack.c.b16 %v1609, %v1608
        %v1619 = vpack.c.b16 %v1611, %v1610
        %1628 = vmatpush.bf16.msra.mxu0 %v1619
        %1629 = vmatpush.bf16.msra.mxu0 %v1618
        %1630 = vmatpush.bf16.msra.mxu0 %v1617
        %1631 = vmatpush.bf16.msra.mxu0 %v1616
        %1632 = vmatpush.bf16.msra.mxu0 %v1615
        %1633 = vmatpush.bf16.msra.mxu0 %v1614
        %1634 = vmatpush.bf16.msra.mxu0 %v1613
        %1635 = vmatpush.bf16.msra.mxu0 %v1612
        %1636 = vmatmul.bf16.gmra.mxu0 %v1563
        %v1637 = vpop.f32.mrf.mxu0
        %v1638 = vadd.f32 0.0, %v1637
        %v1639 = vpop.f32.mrf.mxu0
        %1640 = vdwg.mxu0
        %s1641 = scalar_lea.vmem [#allocation10], 64
        %v1642 = vld [vmem:[%s1641] sm:$0xf]
        %v1643 = vld [vmem:[%s1641 + $0x4] sm:$0xf]
        %v1644 = vld [vmem:[%s1641 + $0x8] sm:$0xf]
        %v1645 = vld [vmem:[%s1641 + $0xc] sm:$0xf]
        %v1646 = vld [vmem:[%s1641 + $0x10] sm:$0xf]
        %v1647 = vld [vmem:[%s1641 + $0x14] sm:$0xf]
        %v1648 = vld [vmem:[%s1641 + $0x18] sm:$0xf]
        %v1649 = vld [vmem:[%s1641 + $0x1c] sm:$0xf]
        %v1650 = vld [vmem:[%s1641 + $0x20] sm:$0xf]
        %v1651 = vld [vmem:[%s1641 + $0x24] sm:$0xf]
        %v1652 = vld [vmem:[%s1641 + $0x28] sm:$0xf]
        %v1653 = vld [vmem:[%s1641 + $0x2c] sm:$0xf]
        %v1654 = vld [vmem:[%s1641 + $0x30] sm:$0xf]
        %v1655 = vld [vmem:[%s1641 + $0x34] sm:$0xf]
        %v1656 = vld [vmem:[%s1641 + $0x38] sm:$0xf]
        %v1657 = vld [vmem:[%s1641 + $0x3c] sm:$0xf]
        %v1674 = vunpack.c.l.b16 %v1642
        %v1675 = vunpack.c.l.b16 %v1643
        %v1676 = vunpack.c.l.b16 %v1644
        %v1677 = vunpack.c.l.b16 %v1645
        %v1678 = vunpack.c.l.b16 %v1646
        %v1679 = vunpack.c.l.b16 %v1647
        %v1680 = vunpack.c.l.b16 %v1648
        %v1681 = vunpack.c.l.b16 %v1649
        %v1682 = vunpack.c.l.b16 %v1650
        %v1683 = vunpack.c.l.b16 %v1651
        %v1684 = vunpack.c.l.b16 %v1652
        %v1685 = vunpack.c.l.b16 %v1653
        %v1686 = vunpack.c.l.b16 %v1654
        %v1687 = vunpack.c.l.b16 %v1655
        %v1688 = vunpack.c.l.b16 %v1656
        %v1689 = vunpack.c.l.b16 %v1657
        %v1690 = vpack.c.b16 %v1675, %v1674
        %v1691 = vpack.c.b16 %v1677, %v1676
        %v1692 = vpack.c.b16 %v1679, %v1678
        %v1693 = vpack.c.b16 %v1681, %v1680
        %v1694 = vpack.c.b16 %v1683, %v1682
        %v1695 = vpack.c.b16 %v1685, %v1684
        %v1696 = vpack.c.b16 %v1687, %v1686
        %v1697 = vpack.c.b16 %v1689, %v1688
        %1706 = vmatpush.bf16.msra.mxu0 %v1697
        %1707 = vmatpush.bf16.msra.mxu0 %v1696
        %1708 = vmatpush.bf16.msra.mxu0 %v1695
        %1709 = vmatpush.bf16.msra.mxu0 %v1694
        %1710 = vmatpush.bf16.msra.mxu0 %v1693
        %1711 = vmatpush.bf16.msra.mxu0 %v1692
        %1712 = vmatpush.bf16.msra.mxu0 %v1691
        %1713 = vmatpush.bf16.msra.mxu0 %v1690
        %1714 = vmatmul.bf16.gmra.mxu0 %v1563
        %v1715 = vpop.f32.mrf.mxu0
        %v1716 = vadd.f32 0.0, %v1715
        %v1717 = vpop.f32.mrf.mxu0
        %1718 = vdwg.mxu0
        %1719 = vmatpush.msra.mxu0 0.0
        %1720 = vmatpush.msra.mxu0 0.0
        %1721 = vmatpush.msra.mxu0 0.0
        %1722 = vmatpush.msra.mxu0 0.0
        %1723 = vmatpush.msra.mxu0 0.0
        %1724 = vmatpush.msra.mxu0 0.0
        %1725 = vmatpush.msra.mxu0 0.0
        %1726 = vmatpush.msra.mxu0 0.0
        %1727 = vmatpush.msra.mxu0 0.0
        %1728 = vmatpush.msra.mxu0 0.0
        %1729 = vmatpush.msra.mxu0 0.0
        %1730 = vmatpush.msra.mxu0 0.0
        %1731 = vmatpush.msra.mxu0 0.0
        %1732 = vmatpush.msra.mxu0 0.0
        %1733 = vmatpush.msra.mxu0 0.0
        %1734 = vmatpush.msra.mxu0 %v1716
        %1735 = vmatmul.f32.gmra.mxu0 %v1373
        %v1736 = vpop.f32.mrf.mxu0
        %v1737 = vadd.f32 0.0, %v1736
        %1738 = vdwg.mxu0
        %1739 = vmatpush.msra.mxu0 0.0
        %1740 = vmatpush.msra.mxu0 0.0
        %1741 = vmatpush.msra.mxu0 0.0
        %1742 = vmatpush.msra.mxu0 0.0
        %1743 = vmatpush.msra.mxu0 0.0
        %1744 = vmatpush.msra.mxu0 0.0
        %1745 = vmatpush.msra.mxu0 0.0
        %1746 = vmatpush.msra.mxu0 0.0
        %1747 = vmatpush.msra.mxu0 0.0
        %1748 = vmatpush.msra.mxu0 0.0
        %1749 = vmatpush.msra.mxu0 0.0
        %1750 = vmatpush.msra.mxu0 0.0
        %1751 = vmatpush.msra.mxu0 0.0
        %1752 = vmatpush.msra.mxu0 0.0
        %1753 = vmatpush.msra.mxu0 0.0
        %1754 = vmatpush.msra.mxu0 %v1638
        %1755 = vmatmul.f32.gmra.mxu0 %v1396
        %v1756 = vpop.f32.mrf.mxu0
        %v1757 = vadd.f32 %v1737, %v1756
        %1758 = vdwg.mxu0
        %s1759 = scalar_lea.vmem [#allocation10], 128
        %v1760 = vld [vmem:[%s1759] sm:$0xf]
        %v1761 = vld [vmem:[%s1759 + $0x4] sm:$0xf]
        %v1762 = vld [vmem:[%s1759 + $0x8] sm:$0xf]
        %v1763 = vld [vmem:[%s1759 + $0xc] sm:$0xf]
        %v1764 = vld [vmem:[%s1759 + $0x10] sm:$0xf]
        %v1765 = vld [vmem:[%s1759 + $0x14] sm:$0xf]
        %v1766 = vld [vmem:[%s1759 + $0x18] sm:$0xf]
        %v1767 = vld [vmem:[%s1759 + $0x1c] sm:$0xf]
        %v1768 = vld [vmem:[%s1759 + $0x20] sm:$0xf]
        %v1769 = vld [vmem:[%s1759 + $0x24] sm:$0xf]
        %v1770 = vld [vmem:[%s1759 + $0x28] sm:$0xf]
        %v1771 = vld [vmem:[%s1759 + $0x2c] sm:$0xf]
        %v1772 = vld [vmem:[%s1759 + $0x30] sm:$0xf]
        %v1773 = vld [vmem:[%s1759 + $0x34] sm:$0xf]
        %v1774 = vld [vmem:[%s1759 + $0x38] sm:$0xf]
        %v1775 = vld [vmem:[%s1759 + $0x3c] sm:$0xf]
        %v1792 = vunpack.c.l.b16 %v1760
        %v1793 = vunpack.c.l.b16 %v1761
        %v1794 = vunpack.c.l.b16 %v1762
        %v1795 = vunpack.c.l.b16 %v1763
        %v1796 = vunpack.c.l.b16 %v1764
        %v1797 = vunpack.c.l.b16 %v1765
        %v1798 = vunpack.c.l.b16 %v1766
        %v1799 = vunpack.c.l.b16 %v1767
        %v1800 = vunpack.c.l.b16 %v1768
        %v1801 = vunpack.c.l.b16 %v1769
        %v1802 = vunpack.c.l.b16 %v1770
        %v1803 = vunpack.c.l.b16 %v1771
        %v1804 = vunpack.c.l.b16 %v1772
        %v1805 = vunpack.c.l.b16 %v1773
        %v1806 = vunpack.c.l.b16 %v1774
        %v1807 = vunpack.c.l.b16 %v1775
        %v1808 = vpack.c.b16 %v1793, %v1792
        %v1809 = vpack.c.b16 %v1795, %v1794
        %v1810 = vpack.c.b16 %v1797, %v1796
        %v1811 = vpack.c.b16 %v1799, %v1798
        %v1812 = vpack.c.b16 %v1801, %v1800
        %v1813 = vpack.c.b16 %v1803, %v1802
        %v1814 = vpack.c.b16 %v1805, %v1804
        %v1815 = vpack.c.b16 %v1807, %v1806
        %1824 = vmatpush.bf16.msra.mxu0 %v1815
        %1825 = vmatpush.bf16.msra.mxu0 %v1814
        %1826 = vmatpush.bf16.msra.mxu0 %v1813
        %1827 = vmatpush.bf16.msra.mxu0 %v1812
        %1828 = vmatpush.bf16.msra.mxu0 %v1811
        %1829 = vmatpush.bf16.msra.mxu0 %v1810
        %1830 = vmatpush.bf16.msra.mxu0 %v1809
        %1831 = vmatpush.bf16.msra.mxu0 %v1808
        %1832 = vmatmul.bf16.gmra.mxu0 %v1563
        %v1833 = vpop.f32.mrf.mxu0
        %v1834 = vadd.f32 0.0, %v1833
        %v1835 = vpop.f32.mrf.mxu0
        %1836 = vdwg.mxu0
        %1837 = vmatpush.msra.mxu0 0.0
        %1838 = vmatpush.msra.mxu0 0.0
        %1839 = vmatpush.msra.mxu0 0.0
        %1840 = vmatpush.msra.mxu0 0.0
        %1841 = vmatpush.msra.mxu0 0.0
        %1842 = vmatpush.msra.mxu0 0.0
        %1843 = vmatpush.msra.mxu0 0.0
        %1844 = vmatpush.msra.mxu0 0.0
        %1845 = vmatpush.msra.mxu0 0.0
        %1846 = vmatpush.msra.mxu0 0.0
        %1847 = vmatpush.msra.mxu0 0.0
        %1848 = vmatpush.msra.mxu0 0.0
        %1849 = vmatpush.msra.mxu0 0.0
        %1850 = vmatpush.msra.mxu0 0.0
        %1851 = vmatpush.msra.mxu0 0.0
        %1852 = vmatpush.msra.mxu0 %v1834
        %1853 = vmatmul.f32.gmra.mxu0 %v1529
        %v1854 = vpop.f32.mrf.mxu0
        %v1855 = vadd.f32 0.0, %v1854
        %1856 = vdwg.mxu0
        %v1857 = vadd.f32 %v1757, %v1855
        %v1858 = vld [vmem:[#allocation12] sm:$0x1]
        %v1860 = vperm.slane %v1858, 0
        %v1862 = vmul.f32 %v1857, %v1860
        %v1863 = vld [vmem:[#allocation13] sm:$0x1]
        %v1865 = vperm.slane %v1863, 0
        %v1867 = vadd.f32 %v1862, %v1865
        %v1868 = vadd.f32 %v1867, %v1154
        %v1869 = vmax.f32 %v1868, 0.0
        %v1870 = vpack.c.bf16 %v1869, %v1869
        %1871 = vst [vmem:[%s714] sm:$0xf] %v1870
        %p1872 = scmp.lt.s32.totalorder %s34, 1
        %s1873 = scalar_select %p1872, %s34, 1
        %s1874 = smul.addr %s1873, 4
        %s1875 = scalar_lea.vmem %s17, %s1874
        // Predicated region
        $region129: #{_lambda_.3} parent=87 // pred_check
          %p1876 = pneg %p419
        $region130: #{_lambda_.3} parent=87 // pred_check_branch
          %1878 = sbr.rel (%p1876) target = $region132
        $region131: #{_lambda_.3} parent=87 // pred_region
          _
        $region132: #{_lambda_.3} parent=87 // pred_fallthru
          _
      $region88: #{_lambda_.3} parent=5 // pred_fallthru
        _
      %p1879 = scmp.le.s32.totalorder 2, %s29
      // Predicated region
      $region133: #{_lambda_.3} parent=5 // pred_check
        %p1880 = pneg %p1879
      $region134: #{_lambda_.3} parent=5 // pred_check_branch
        %1882 = sbr.rel (%p1880) target = $region136
      $region135: #{_lambda_.3} parent=5 // pred_region
        %s1883 = ssub.s32 %s29, 2
        // Predicated region
        $region137: #{_lambda_.3} parent=135 // pred_check
          %p1884 = pneg %p425
        $region138: #{_lambda_.3} parent=135 // pred_check_branch
          %1886 = sbr.rel (%p1884) target = $region140
        $region139: #{_lambda_.3} parent=135 // pred_region
          %p1887 = scmp.lt.s32.totalorder %s35, 1
          %s1888 = scalar_select %p1887, %s35, 1
          %s1889 = smul.addr %s1888, 4
          %s1890 = scalar_lea.vmem %s17, %s1889
        $region140: #{_lambda_.3} parent=135 // pred_fallthru
          _
      $region136: #{_lambda_.3} parent=5 // pred_fallthru
        _
    $region6: #{_lambda_.3} parent=1 // loop_footer
      %s33 = sadd.s32 1, %s29
    $region7: #{_lambda_.3} parent=1 // loop_footer_branch
      %28 = sbr.rel target = $region3
    $region8: #{_lambda_.3} parent=1 // loop_exit
      _
    %1891 = vsyncpa [#allocation3], 1
    %s1892 = scalar_lea.sflag [#allocation3], 1
    %1893 = vsyncpa %s1892, 1
    %1894 = vsyncpa [#allocation5], 1
    %1895 = vsyncpa [#allocation8], 1
    %1896 = vsyncpa [#allocation11], 1
    %1897 = vsyncpa [#allocation14], 1
    %1898 = vsyncpa [#allocation17], 1

</llo_original>
